<compile_context>
chip_gen: v7x
topology: tpu7x:2x2x1
jax: 0.10.0
libtpu: 0.0.40
codegen_flags: <defaults>
</compile_context>

<pallas_src>
import functools

import jax
import jax.numpy as jnp
from jax.experimental import pallas as pl
from jax.experimental.pallas import tpu as pltpu


def _round_up(x, m):
    return (x + m - 1) // m * m


def _choose_block_b(B, Q_pad, x_itemsize, out_itemsize=4,
                    vmem_budget_bytes=12 * 1024 * 1024):
    """Largest batch tile whose double-buffered x/out streams fit the budget.

    Budget is conservative (12 MiB) so the same choice is safe on v5e's 16 MiB
    default scoped VMEM, v6e's 32 MiB and v7x's 64 MiB physical VMEM.
    """
    per_row = 2 * Q_pad * (x_itemsize + out_itemsize)   # 2x = double buffering
    cap = max(8, vmem_budget_bytes // per_row)
    cap = (cap // 128) * 128 if cap >= 128 else (cap // 8) * 8
    cap = max(8, min(512, cap))
    return int(min(cap, _round_up(B, 8)))


def _ae_kernel(x_ref, gw_ref, gb_ref, fw_ref, fb_ref,
               ew_ref, eb_ref, hw_ref, hb_ref, out_ref):
    """Fused forward: sigmoid(h(sigmoid(e(sigmoid(f(sigmoid(g(x))))))))."""
    wdt = gw_ref.dtype          # MXU operand dtype (bf16 or f32)
    x = x_ref[...]              # already cast to the operand dtype in wrapper

    h = jnp.dot(x, gw_ref[...], preferred_element_type=jnp.float32)
    h = jax.nn.sigmoid(h + gb_ref[...])            # bias + sigmoid in f32
    h = jnp.dot(h.astype(wdt), fw_ref[...], preferred_element_type=jnp.float32)
    h = jax.nn.sigmoid(h + fb_ref[...])
    h = jnp.dot(h.astype(wdt), ew_ref[...], preferred_element_type=jnp.float32)
    h = jax.nn.sigmoid(h + eb_ref[...])
    h = jnp.dot(h.astype(wdt), hw_ref[...], preferred_element_type=jnp.float32)
    out_ref[...] = jax.nn.sigmoid(h + hb_ref[...]).astype(out_ref.dtype)


def prepare_params(params, *, use_bf16=True):
    """One-time glue (outside the hot path): transpose PyTorch (out,in) weights
    to (in,out) MXU operands, pad the num_question axis to a multiple of 128,
    optionally cast weights to bf16; biases stay f32 with shape (1, out)."""
    Q = params["g_w"].shape[1]
    Q_pad = _round_up(Q, 128)
    wdt = jnp.bfloat16 if use_bf16 else jnp.float32
    pad_rows = ((0, Q_pad - Q), (0, 0))
    pad_cols = ((0, 0), (0, Q_pad - Q))
    return {
        "gw": jnp.pad(params["g_w"].T, pad_rows).astype(wdt),   # (Q_pad, 64)
        "gb": params["g_b"][None, :].astype(jnp.float32),       # (1, 64)
        "fw": params["f_w"].T.astype(wdt),                      # (64, k)
        "fb": params["f_b"][None, :].astype(jnp.float32),       # (1, k)
        "ew": params["e_w"].T.astype(wdt),                      # (k, 64)
        "eb": params["e_b"][None, :].astype(jnp.float32),       # (1, 64)
        "hw": jnp.pad(params["h_w"].T, pad_cols).astype(wdt),   # (64, Q_pad)
        "hb": jnp.pad(params["h_b"], (0, Q_pad - Q))[None, :].astype(jnp.float32),
    }


@functools.partial(jax.jit, static_argnames=("block_b", "vmem_limit_bytes"))
def autoencoder_forward(x, prepared, *, block_b=None,
                        vmem_limit_bytes=40 * 1024 * 1024):
    """x: (B, Q) float32.  prepared: output of prepare_params()."""
    B, Q = x.shape
    gw, gb = prepared["gw"], prepared["gb"]
    fw, fb = prepared["fw"], prepared["fb"]
    ew, eb = prepared["ew"], prepared["eb"]
    hw, hb = prepared["hw"], prepared["hb"]

    Q_pad, H1 = gw.shape
    K = fw.shape[1]
    cdt = gw.dtype                      # streaming / MXU operand dtype
    assert Q <= Q_pad and hw.shape == (H1, Q_pad)

    if block_b is None:
        block_b = _choose_block_b(B, Q_pad, jnp.dtype(cdt).itemsize)
    block_b = max(8, (block_b // 8) * 8)
    B_pad = _round_up(max(B, block_b), block_b)

    # Zero-pad batch & feature axes (and cast to operand dtype) so tiles are
    # lane-dense and no trailing rows are dropped.
    x_pad = jnp.pad(x.astype(cdt), ((0, B_pad - B), (0, Q_pad - Q)))

    grid = (B_pad // block_b,)
    resident = lambda i: (0, 0)         # weights/biases stay VMEM-resident

    out = pl.pallas_call(
        _ae_kernel,
        out_shape=jax.ShapeDtypeStruct((B_pad, Q_pad), jnp.float32),
        grid_spec=pltpu.PrefetchScalarGridSpec(
            num_scalar_prefetch=0,
            grid=grid,
            in_specs=[
                pl.BlockSpec((block_b, Q_pad), lambda i: (i, 0)),  # x (streamed)
                pl.BlockSpec((Q_pad, H1), resident),               # g weight
                pl.BlockSpec((1, H1), resident),                   # g bias
                pl.BlockSpec((H1, K), resident),                   # f weight
                pl.BlockSpec((1, K), resident),                    # f bias
                pl.BlockSpec((K, H1), resident),                   # e weight
                pl.BlockSpec((1, H1), resident),                   # e bias
                pl.BlockSpec((H1, Q_pad), resident),               # h weight
                pl.BlockSpec((1, Q_pad), resident),                # h bias
            ],
            out_specs=pl.BlockSpec((block_b, Q_pad), lambda i: (i, 0)),
        ),
        compiler_params=pltpu.CompilerParams(
            dimension_semantics=("parallel",),
            vmem_limit_bytes=vmem_limit_bytes),
    )(x_pad, gw, gb, fw, fb, ew, eb, hw, hb)

    return out[:B, :Q]


def init_params(key, num_question, k=32):
    """Deterministic init matching the PyTorch module's parameter shapes."""
    ks = jax.random.split(key, 8)

    def uniform(k_, shape, fan_in):
        bound = 1.0 / jnp.sqrt(float(fan_in))
        return jax.random.uniform(k_, shape, jnp.float32, -bound, bound)

    return {
        "g_w": uniform(ks[0], (64, num_question), num_question),   # nn.Linear(Q, 64)
        "g_b": uniform(ks[1], (64,), num_question),
        "f_w": uniform(ks[2], (k, 64), 64),                        # nn.Linear(64, k)
        "f_b": uniform(ks[3], (k,), 64),
        "e_w": uniform(ks[4], (64, k), k),                         # nn.Linear(k, 64)
        "e_b": uniform(ks[5], (64,), k),
        "h_w": uniform(ks[6], (num_question, 64), 64),             # nn.Linear(64, Q)
        "h_b": uniform(ks[7], (num_question,), 64),
    }


def reference_forward(x, params):
    """Plain-JAX reference replicating the PyTorch forward exactly."""
    t = jax.nn.sigmoid(x @ params["g_w"].T + params["g_b"])
    t = jax.nn.sigmoid(t @ params["f_w"].T + params["f_b"])
    t = jax.nn.sigmoid(t @ params["e_w"].T + params["e_b"])
    return jax.nn.sigmoid(t @ params["h_w"].T + params["h_b"])


if __name__ == "__main__":
    key = jax.random.PRNGKey(0)
    k_param, k_x = jax.random.split(key)

    NUM_QUESTION = 200   # deliberately NOT a multiple of 128 (exercises Q padding)
    K = 32               # latent dim k
    BATCH = 600          # not a multiple of the tile size (exercises cdiv + pad)

    params = init_params(k_param, NUM_QUESTION, K)
    x = jax.random.uniform(k_x, (BATCH, NUM_QUESTION), jnp.float32)

    ref = reference_forward(x, params)

    # f32 operand path: must match the PyTorch-convention reference tightly.
    out_f32 = jax.block_until_ready(
        autoencoder_forward(x, prepare_params(params, use_bf16=False)))
    assert out_f32.shape == (BATCH, NUM_QUESTION)
    assert jnp.allclose(out_f32, ref, atol=1e-5, rtol=1e-5), "f32 mismatch vs reference"

    # bf16 MXU-operand path (default, fast on v6e/v7x): relaxed tolerance.
    out_bf16 = jax.block_until_ready(
        autoencoder_forward(x, prepare_params(params, use_bf16=True)))
    assert out_bf16.shape == (BATCH, NUM_QUESTION)
    assert jnp.allclose(out_bf16, ref, atol=2e-2, rtol=0.0), "bf16 mismatch vs reference"

    print("KERNEL_OK")
</pallas_src>

<mosaic_0001>
module attributes {stable_mosaic.version = 11 : i64} {
  func.func @_ae_kernel(%arg0: i32, %arg1: memref<512x256xf32, #tpu.memory_space<vmem>>, %arg2: memref<256x64xf32, #tpu.memory_space<vmem>>, %arg3: memref<1x64xf32, #tpu.memory_space<vmem>>, %arg4: memref<64x32xf32, #tpu.memory_space<vmem>>, %arg5: memref<1x32xf32, #tpu.memory_space<vmem>>, %arg6: memref<32x64xf32, #tpu.memory_space<vmem>>, %arg7: memref<1x64xf32, #tpu.memory_space<vmem>>, %arg8: memref<64x256xf32, #tpu.memory_space<vmem>>, %arg9: memref<1x256xf32, #tpu.memory_space<vmem>>, %arg10: memref<512x256xf32, #tpu.memory_space<vmem>>) attributes {dimension_semantics = [#tpu.dimension_semantics<parallel>], iteration_bounds = array<i64: 2>, scalar_prefetch = 0 : i64, scratch_operands = 0 : i64, tpu.core_type = #tpu.core_type<tc>, window_params = [{transform_indices = @transform_0, window_bounds = array<i64: 512, 256>}, {pipeline_mode = #tpu.pipeline_mode<synchronous>, transform_indices = @transform_1, window_bounds = array<i64: 256, 64>}, {pipeline_mode = #tpu.pipeline_mode<synchronous>, transform_indices = @transform_2, window_bounds = array<i64: 1, 64>}, {pipeline_mode = #tpu.pipeline_mode<synchronous>, transform_indices = @transform_3, window_bounds = array<i64: 64, 32>}, {pipeline_mode = #tpu.pipeline_mode<synchronous>, transform_indices = @transform_4, window_bounds = array<i64: 1, 32>}, {pipeline_mode = #tpu.pipeline_mode<synchronous>, transform_indices = @transform_5, window_bounds = array<i64: 32, 64>}, {pipeline_mode = #tpu.pipeline_mode<synchronous>, transform_indices = @transform_6, window_bounds = array<i64: 1, 64>}, {pipeline_mode = #tpu.pipeline_mode<synchronous>, transform_indices = @transform_7, window_bounds = array<i64: 64, 256>}, {pipeline_mode = #tpu.pipeline_mode<synchronous>, transform_indices = @transform_8, window_bounds = array<i64: 1, 256>}, {transform_indices = @transform_9, window_bounds = array<i64: 512, 256>}]} {
    %c0 = arith.constant 0 : index
    %c0_0 = arith.constant 0 : index
    %0 = vector.load %arg1[%c0, %c0_0] : memref<512x256xf32, #tpu.memory_space<vmem>>, vector<512x256xf32>
    %c0_1 = arith.constant 0 : index
    %c0_2 = arith.constant 0 : index
    %1 = vector.load %arg2[%c0_1, %c0_2] : memref<256x64xf32, #tpu.memory_space<vmem>>, vector<256x64xf32>
    %cst = arith.constant dense<0.000000e+00> : vector<512x64xf32>
    %2 = tpu.matmul %0, %1, %cst {dimension_numbers = #tpu.dot_dimension_numbers<[1], [0], [0], [1], [0, 0, 1, 1], [], []>} : vector<512x256xf32>, vector<256x64xf32>, vector<512x64xf32> -> vector<512x64xf32>
    %c0_3 = arith.constant 0 : index
    %c0_4 = arith.constant 0 : index
    %3 = vector.load %arg3[%c0_3, %c0_4] : memref<1x64xf32, #tpu.memory_space<vmem>>, vector<1x64xf32>
    %4 = vector.broadcast %3 : vector<1x64xf32> to vector<512x64xf32>
    %5 = arith.addf %2, %4 : vector<512x64xf32>
    %6 = arith.negf %5 : vector<512x64xf32>
    %7 = math.exp %6 : vector<512x64xf32>
    %cst_5 = arith.constant 1.000000e+00 : f32
    %8 = vector.broadcast %cst_5 : f32 to vector<512x64xf32>
    %9 = arith.addf %8, %7 : vector<512x64xf32>
    %10 = arith.divf %8, %9 : vector<512x64xf32>
    %c0_6 = arith.constant 0 : index
    %c0_7 = arith.constant 0 : index
    %11 = vector.load %arg4[%c0_6, %c0_7] : memref<64x32xf32, #tpu.memory_space<vmem>>, vector<64x32xf32>
    %cst_8 = arith.constant dense<0.000000e+00> : vector<512x32xf32>
    %12 = tpu.matmul %10, %11, %cst_8 {dimension_numbers = #tpu.dot_dimension_numbers<[1], [0], [0], [1], [0, 0, 1, 1], [], []>} : vector<512x64xf32>, vector<64x32xf32>, vector<512x32xf32> -> vector<512x32xf32>
    %c0_9 = arith.constant 0 : index
    %c0_10 = arith.constant 0 : index
    %13 = vector.load %arg5[%c0_9, %c0_10] : memref<1x32xf32, #tpu.memory_space<vmem>>, vector<1x32xf32>
    %14 = vector.broadcast %13 : vector<1x32xf32> to vector<512x32xf32>
    %15 = arith.addf %12, %14 : vector<512x32xf32>
    %16 = arith.negf %15 : vector<512x32xf32>
    %17 = math.exp %16 : vector<512x32xf32>
    %cst_11 = arith.constant 1.000000e+00 : f32
    %18 = vector.broadcast %cst_11 : f32 to vector<512x32xf32>
    %19 = arith.addf %18, %17 : vector<512x32xf32>
    %20 = arith.divf %18, %19 : vector<512x32xf32>
    %c0_12 = arith.constant 0 : index
    %c0_13 = arith.constant 0 : index
    %21 = vector.load %arg6[%c0_12, %c0_13] : memref<32x64xf32, #tpu.memory_space<vmem>>, vector<32x64xf32>
    %cst_14 = arith.constant dense<0.000000e+00> : vector<512x64xf32>
    %22 = tpu.matmul %20, %21, %cst_14 {dimension_numbers = #tpu.dot_dimension_numbers<[1], [0], [0], [1], [0, 0, 1, 1], [], []>} : vector<512x32xf32>, vector<32x64xf32>, vector<512x64xf32> -> vector<512x64xf32>
    %c0_15 = arith.constant 0 : index
    %c0_16 = arith.constant 0 : index
    %23 = vector.load %arg7[%c0_15, %c0_16] : memref<1x64xf32, #tpu.memory_space<vmem>>, vector<1x64xf32>
    %24 = vector.broadcast %23 : vector<1x64xf32> to vector<512x64xf32>
    %25 = arith.addf %22, %24 : vector<512x64xf32>
    %26 = arith.negf %25 : vector<512x64xf32>
    %27 = math.exp %26 : vector<512x64xf32>
    %cst_17 = arith.constant 1.000000e+00 : f32
    %28 = vector.broadcast %cst_17 : f32 to vector<512x64xf32>
    %29 = arith.addf %28, %27 : vector<512x64xf32>
    %30 = arith.divf %28, %29 : vector<512x64xf32>
    %c0_18 = arith.constant 0 : index
    %c0_19 = arith.constant 0 : index
    %31 = vector.load %arg8[%c0_18, %c0_19] : memref<64x256xf32, #tpu.memory_space<vmem>>, vector<64x256xf32>
    %cst_20 = arith.constant dense<0.000000e+00> : vector<512x256xf32>
    %32 = tpu.matmul %30, %31, %cst_20 {dimension_numbers = #tpu.dot_dimension_numbers<[1], [0], [0], [1], [0, 0, 1, 1], [], []>} : vector<512x64xf32>, vector<64x256xf32>, vector<512x256xf32> -> vector<512x256xf32>
    %c0_21 = arith.constant 0 : index
    %c0_22 = arith.constant 0 : index
    %33 = vector.load %arg9[%c0_21, %c0_22] : memref<1x256xf32, #tpu.memory_space<vmem>>, vector<1x256xf32>
    %34 = vector.broadcast %33 : vector<1x256xf32> to vector<512x256xf32>
    %35 = arith.addf %32, %34 : vector<512x256xf32>
    %36 = arith.negf %35 : vector<512x256xf32>
    %37 = math.exp %36 : vector<512x256xf32>
    %cst_23 = arith.constant 1.000000e+00 : f32
    %38 = vector.broadcast %cst_23 : f32 to vector<512x256xf32>
    %39 = arith.addf %38, %37 : vector<512x256xf32>
    %40 = arith.divf %38, %39 : vector<512x256xf32>
    %c0_24 = arith.constant 0 : index
    %c0_25 = arith.constant 0 : index
    %41 = vector.load %arg10[%c0_24, %c0_25] : memref<512x256xf32, #tpu.memory_space<vmem>>, vector<512x256xf32>
    tpu.vector_store %arg10[%c0_24, %c0_25], %40 {strides = array<i32>} : memref<512x256xf32, #tpu.memory_space<vmem>>, vector<512x256xf32>,
    return
  }
  func.func @transform_0(%arg0: i32) -> (i32, i32) {
    %c0_i32 = arith.constant 0 : i32
    %c0_i32_0 = arith.constant 0 : i32
    return %arg0, %c0_i32 : i32, i32
  }
  func.func @transform_1(%arg0: i32) -> (i32, i32) {
    %c0_i32 = arith.constant 0 : i32
    %c0_i32_0 = arith.constant 0 : i32
    %c0_i32_1 = arith.constant 0 : i32
    return %c0_i32, %c0_i32_0 : i32, i32
  }
  func.func @transform_2(%arg0: i32) -> (i32, i32) {
    %c0_i32 = arith.constant 0 : i32
    %c0_i32_0 = arith.constant 0 : i32
    %c0_i32_1 = arith.constant 0 : i32
    return %c0_i32, %c0_i32_0 : i32, i32
  }
  func.func @transform_3(%arg0: i32) -> (i32, i32) {
    %c0_i32 = arith.constant 0 : i32
    %c0_i32_0 = arith.constant 0 : i32
    %c0_i32_1 = arith.constant 0 : i32
    return %c0_i32, %c0_i32_0 : i32, i32
  }
  func.func @transform_4(%arg0: i32) -> (i32, i32) {
    %c0_i32 = arith.constant 0 : i32
    %c0_i32_0 = arith.constant 0 : i32
    %c0_i32_1 = arith.constant 0 : i32
    return %c0_i32, %c0_i32_0 : i32, i32
  }
  func.func @transform_5(%arg0: i32) -> (i32, i32) {
    %c0_i32 = arith.constant 0 : i32
    %c0_i32_0 = arith.constant 0 : i32
    %c0_i32_1 = arith.constant 0 : i32
    return %c0_i32, %c0_i32_0 : i32, i32
  }
  func.func @transform_6(%arg0: i32) -> (i32, i32) {
    %c0_i32 = arith.constant 0 : i32
    %c0_i32_0 = arith.constant 0 : i32
    %c0_i32_1 = arith.constant 0 : i32
    return %c0_i32, %c0_i32_0 : i32, i32
  }
  func.func @transform_7(%arg0: i32) -> (i32, i32) {
    %c0_i32 = arith.constant 0 : i32
    %c0_i32_0 = arith.constant 0 : i32
    %c0_i32_1 = arith.constant 0 : i32
    return %c0_i32, %c0_i32_0 : i32, i32
  }
  func.func @transform_8(%arg0: i32) -> (i32, i32) {
    %c0_i32 = arith.constant 0 : i32
    %c0_i32_0 = arith.constant 0 : i32
    %c0_i32_1 = arith.constant 0 : i32
    return %c0_i32, %c0_i32_0 : i32, i32
  }
  func.func @transform_9(%arg0: i32) -> (i32, i32) {
    %c0_i32 = arith.constant 0 : i32
    %c0_i32_0 = arith.constant 0 : i32
    return %arg0, %c0_i32 : i32, i32
  }
}

</mosaic_0001>

<llo_original>
// kernel: autoencoder_forward.1
$region0: #{autoencoder_forward.1}
  #allocation0 [shape = 'u32[]', space=smem, size = 0x4, offset = 0x4, fixed_abs, tag = 'smem constant byte address 0x4 - core index']
  #allocation1 [shape = 'u32[144,128]{1,0:T(1,128)}', space=vmem, size = 0x12000, scoped, tag = 'internal scratch']
  %s0 = inlined_call_operand.vmem [shape: f32[1024,256], index: 0, kind: input, shape index: {}]
  %s1 = inlined_call_operand.vmem [shape: f32[256,64], index: 1, kind: input, shape index: {}]
  %s2 = inlined_call_operand.vmem [shape: f32[1,64], index: 2, kind: input, shape index: {}]
  %s3 = inlined_call_operand.vmem [shape: f32[64,32], index: 3, kind: input, shape index: {}]
  %s4 = inlined_call_operand.vmem [shape: f32[1,32], index: 4, kind: input, shape index: {}]
  %s5 = inlined_call_operand.vmem [shape: f32[32,64], index: 5, kind: input, shape index: {}]
  %s6 = inlined_call_operand.vmem [shape: f32[1,64], index: 6, kind: input, shape index: {}]
  %s7 = inlined_call_operand.vmem [shape: f32[64,256], index: 7, kind: input, shape index: {}]
  %s8 = inlined_call_operand.vmem [shape: f32[1,256], index: 8, kind: input, shape index: {}]
  %s9 = inlined_call_operand.vmem [shape: f32[1024,256], index: 9, kind: output, shape index: {}]
  %s10 = sld [smem:[#allocation0]]
  $region69: #{autoencoder_forward.1} parent=0
    _
  %s12 = ssub.s32 1, %s10
  %s13 = scalar_select 0, %s12, %s10
  loop: start=0, step=1, limit=4
  $region2: #{autoencoder_forward.1} parent=0 // loop_pre_header
    _
  $region3: #{autoencoder_forward.1} parent=0 // loop_header
    %s15 = sphi 0, %s19
    %p16 = scmp.ge.s32.totalorder %s15, 4
    %s25 = sphi 0, %s27
    %s28 = sphi 0, %s25
    %s29 = sphi 0, %s28
    %s45 = sphi 0, %s29
    %s49 = sphi 0, %s49
    %s51 = sphi 0, %s49
    %s52 = sphi 0, %s51
    %s66 = sphi 0, %s52
    %s70 = sphi 0, %s70
    %s72 = sphi 0, %s70
    %s73 = sphi 0, %s72
    %s87 = sphi 0, %s73
    %s91 = sphi 0, %s91
    %s93 = sphi 0, %s91
    %s94 = sphi 0, %s93
    %s108 = sphi 0, %s94
    %s112 = sphi 0, %s112
    %s114 = sphi 0, %s112
    %s115 = sphi 0, %s114
    %s129 = sphi 0, %s115
    %s133 = sphi 0, %s133
    %s135 = sphi 0, %s133
    %s136 = sphi 0, %s135
    %s150 = sphi 0, %s136
    %s154 = sphi 0, %s154
    %s156 = sphi 0, %s154
    %s157 = sphi 0, %s156
    %s171 = sphi 0, %s157
    %s175 = sphi 0, %s175
    %s177 = sphi 0, %s175
    %s178 = sphi 0, %s177
    %s192 = sphi 0, %s178
    %s196 = sphi 0, %s196
    %s198 = sphi 0, %s196
    %s199 = sphi 0, %s198
    %s213 = sphi 0, %s199
    %s219 = sphi 0, %s221
    %s222 = sphi 0, %s219
    %s223 = sphi 0, %s222
    %s239 = sphi 0, %s223
  $region4: #{autoencoder_forward.1} parent=0 // loop_header_branch
    %18 = sbr.rel (%p16) target = $region8
  $region5: #{autoencoder_forward.1} parent=0 // loop_body
    %s20 = ssub.s32 %s15, 1
    %s21 = ssub.s32 %s15, 2
    %s22 = sadd.s32 %s15, 1
    %s23 = ssub.s32 %s15, %s22
    %p24 = scmp.eq.s32.totalorder %s23, 0
    %s26 = sadd.s32 %s25, 1
    %s27 = scalar_select %p24, %s25, %s26
    %p30 = pneg %p24
    %p31 = scmp.eq.s32.totalorder %s15, 1
    %p32 = por %p30, %p31
    %p33 = scmp.ne.s32.totalorder %s25, %s28
    %p34 = scmp.eq.s32.totalorder %s15, 0
    %p35 = por %p33, %p34
    %p36 = scmp.ne.s32.totalorder %s25, %s28
    %p37 = scmp.eq.s32.totalorder %s20, 1
    %p38 = por %p36, %p37
    %p39 = scmp.ne.s32.totalorder %s28, %s29
    %p40 = scmp.eq.s32.totalorder %s20, 0
    %p41 = por %p39, %p40
    %p42 = scmp.ne.s32.totalorder %s28, %s29
    %p43 = scmp.eq.s32.totalorder %s21, 1
    %p44 = por %p42, %p43
    %p46 = scmp.ne.s32.totalorder %s29, %s45
    %p47 = scmp.eq.s32.totalorder %s21, 0
    %p48 = por %p46, %p47
    %s50 = sadd.s32 %s49, 1
    %p53 = scmp.eq.s32.totalorder %s15, 1
    %p54 = scmp.ne.s32.totalorder %s49, %s51
    %p55 = scmp.eq.s32.totalorder %s15, 0
    %p56 = por %p54, %p55
    %p57 = scmp.ne.s32.totalorder %s49, %s51
    %p58 = scmp.eq.s32.totalorder %s20, 1
    %p59 = por %p57, %p58
    %p60 = scmp.ne.s32.totalorder %s51, %s52
    %p61 = scmp.eq.s32.totalorder %s20, 0
    %p62 = por %p60, %p61
    %p63 = scmp.ne.s32.totalorder %s51, %s52
    %p64 = scmp.eq.s32.totalorder %s21, 1
    %p65 = por %p63, %p64
    %p67 = scmp.ne.s32.totalorder %s52, %s66
    %p68 = scmp.eq.s32.totalorder %s21, 0
    %p69 = por %p67, %p68
    %s71 = sadd.s32 %s70, 1
    %p74 = scmp.eq.s32.totalorder %s15, 1
    %p75 = scmp.ne.s32.totalorder %s70, %s72
    %p76 = scmp.eq.s32.totalorder %s15, 0
    %p77 = por %p75, %p76
    %p78 = scmp.ne.s32.totalorder %s70, %s72
    %p79 = scmp.eq.s32.totalorder %s20, 1
    %p80 = por %p78, %p79
    %p81 = scmp.ne.s32.totalorder %s72, %s73
    %p82 = scmp.eq.s32.totalorder %s20, 0
    %p83 = por %p81, %p82
    %p84 = scmp.ne.s32.totalorder %s72, %s73
    %p85 = scmp.eq.s32.totalorder %s21, 1
    %p86 = por %p84, %p85
    %p88 = scmp.ne.s32.totalorder %s73, %s87
    %p89 = scmp.eq.s32.totalorder %s21, 0
    %p90 = por %p88, %p89
    %s92 = sadd.s32 %s91, 1
    %p95 = scmp.eq.s32.totalorder %s15, 1
    %p96 = scmp.ne.s32.totalorder %s91, %s93
    %p97 = scmp.eq.s32.totalorder %s15, 0
    %p98 = por %p96, %p97
    %p99 = scmp.ne.s32.totalorder %s91, %s93
    %p100 = scmp.eq.s32.totalorder %s20, 1
    %p101 = por %p99, %p100
    %p102 = scmp.ne.s32.totalorder %s93, %s94
    %p103 = scmp.eq.s32.totalorder %s20, 0
    %p104 = por %p102, %p103
    %p105 = scmp.ne.s32.totalorder %s93, %s94
    %p106 = scmp.eq.s32.totalorder %s21, 1
    %p107 = por %p105, %p106
    %p109 = scmp.ne.s32.totalorder %s94, %s108
    %p110 = scmp.eq.s32.totalorder %s21, 0
    %p111 = por %p109, %p110
    %s113 = sadd.s32 %s112, 1
    %p116 = scmp.eq.s32.totalorder %s15, 1
    %p117 = scmp.ne.s32.totalorder %s112, %s114
    %p118 = scmp.eq.s32.totalorder %s15, 0
    %p119 = por %p117, %p118
    %p120 = scmp.ne.s32.totalorder %s112, %s114
    %p121 = scmp.eq.s32.totalorder %s20, 1
    %p122 = por %p120, %p121
    %p123 = scmp.ne.s32.totalorder %s114, %s115
    %p124 = scmp.eq.s32.totalorder %s20, 0
    %p125 = por %p123, %p124
    %p126 = scmp.ne.s32.totalorder %s114, %s115
    %p127 = scmp.eq.s32.totalorder %s21, 1
    %p128 = por %p126, %p127
    %p130 = scmp.ne.s32.totalorder %s115, %s129
    %p131 = scmp.eq.s32.totalorder %s21, 0
    %p132 = por %p130, %p131
    %s134 = sadd.s32 %s133, 1
    %p137 = scmp.eq.s32.totalorder %s15, 1
    %p138 = scmp.ne.s32.totalorder %s133, %s135
    %p139 = scmp.eq.s32.totalorder %s15, 0
    %p140 = por %p138, %p139
    %p141 = scmp.ne.s32.totalorder %s133, %s135
    %p142 = scmp.eq.s32.totalorder %s20, 1
    %p143 = por %p141, %p142
    %p144 = scmp.ne.s32.totalorder %s135, %s136
    %p145 = scmp.eq.s32.totalorder %s20, 0
    %p146 = por %p144, %p145
    %p147 = scmp.ne.s32.totalorder %s135, %s136
    %p148 = scmp.eq.s32.totalorder %s21, 1
    %p149 = por %p147, %p148
    %p151 = scmp.ne.s32.totalorder %s136, %s150
    %p152 = scmp.eq.s32.totalorder %s21, 0
    %p153 = por %p151, %p152
    %s155 = sadd.s32 %s154, 1
    %p158 = scmp.eq.s32.totalorder %s15, 1
    %p159 = scmp.ne.s32.totalorder %s154, %s156
    %p160 = scmp.eq.s32.totalorder %s15, 0
    %p161 = por %p159, %p160
    %p162 = scmp.ne.s32.totalorder %s154, %s156
    %p163 = scmp.eq.s32.totalorder %s20, 1
    %p164 = por %p162, %p163
    %p165 = scmp.ne.s32.totalorder %s156, %s157
    %p166 = scmp.eq.s32.totalorder %s20, 0
    %p167 = por %p165, %p166
    %p168 = scmp.ne.s32.totalorder %s156, %s157
    %p169 = scmp.eq.s32.totalorder %s21, 1
    %p170 = por %p168, %p169
    %p172 = scmp.ne.s32.totalorder %s157, %s171
    %p173 = scmp.eq.s32.totalorder %s21, 0
    %p174 = por %p172, %p173
    %s176 = sadd.s32 %s175, 1
    %p179 = scmp.eq.s32.totalorder %s15, 1
    %p180 = scmp.ne.s32.totalorder %s175, %s177
    %p181 = scmp.eq.s32.totalorder %s15, 0
    %p182 = por %p180, %p181
    %p183 = scmp.ne.s32.totalorder %s175, %s177
    %p184 = scmp.eq.s32.totalorder %s20, 1
    %p185 = por %p183, %p184
    %p186 = scmp.ne.s32.totalorder %s177, %s178
    %p187 = scmp.eq.s32.totalorder %s20, 0
    %p188 = por %p186, %p187
    %p189 = scmp.ne.s32.totalorder %s177, %s178
    %p190 = scmp.eq.s32.totalorder %s21, 1
    %p191 = por %p189, %p190
    %p193 = scmp.ne.s32.totalorder %s178, %s192
    %p194 = scmp.eq.s32.totalorder %s21, 0
    %p195 = por %p193, %p194
    %s197 = sadd.s32 %s196, 1
    %p200 = scmp.eq.s32.totalorder %s15, 1
    %p201 = scmp.ne.s32.totalorder %s196, %s198
    %p202 = scmp.eq.s32.totalorder %s15, 0
    %p203 = por %p201, %p202
    %p204 = scmp.ne.s32.totalorder %s196, %s198
    %p205 = scmp.eq.s32.totalorder %s20, 1
    %p206 = por %p204, %p205
    %p207 = scmp.ne.s32.totalorder %s198, %s199
    %p208 = scmp.eq.s32.totalorder %s20, 0
    %p209 = por %p207, %p208
    %p210 = scmp.ne.s32.totalorder %s198, %s199
    %p211 = scmp.eq.s32.totalorder %s21, 1
    %p212 = por %p210, %p211
    %p214 = scmp.ne.s32.totalorder %s199, %s213
    %p215 = scmp.eq.s32.totalorder %s21, 0
    %p216 = por %p214, %p215
    %s217 = ssub.s32 %s15, %s22
    %p218 = scmp.eq.s32.totalorder %s217, 0
    %s220 = sadd.s32 %s219, 1
    %s221 = scalar_select %p218, %s219, %s220
    %p224 = pneg %p218
    %p225 = scmp.eq.s32.totalorder %s15, 1
    %p226 = por %p224, %p225
    %p227 = scmp.ne.s32.totalorder %s219, %s222
    %p228 = scmp.eq.s32.totalorder %s15, 0
    %p229 = por %p227, %p228
    %p230 = scmp.ne.s32.totalorder %s219, %s222
    %p231 = scmp.eq.s32.totalorder %s20, 1
    %p232 = por %p230, %p231
    %p233 = scmp.ne.s32.totalorder %s222, %s223
    %p234 = scmp.eq.s32.totalorder %s20, 0
    %p235 = por %p233, %p234
    %p236 = scmp.ne.s32.totalorder %s222, %s223
    %p237 = scmp.eq.s32.totalorder %s21, 1
    %p238 = por %p236, %p237
    %p240 = scmp.ne.s32.totalorder %s223, %s239
    %p241 = scmp.eq.s32.totalorder %s21, 0
    %p242 = por %p240, %p241
    %p243 = scmp.le.s32.totalorder 1, %s15
    %p244 = scmp.lt.s32.totalorder %s15, 3
    %p245 = pnand %p243, %p244
    %p246 = pneg %p245
    // Predicated region
    $region9: #{autoencoder_forward.1} parent=5 // pred_check
      _
    $region10: #{autoencoder_forward.1} parent=5 // pred_check_branch
      %248 = sbr.rel (%p245) target = $region12
    $region11: #{autoencoder_forward.1} parent=5 // pred_region
      %s249 = ssub.s32 %s15, 1
      // Predicated region
      $region13: #{autoencoder_forward.1} parent=11 // pred_check
        %p250 = pneg %p62
      $region14: #{autoencoder_forward.1} parent=11 // pred_check_branch
        %252 = sbr.rel (%p250) target = $region16
      $region15: #{autoencoder_forward.1} parent=11 // pred_region
        _
      $region16: #{autoencoder_forward.1} parent=11 // pred_fallthru
        _
      // Predicated region
      $region17: #{autoencoder_forward.1} parent=11 // pred_check
        %p253 = pneg %p83
      $region18: #{autoencoder_forward.1} parent=11 // pred_check_branch
        %255 = sbr.rel (%p253) target = $region20
      $region19: #{autoencoder_forward.1} parent=11 // pred_region
        _
      $region20: #{autoencoder_forward.1} parent=11 // pred_fallthru
        _
      // Predicated region
      $region21: #{autoencoder_forward.1} parent=11 // pred_check
        %p256 = pneg %p104
      $region22: #{autoencoder_forward.1} parent=11 // pred_check_branch
        %258 = sbr.rel (%p256) target = $region24
      $region23: #{autoencoder_forward.1} parent=11 // pred_region
        _
      $region24: #{autoencoder_forward.1} parent=11 // pred_fallthru
        _
      // Predicated region
      $region25: #{autoencoder_forward.1} parent=11 // pred_check
        %p259 = pneg %p125
      $region26: #{autoencoder_forward.1} parent=11 // pred_check_branch
        %261 = sbr.rel (%p259) target = $region28
      $region27: #{autoencoder_forward.1} parent=11 // pred_region
        _
      $region28: #{autoencoder_forward.1} parent=11 // pred_fallthru
        _
      // Predicated region
      $region29: #{autoencoder_forward.1} parent=11 // pred_check
        %p262 = pneg %p146
      $region30: #{autoencoder_forward.1} parent=11 // pred_check_branch
        %264 = sbr.rel (%p262) target = $region32
      $region31: #{autoencoder_forward.1} parent=11 // pred_region
        _
      $region32: #{autoencoder_forward.1} parent=11 // pred_fallthru
        _
      // Predicated region
      $region33: #{autoencoder_forward.1} parent=11 // pred_check
        %p265 = pneg %p167
      $region34: #{autoencoder_forward.1} parent=11 // pred_check_branch
        %267 = sbr.rel (%p265) target = $region36
      $region35: #{autoencoder_forward.1} parent=11 // pred_region
        _
      $region36: #{autoencoder_forward.1} parent=11 // pred_fallthru
        _
      // Predicated region
      $region37: #{autoencoder_forward.1} parent=11 // pred_check
        %p268 = pneg %p188
      $region38: #{autoencoder_forward.1} parent=11 // pred_check_branch
        %270 = sbr.rel (%p268) target = $region40
      $region39: #{autoencoder_forward.1} parent=11 // pred_region
        _
      $region40: #{autoencoder_forward.1} parent=11 // pred_fallthru
        _
      // Predicated region
      $region41: #{autoencoder_forward.1} parent=11 // pred_check
        %p271 = pneg %p209
      $region42: #{autoencoder_forward.1} parent=11 // pred_check_branch
        %273 = sbr.rel (%p271) target = $region44
      $region43: #{autoencoder_forward.1} parent=11 // pred_region
        _
      $region44: #{autoencoder_forward.1} parent=11 // pred_fallthru
        _
    $region12: #{autoencoder_forward.1} parent=5 // pred_fallthru
      _
    %p274 = scmp.lt.s32.totalorder %s15, 2
    // Predicated region
    $region45: #{autoencoder_forward.1} parent=5 // pred_check
      %p275 = pneg %p274
    $region46: #{autoencoder_forward.1} parent=5 // pred_check_branch
      %277 = sbr.rel (%p275) target = $region48
    $region47: #{autoencoder_forward.1} parent=5 // pred_region
      // Predicated region
      $region49: #{autoencoder_forward.1} parent=47 // pred_check
        %p278 = pneg %p35
      $region50: #{autoencoder_forward.1} parent=47 // pred_check_branch
        %280 = sbr.rel (%p278) target = $region52
      $region51: #{autoencoder_forward.1} parent=47 // pred_region
        %s281 = smul.u32 64, %s15
        %p282 = scmp.lt.s32.totalorder %s281, 127
        %s283 = scalar_select %p282, %s281, 127
        %s284 = smul.addr %s283, 2
        %s285 = smul.addr %s284, 8
        %s286 = scalar_lea.vmem %s0, %s285
        %s287 = smul.u32 64, %s15
      $region52: #{autoencoder_forward.1} parent=47 // pred_fallthru
        _
    $region48: #{autoencoder_forward.1} parent=5 // pred_fallthru
      _
    %p288 = scmp.le.s32.totalorder 1, %s15
    %p289 = scmp.lt.s32.totalorder %s15, 3
    %p290 = pnand %p288, %p289
    %p291 = pneg %p290
    // Predicated region
    $region53: #{autoencoder_forward.1} parent=5 // pred_check
      _
    $region54: #{autoencoder_forward.1} parent=5 // pred_check_branch
      %293 = sbr.rel (%p290) target = $region56
    $region55: #{autoencoder_forward.1} parent=5 // pred_region
      %s294 = ssub.s32 %s15, 1
      %s295 = smul.u32 64, %s20
      %p296 = scmp.lt.s32.totalorder %s295, 127
      %s297 = scalar_select %p296, %s295, 127
      %s298 = smul.addr %s297, 2
      %s299 = smul.addr %s298, 8
      %s300 = scalar_lea.vmem %s0, %s299
      %p301 = pneg %p41
      %p302 = pneg %p38
      %p303 = pneg %p62
      %p304 = pneg %p59
      %p305 = pneg %p83
      %p306 = pneg %p80
      %p307 = pneg %p104
      %p308 = pneg %p101
      %p309 = pneg %p125
      %p310 = pneg %p122
      %p311 = pneg %p146
      %p312 = pneg %p143
      %p313 = pneg %p167
      %p314 = pneg %p164
      %p315 = pneg %p188
      %p316 = pneg %p185
      %p317 = pneg %p209
      %p318 = pneg %p206
      %p319 = pneg %p235
      %p320 = pneg %p232
      %s321 = smul.u32 64, %s20
      %p322 = scmp.lt.s32.totalorder %s321, 127
      %s323 = scalar_select %p322, %s321, 127
      %s324 = smul.addr %s323, 2
      %s325 = smul.addr %s324, 8
      %s326 = scalar_lea.vmem %s9, %s325
      %s327 = smul.u32 64, %s20
      %p328 = scmp.lt.s32.totalorder %s327, 127
      %s329 = scalar_select %p328, %s327, 127
      %s330 = smul.addr %s329, 2
      %s331 = smul.addr %s330, 8
      %s332 = scalar_lea.vmem %s0, %s331
      %s333 = smul.u32 64, %s20
      %s334 = smul.u32 64, %s20
      %p335 = scmp.lt.s32.totalorder %s334, 127
      %s336 = scalar_select %p335, %s334, 127
      %s337 = smul.addr %s336, 2
      %s338 = smul.addr %s337, 8
      %s339 = scalar_lea.vmem %s9, %s338
      %s340 = smul.u32 64, %s20
      %v341 = vld [vmem:[%s332] sm:$0xff]
      %v342 = vld [vmem:[%s332 + $0x8] sm:$0xff]
      %v343 = vld [vmem:[%s332 + $0x10] sm:$0xff]
      %v344 = vld [vmem:[%s332 + $0x18] sm:$0xff]
      %v345 = vld [vmem:[%s332 + $0x20] sm:$0xff]
      %v346 = vld [vmem:[%s332 + $0x28] sm:$0xff]
      %v347 = vld [vmem:[%s332 + $0x30] sm:$0xff]
      %v348 = vld [vmem:[%s332 + $0x38] sm:$0xff]
      %v349 = vld [vmem:[%s332 + $0x40] sm:$0xff]
      %v350 = vld [vmem:[%s332 + $0x48] sm:$0xff]
      %v351 = vld [vmem:[%s332 + $0x50] sm:$0xff]
      %v352 = vld [vmem:[%s332 + $0x58] sm:$0xff]
      %v353 = vld [vmem:[%s332 + $0x60] sm:$0xff]
      %v354 = vld [vmem:[%s332 + $0x68] sm:$0xff]
      %v355 = vld [vmem:[%s332 + $0x70] sm:$0xff]
      %v356 = vld [vmem:[%s332 + $0x78] sm:$0xff]
      %v357 = vld [vmem:[%s332 + $0x80] sm:$0xff]
      %v358 = vld [vmem:[%s332 + $0x88] sm:$0xff]
      %v359 = vld [vmem:[%s332 + $0x90] sm:$0xff]
      %v360 = vld [vmem:[%s332 + $0x98] sm:$0xff]
      %v361 = vld [vmem:[%s332 + $0xa0] sm:$0xff]
      %v362 = vld [vmem:[%s332 + $0xa8] sm:$0xff]
      %v363 = vld [vmem:[%s332 + $0xb0] sm:$0xff]
      %v364 = vld [vmem:[%s332 + $0xb8] sm:$0xff]
      %v365 = vld [vmem:[%s332 + $0xc0] sm:$0xff]
      %v366 = vld [vmem:[%s332 + $0xc8] sm:$0xff]
      %v367 = vld [vmem:[%s332 + $0xd0] sm:$0xff]
      %v368 = vld [vmem:[%s332 + $0xd8] sm:$0xff]
      %v369 = vld [vmem:[%s332 + $0xe0] sm:$0xff]
      %v370 = vld [vmem:[%s332 + $0xe8] sm:$0xff]
      %v371 = vld [vmem:[%s332 + $0xf0] sm:$0xff]
      %v372 = vld [vmem:[%s332 + $0xf8] sm:$0xff]
      %v373 = vld [vmem:[%s332 + $0x100] sm:$0xff]
      %v374 = vld [vmem:[%s332 + $0x108] sm:$0xff]
      %v375 = vld [vmem:[%s332 + $0x110] sm:$0xff]
      %v376 = vld [vmem:[%s332 + $0x118] sm:$0xff]
      %v377 = vld [vmem:[%s332 + $0x120] sm:$0xff]
      %v378 = vld [vmem:[%s332 + $0x128] sm:$0xff]
      %v379 = vld [vmem:[%s332 + $0x130] sm:$0xff]
      %v380 = vld [vmem:[%s332 + $0x138] sm:$0xff]
      %v381 = vld [vmem:[%s332 + $0x140] sm:$0xff]
      %v382 = vld [vmem:[%s332 + $0x148] sm:$0xff]
      %v383 = vld [vmem:[%s332 + $0x150] sm:$0xff]
      %v384 = vld [vmem:[%s332 + $0x158] sm:$0xff]
      %v385 = vld [vmem:[%s332 + $0x160] sm:$0xff]
      %v386 = vld [vmem:[%s332 + $0x168] sm:$0xff]
      %v387 = vld [vmem:[%s332 + $0x170] sm:$0xff]
      %v388 = vld [vmem:[%s332 + $0x178] sm:$0xff]
      %v389 = vld [vmem:[%s332 + $0x180] sm:$0xff]
      %v390 = vld [vmem:[%s332 + $0x188] sm:$0xff]
      %v391 = vld [vmem:[%s332 + $0x190] sm:$0xff]
      %v392 = vld [vmem:[%s332 + $0x198] sm:$0xff]
      %v393 = vld [vmem:[%s332 + $0x1a0] sm:$0xff]
      %v394 = vld [vmem:[%s332 + $0x1a8] sm:$0xff]
      %v395 = vld [vmem:[%s332 + $0x1b0] sm:$0xff]
      %v396 = vld [vmem:[%s332 + $0x1b8] sm:$0xff]
      %v397 = vld [vmem:[%s332 + $0x1c0] sm:$0xff]
      %v398 = vld [vmem:[%s332 + $0x1c8] sm:$0xff]
      %v399 = vld [vmem:[%s332 + $0x1d0] sm:$0xff]
      %v400 = vld [vmem:[%s332 + $0x1d8] sm:$0xff]
      %v401 = vld [vmem:[%s332 + $0x1e0] sm:$0xff]
      %v402 = vld [vmem:[%s332 + $0x1e8] sm:$0xff]
      %v403 = vld [vmem:[%s332 + $0x1f0] sm:$0xff]
      %v404 = vld [vmem:[%s332 + $0x1f8] sm:$0xff]
      %v405 = vld [vmem:[%s332 + $0x200] sm:$0xff]
      %v406 = vld [vmem:[%s332 + $0x208] sm:$0xff]
      %v407 = vld [vmem:[%s332 + $0x210] sm:$0xff]
      %v408 = vld [vmem:[%s332 + $0x218] sm:$0xff]
      %v409 = vld [vmem:[%s332 + $0x220] sm:$0xff]
      %v410 = vld [vmem:[%s332 + $0x228] sm:$0xff]
      %v411 = vld [vmem:[%s332 + $0x230] sm:$0xff]
      %v412 = vld [vmem:[%s332 + $0x238] sm:$0xff]
      %v413 = vld [vmem:[%s332 + $0x240] sm:$0xff]
      %v414 = vld [vmem:[%s332 + $0x248] sm:$0xff]
      %v415 = vld [vmem:[%s332 + $0x250] sm:$0xff]
      %v416 = vld [vmem:[%s332 + $0x258] sm:$0xff]
      %v417 = vld [vmem:[%s332 + $0x260] sm:$0xff]
      %v418 = vld [vmem:[%s332 + $0x268] sm:$0xff]
      %v419 = vld [vmem:[%s332 + $0x270] sm:$0xff]
      %v420 = vld [vmem:[%s332 + $0x278] sm:$0xff]
      %v421 = vld [vmem:[%s332 + $0x280] sm:$0xff]
      %v422 = vld [vmem:[%s332 + $0x288] sm:$0xff]
      %v423 = vld [vmem:[%s332 + $0x290] sm:$0xff]
      %v424 = vld [vmem:[%s332 + $0x298] sm:$0xff]
      %v425 = vld [vmem:[%s332 + $0x2a0] sm:$0xff]
      %v426 = vld [vmem:[%s332 + $0x2a8] sm:$0xff]
      %v427 = vld [vmem:[%s332 + $0x2b0] sm:$0xff]
      %v428 = vld [vmem:[%s332 + $0x2b8] sm:$0xff]
      %v429 = vld [vmem:[%s332 + $0x2c0] sm:$0xff]
      %v430 = vld [vmem:[%s332 + $0x2c8] sm:$0xff]
      %v431 = vld [vmem:[%s332 + $0x2d0] sm:$0xff]
      %v432 = vld [vmem:[%s332 + $0x2d8] sm:$0xff]
      %v433 = vld [vmem:[%s332 + $0x2e0] sm:$0xff]
      %v434 = vld [vmem:[%s332 + $0x2e8] sm:$0xff]
      %v435 = vld [vmem:[%s332 + $0x2f0] sm:$0xff]
      %v436 = vld [vmem:[%s332 + $0x2f8] sm:$0xff]
      %v437 = vld [vmem:[%s332 + $0x300] sm:$0xff]
      %v438 = vld [vmem:[%s332 + $0x308] sm:$0xff]
      %v439 = vld [vmem:[%s332 + $0x310] sm:$0xff]
      %v440 = vld [vmem:[%s332 + $0x318] sm:$0xff]
      %v441 = vld [vmem:[%s332 + $0x320] sm:$0xff]
      %v442 = vld [vmem:[%s332 + $0x328] sm:$0xff]
      %v443 = vld [vmem:[%s332 + $0x330] sm:$0xff]
      %v444 = vld [vmem:[%s332 + $0x338] sm:$0xff]
      %v445 = vld [vmem:[%s332 + $0x340] sm:$0xff]
      %v446 = vld [vmem:[%s332 + $0x348] sm:$0xff]
      %v447 = vld [vmem:[%s332 + $0x350] sm:$0xff]
      %v448 = vld [vmem:[%s332 + $0x358] sm:$0xff]
      %v449 = vld [vmem:[%s332 + $0x360] sm:$0xff]
      %v450 = vld [vmem:[%s332 + $0x368] sm:$0xff]
      %v451 = vld [vmem:[%s332 + $0x370] sm:$0xff]
      %v452 = vld [vmem:[%s332 + $0x378] sm:$0xff]
      %v453 = vld [vmem:[%s332 + $0x380] sm:$0xff]
      %v454 = vld [vmem:[%s332 + $0x388] sm:$0xff]
      %v455 = vld [vmem:[%s332 + $0x390] sm:$0xff]
      %v456 = vld [vmem:[%s332 + $0x398] sm:$0xff]
      %v457 = vld [vmem:[%s332 + $0x3a0] sm:$0xff]
      %v458 = vld [vmem:[%s332 + $0x3a8] sm:$0xff]
      %v459 = vld [vmem:[%s332 + $0x3b0] sm:$0xff]
      %v460 = vld [vmem:[%s332 + $0x3b8] sm:$0xff]
      %v461 = vld [vmem:[%s332 + $0x3c0] sm:$0xff]
      %v462 = vld [vmem:[%s332 + $0x3c8] sm:$0xff]
      %v463 = vld [vmem:[%s332 + $0x3d0] sm:$0xff]
      %v464 = vld [vmem:[%s332 + $0x3d8] sm:$0xff]
      %v465 = vld [vmem:[%s332 + $0x3e0] sm:$0xff]
      %v466 = vld [vmem:[%s332 + $0x3e8] sm:$0xff]
      %v467 = vld [vmem:[%s332 + $0x3f0] sm:$0xff]
      %v468 = vld [vmem:[%s332 + $0x3f8] sm:$0xff]
      %v469 = vld [vmem:[%s1] sm:$0xff]
      %v470 = vld [vmem:[%s1 + $0x8] sm:$0xff]
      %v471 = vld [vmem:[%s1 + $0x10] sm:$0xff]
      %v472 = vld [vmem:[%s1 + $0x18] sm:$0xff]
      %v473 = vld [vmem:[%s1 + $0x20] sm:$0xff]
      %v474 = vld [vmem:[%s1 + $0x28] sm:$0xff]
      %v475 = vld [vmem:[%s1 + $0x30] sm:$0xff]
      %v476 = vld [vmem:[%s1 + $0x38] sm:$0xff]
      %v477 = vld [vmem:[%s1 + $0x40] sm:$0xff]
      %v478 = vld [vmem:[%s1 + $0x48] sm:$0xff]
      %v479 = vld [vmem:[%s1 + $0x50] sm:$0xff]
      %v480 = vld [vmem:[%s1 + $0x58] sm:$0xff]
      %v481 = vld [vmem:[%s1 + $0x60] sm:$0xff]
      %v482 = vld [vmem:[%s1 + $0x68] sm:$0xff]
      %v483 = vld [vmem:[%s1 + $0x70] sm:$0xff]
      %v484 = vld [vmem:[%s1 + $0x78] sm:$0xff]
      %v485 = vld [vmem:[%s1 + $0x80] sm:$0xff]
      %v486 = vld [vmem:[%s1 + $0x88] sm:$0xff]
      %v487 = vld [vmem:[%s1 + $0x90] sm:$0xff]
      %v488 = vld [vmem:[%s1 + $0x98] sm:$0xff]
      %v489 = vld [vmem:[%s1 + $0xa0] sm:$0xff]
      %v490 = vld [vmem:[%s1 + $0xa8] sm:$0xff]
      %v491 = vld [vmem:[%s1 + $0xb0] sm:$0xff]
      %v492 = vld [vmem:[%s1 + $0xb8] sm:$0xff]
      %v493 = vld [vmem:[%s1 + $0xc0] sm:$0xff]
      %v494 = vld [vmem:[%s1 + $0xc8] sm:$0xff]
      %v495 = vld [vmem:[%s1 + $0xd0] sm:$0xff]
      %v496 = vld [vmem:[%s1 + $0xd8] sm:$0xff]
      %v497 = vld [vmem:[%s1 + $0xe0] sm:$0xff]
      %v498 = vld [vmem:[%s1 + $0xe8] sm:$0xff]
      %v499 = vld [vmem:[%s1 + $0xf0] sm:$0xff]
      %v500 = vld [vmem:[%s1 + $0xf8] sm:$0xff]
      %v501 = vld [vmem:[%s2] sm:$0x1]
      %v503 = vlaneseq
      %v504 = vshrl.u32 %v503, 7
      %v505 = vsub.s32 0, %v504
      %v506 = vrot.slane %v501, %v505
      %508 = vmatprep.subr.mxu0 0.0
      %509 = vmatpush1.msra.mxu0 %v469
      %510 = vmatprep.subr.mxu0 0.0
      %511 = vmatpush1.msra.mxu0 %v470
      %512 = vmatprep.subr.mxu0 0.0
      %513 = vmatpush1.msra.mxu0 %v471
      %514 = vmatprep.subr.mxu0 0.0
      %515 = vmatpush1.msra.mxu0 %v472
      %516 = vmatprep.subr.mxu0 0.0
      %517 = vmatpush1.msra.mxu0 %v473
      %518 = vmatprep.subr.mxu0 0.0
      %519 = vmatpush1.msra.mxu0 %v474
      %520 = vmatprep.subr.mxu0 0.0
      %521 = vmatpush1.msra.mxu0 %v475
      %522 = vmatprep.subr.mxu0 0.0
      %523 = vmatpush1.msra.mxu0 %v476
      %524 = vmatprep.subr.mxu0 0.0
      %525 = vmatpush1.msra.mxu0 %v477
      %526 = vmatprep.subr.mxu0 0.0
      %527 = vmatpush1.msra.mxu0 %v478
      %528 = vmatprep.subr.mxu0 0.0
      %529 = vmatpush1.msra.mxu0 %v479
      %530 = vmatprep.subr.mxu0 0.0
      %531 = vmatpush1.msra.mxu0 %v480
      %532 = vmatprep.subr.mxu0 0.0
      %533 = vmatpush1.msra.mxu0 %v481
      %534 = vmatprep.subr.mxu0 0.0
      %535 = vmatpush1.msra.mxu0 %v482
      %536 = vmatprep.subr.mxu0 0.0
      %537 = vmatpush1.msra.mxu0 %v483
      %538 = vmatprep.subr.mxu0 0.0
      %539 = vmatpush1.msra.mxu0 %v484
      %540 = vmatprep.subr.mxu0 0.0
      %541 = vmatpush1.msra.mxu0 %v485
      %542 = vmatprep.subr.mxu0 0.0
      %543 = vmatpush1.msra.mxu0 %v486
      %544 = vmatprep.subr.mxu0 0.0
      %545 = vmatpush1.msra.mxu0 %v487
      %546 = vmatprep.subr.mxu0 0.0
      %547 = vmatpush1.msra.mxu0 %v488
      %548 = vmatprep.subr.mxu0 0.0
      %549 = vmatpush1.msra.mxu0 %v489
      %550 = vmatprep.subr.mxu0 0.0
      %551 = vmatpush1.msra.mxu0 %v490
      %552 = vmatprep.subr.mxu0 0.0
      %553 = vmatpush1.msra.mxu0 %v491
      %554 = vmatprep.subr.mxu0 0.0
      %555 = vmatpush1.msra.mxu0 %v492
      %556 = vmatprep.subr.mxu0 0.0
      %557 = vmatpush1.msra.mxu0 %v493
      %558 = vmatprep.subr.mxu0 0.0
      %559 = vmatpush1.msra.mxu0 %v494
      %560 = vmatprep.subr.mxu0 0.0
      %561 = vmatpush1.msra.mxu0 %v495
      %562 = vmatprep.subr.mxu0 0.0
      %563 = vmatpush1.msra.mxu0 %v496
      %564 = vmatprep.subr.mxu0 0.0
      %565 = vmatpush1.msra.mxu0 %v497
      %566 = vmatprep.subr.mxu0 0.0
      %567 = vmatpush1.msra.mxu0 %v498
      %568 = vmatprep.subr.mxu0 0.0
      %569 = vmatpush1.msra.mxu0 %v499
      %570 = vmatprep.subr.mxu0 0.0
      %571 = vmatpush1.msra.mxu0 %v500
      %572 = vmatprep.mubr.f32.mxu0 %v342
      %573 = vmatmul.mubr.f32.gmra.mrb[0].mxu0 %v341
      %v574 = vpop.f32.mrb[0].mxu0
      %v575 = vadd.f32 %v506, %v574
      %v576 = vpop.f32.mrb[0].mxu0
      %577 = vmatprep.mubr.f32.mxu0 %v344
      %578 = vmatmul.mubr.f32.gmra.mrb[0].mxu0 %v343
      %v579 = vpop.f32.mrb[0].mxu0
      %v580 = vadd.f32 %v506, %v579
      %v581 = vpop.f32.mrb[0].mxu0
      %582 = vmatprep.mubr.f32.mxu0 %v346
      %583 = vmatmul.mubr.f32.gmra.mrb[0].mxu0 %v345
      %v584 = vpop.f32.mrb[0].mxu0
      %v585 = vadd.f32 %v506, %v584
      %v586 = vpop.f32.mrb[0].mxu0
      %587 = vmatprep.mubr.f32.mxu0 %v348
      %588 = vmatmul.mubr.f32.gmra.mrb[0].mxu0 %v347
      %v589 = vpop.f32.mrb[0].mxu0
      %v590 = vadd.f32 %v506, %v589
      %v591 = vpop.f32.mrb[0].mxu0
      %592 = vmatprep.mubr.f32.mxu0 %v350
      %593 = vmatmul.mubr.f32.gmra.mrb[0].mxu0 %v349
      %v594 = vpop.f32.mrb[0].mxu0
      %v595 = vadd.f32 %v506, %v594
      %v596 = vpop.f32.mrb[0].mxu0
      %597 = vmatprep.mubr.f32.mxu0 %v352
      %598 = vmatmul.mubr.f32.gmra.mrb[0].mxu0 %v351
      %v599 = vpop.f32.mrb[0].mxu0
      %v600 = vadd.f32 %v506, %v599
      %v601 = vpop.f32.mrb[0].mxu0
      %602 = vmatprep.mubr.f32.mxu0 %v354
      %603 = vmatmul.mubr.f32.gmra.mrb[0].mxu0 %v353
      %v604 = vpop.f32.mrb[0].mxu0
      %v605 = vadd.f32 %v506, %v604
      %v606 = vpop.f32.mrb[0].mxu0
      %607 = vmatprep.mubr.f32.mxu0 %v356
      %608 = vmatmul.mubr.f32.gmra.mrb[0].mxu0 %v355
      %v609 = vpop.f32.mrb[0].mxu0
      %v610 = vadd.f32 %v506, %v609
      %v611 = vpop.f32.mrb[0].mxu0
      %612 = vmatprep.mubr.f32.mxu0 %v358
      %613 = vmatmul.mubr.f32.gmra.mrb[0].mxu0 %v357
      %v614 = vpop.f32.mrb[0].mxu0
      %v615 = vadd.f32 %v506, %v614
      %v616 = vpop.f32.mrb[0].mxu0
      %617 = vmatprep.mubr.f32.mxu0 %v360
      %618 = vmatmul.mubr.f32.gmra.mrb[0].mxu0 %v359
      %v619 = vpop.f32.mrb[0].mxu0
      %v620 = vadd.f32 %v506, %v619
      %v621 = vpop.f32.mrb[0].mxu0
      %622 = vmatprep.mubr.f32.mxu0 %v362
      %623 = vmatmul.mubr.f32.gmra.mrb[0].mxu0 %v361
      %v624 = vpop.f32.mrb[0].mxu0
      %v625 = vadd.f32 %v506, %v624
      %v626 = vpop.f32.mrb[0].mxu0
      %627 = vmatprep.mubr.f32.mxu0 %v364
      %628 = vmatmul.mubr.f32.gmra.mrb[0].mxu0 %v363
      %v629 = vpop.f32.mrb[0].mxu0
      %v630 = vadd.f32 %v506, %v629
      %v631 = vpop.f32.mrb[0].mxu0
      %632 = vmatprep.mubr.f32.mxu0 %v366
      %633 = vmatmul.mubr.f32.gmra.mrb[0].mxu0 %v365
      %v634 = vpop.f32.mrb[0].mxu0
      %v635 = vadd.f32 %v506, %v634
      %v636 = vpop.f32.mrb[0].mxu0
      %637 = vmatprep.mubr.f32.mxu0 %v368
      %638 = vmatmul.mubr.f32.gmra.mrb[0].mxu0 %v367
      %v639 = vpop.f32.mrb[0].mxu0
      %v640 = vadd.f32 %v506, %v639
      %v641 = vpop.f32.mrb[0].mxu0
      %642 = vmatprep.mubr.f32.mxu0 %v370
      %643 = vmatmul.mubr.f32.gmra.mrb[0].mxu0 %v369
      %v644 = vpop.f32.mrb[0].mxu0
      %v645 = vadd.f32 %v506, %v644
      %v646 = vpop.f32.mrb[0].mxu0
      %647 = vmatprep.mubr.f32.mxu0 %v372
      %648 = vmatmul.mubr.f32.gmra.mrb[0].mxu0 %v371
      %v649 = vpop.f32.mrb[0].mxu0
      %v650 = vadd.f32 %v506, %v649
      %v651 = vpop.f32.mrb[0].mxu0
      %652 = vmatprep.mubr.f32.mxu0 %v374
      %653 = vmatmul.mubr.f32.gmra.mrb[0].mxu0 %v373
      %v654 = vpop.f32.mrb[0].mxu0
      %v655 = vadd.f32 %v506, %v654
      %v656 = vpop.f32.mrb[0].mxu0
      %657 = vmatprep.mubr.f32.mxu0 %v376
      %658 = vmatmul.mubr.f32.gmra.mrb[0].mxu0 %v375
      %v659 = vpop.f32.mrb[0].mxu0
      %v660 = vadd.f32 %v506, %v659
      %v661 = vpop.f32.mrb[0].mxu0
      %662 = vmatprep.mubr.f32.mxu0 %v378
      %663 = vmatmul.mubr.f32.gmra.mrb[0].mxu0 %v377
      %v664 = vpop.f32.mrb[0].mxu0
      %v665 = vadd.f32 %v506, %v664
      %v666 = vpop.f32.mrb[0].mxu0
      %667 = vmatprep.mubr.f32.mxu0 %v380
      %668 = vmatmul.mubr.f32.gmra.mrb[0].mxu0 %v379
      %v669 = vpop.f32.mrb[0].mxu0
      %v670 = vadd.f32 %v506, %v669
      %v671 = vpop.f32.mrb[0].mxu0
      %672 = vmatprep.mubr.f32.mxu0 %v382
      %673 = vmatmul.mubr.f32.gmra.mrb[0].mxu0 %v381
      %v674 = vpop.f32.mrb[0].mxu0
      %v675 = vadd.f32 %v506, %v674
      %v676 = vpop.f32.mrb[0].mxu0
      %677 = vmatprep.mubr.f32.mxu0 %v384
      %678 = vmatmul.mubr.f32.gmra.mrb[0].mxu0 %v383
      %v679 = vpop.f32.mrb[0].mxu0
      %v680 = vadd.f32 %v506, %v679
      %v681 = vpop.f32.mrb[0].mxu0
      %682 = vmatprep.mubr.f32.mxu0 %v386
      %683 = vmatmul.mubr.f32.gmra.mrb[0].mxu0 %v385
      %v684 = vpop.f32.mrb[0].mxu0
      %v685 = vadd.f32 %v506, %v684
      %v686 = vpop.f32.mrb[0].mxu0
      %687 = vmatprep.mubr.f32.mxu0 %v388
      %688 = vmatmul.mubr.f32.gmra.mrb[0].mxu0 %v387
      %v689 = vpop.f32.mrb[0].mxu0
      %v690 = vadd.f32 %v506, %v689
      %v691 = vpop.f32.mrb[0].mxu0
      %692 = vmatprep.mubr.f32.mxu0 %v390
      %693 = vmatmul.mubr.f32.gmra.mrb[0].mxu0 %v389
      %v694 = vpop.f32.mrb[0].mxu0
      %v695 = vadd.f32 %v506, %v694
      %v696 = vpop.f32.mrb[0].mxu0
      %697 = vmatprep.mubr.f32.mxu0 %v392
      %698 = vmatmul.mubr.f32.gmra.mrb[0].mxu0 %v391
      %v699 = vpop.f32.mrb[0].mxu0
      %v700 = vadd.f32 %v506, %v699
      %v701 = vpop.f32.mrb[0].mxu0
      %702 = vmatprep.mubr.f32.mxu0 %v394
      %703 = vmatmul.mubr.f32.gmra.mrb[0].mxu0 %v393
      %v704 = vpop.f32.mrb[0].mxu0
      %v705 = vadd.f32 %v506, %v704
      %v706 = vpop.f32.mrb[0].mxu0
      %707 = vmatprep.mubr.f32.mxu0 %v396
      %708 = vmatmul.mubr.f32.gmra.mrb[0].mxu0 %v395
      %v709 = vpop.f32.mrb[0].mxu0
      %v710 = vadd.f32 %v506, %v709
      %v711 = vpop.f32.mrb[0].mxu0
      %712 = vmatprep.mubr.f32.mxu0 %v398
      %713 = vmatmul.mubr.f32.gmra.mrb[0].mxu0 %v397
      %v714 = vpop.f32.mrb[0].mxu0
      %v715 = vadd.f32 %v506, %v714
      %v716 = vpop.f32.mrb[0].mxu0
      %717 = vmatprep.mubr.f32.mxu0 %v400
      %718 = vmatmul.mubr.f32.gmra.mrb[0].mxu0 %v399
      %v719 = vpop.f32.mrb[0].mxu0
      %v720 = vadd.f32 %v506, %v719
      %v721 = vpop.f32.mrb[0].mxu0
      %722 = vmatprep.mubr.f32.mxu0 %v402
      %723 = vmatmul.mubr.f32.gmra.mrb[0].mxu0 %v401
      %v724 = vpop.f32.mrb[0].mxu0
      %v725 = vadd.f32 %v506, %v724
      %v726 = vpop.f32.mrb[0].mxu0
      %727 = vmatprep.mubr.f32.mxu0 %v404
      %728 = vmatmul.mubr.f32.gmra.mrb[0].mxu0 %v403
      %v729 = vpop.f32.mrb[0].mxu0
      %v730 = vadd.f32 %v506, %v729
      %v731 = vpop.f32.mrb[0].mxu0
      %732 = vmatprep.mubr.f32.mxu0 %v406
      %733 = vmatmul.mubr.f32.gmra.mrb[0].mxu0 %v405
      %v734 = vpop.f32.mrb[0].mxu0
      %v735 = vadd.f32 %v506, %v734
      %v736 = vpop.f32.mrb[0].mxu0
      %737 = vmatprep.mubr.f32.mxu0 %v408
      %738 = vmatmul.mubr.f32.gmra.mrb[0].mxu0 %v407
      %v739 = vpop.f32.mrb[0].mxu0
      %v740 = vadd.f32 %v506, %v739
      %v741 = vpop.f32.mrb[0].mxu0
      %742 = vmatprep.mubr.f32.mxu0 %v410
      %743 = vmatmul.mubr.f32.gmra.mrb[0].mxu0 %v409
      %v744 = vpop.f32.mrb[0].mxu0
      %v745 = vadd.f32 %v506, %v744
      %v746 = vpop.f32.mrb[0].mxu0
      %747 = vmatprep.mubr.f32.mxu0 %v412
      %748 = vmatmul.mubr.f32.gmra.mrb[0].mxu0 %v411
      %v749 = vpop.f32.mrb[0].mxu0
      %v750 = vadd.f32 %v506, %v749
      %v751 = vpop.f32.mrb[0].mxu0
      %752 = vmatprep.mubr.f32.mxu0 %v414
      %753 = vmatmul.mubr.f32.gmra.mrb[0].mxu0 %v413
      %v754 = vpop.f32.mrb[0].mxu0
      %v755 = vadd.f32 %v506, %v754
      %v756 = vpop.f32.mrb[0].mxu0
      %757 = vmatprep.mubr.f32.mxu0 %v416
      %758 = vmatmul.mubr.f32.gmra.mrb[0].mxu0 %v415
      %v759 = vpop.f32.mrb[0].mxu0
      %v760 = vadd.f32 %v506, %v759
      %v761 = vpop.f32.mrb[0].mxu0
      %762 = vmatprep.mubr.f32.mxu0 %v418
      %763 = vmatmul.mubr.f32.gmra.mrb[0].mxu0 %v417
      %v764 = vpop.f32.mrb[0].mxu0
      %v765 = vadd.f32 %v506, %v764
      %v766 = vpop.f32.mrb[0].mxu0
      %767 = vmatprep.mubr.f32.mxu0 %v420
      %768 = vmatmul.mubr.f32.gmra.mrb[0].mxu0 %v419
      %v769 = vpop.f32.mrb[0].mxu0
      %v770 = vadd.f32 %v506, %v769
      %v771 = vpop.f32.mrb[0].mxu0
      %772 = vmatprep.mubr.f32.mxu0 %v422
      %773 = vmatmul.mubr.f32.gmra.mrb[0].mxu0 %v421
      %v774 = vpop.f32.mrb[0].mxu0
      %v775 = vadd.f32 %v506, %v774
      %v776 = vpop.f32.mrb[0].mxu0
      %777 = vmatprep.mubr.f32.mxu0 %v424
      %778 = vmatmul.mubr.f32.gmra.mrb[0].mxu0 %v423
      %v779 = vpop.f32.mrb[0].mxu0
      %v780 = vadd.f32 %v506, %v779
      %v781 = vpop.f32.mrb[0].mxu0
      %782 = vmatprep.mubr.f32.mxu0 %v426
      %783 = vmatmul.mubr.f32.gmra.mrb[0].mxu0 %v425
      %v784 = vpop.f32.mrb[0].mxu0
      %v785 = vadd.f32 %v506, %v784
      %v786 = vpop.f32.mrb[0].mxu0
      %787 = vmatprep.mubr.f32.mxu0 %v428
      %788 = vmatmul.mubr.f32.gmra.mrb[0].mxu0 %v427
      %v789 = vpop.f32.mrb[0].mxu0
      %v790 = vadd.f32 %v506, %v789
      %v791 = vpop.f32.mrb[0].mxu0
      %792 = vmatprep.mubr.f32.mxu0 %v430
      %793 = vmatmul.mubr.f32.gmra.mrb[0].mxu0 %v429
      %v794 = vpop.f32.mrb[0].mxu0
      %v795 = vadd.f32 %v506, %v794
      %v796 = vpop.f32.mrb[0].mxu0
      %797 = vmatprep.mubr.f32.mxu0 %v432
      %798 = vmatmul.mubr.f32.gmra.mrb[0].mxu0 %v431
      %v799 = vpop.f32.mrb[0].mxu0
      %v800 = vadd.f32 %v506, %v799
      %v801 = vpop.f32.mrb[0].mxu0
      %802 = vmatprep.mubr.f32.mxu0 %v434
      %803 = vmatmul.mubr.f32.gmra.mrb[0].mxu0 %v433
      %v804 = vpop.f32.mrb[0].mxu0
      %v805 = vadd.f32 %v506, %v804
      %v806 = vpop.f32.mrb[0].mxu0
      %807 = vmatprep.mubr.f32.mxu0 %v436
      %808 = vmatmul.mubr.f32.gmra.mrb[0].mxu0 %v435
      %v809 = vpop.f32.mrb[0].mxu0
      %v810 = vadd.f32 %v506, %v809
      %v811 = vpop.f32.mrb[0].mxu0
      %812 = vmatprep.mubr.f32.mxu0 %v438
      %813 = vmatmul.mubr.f32.gmra.mrb[0].mxu0 %v437
      %v814 = vpop.f32.mrb[0].mxu0
      %v815 = vadd.f32 %v506, %v814
      %v816 = vpop.f32.mrb[0].mxu0
      %817 = vmatprep.mubr.f32.mxu0 %v440
      %818 = vmatmul.mubr.f32.gmra.mrb[0].mxu0 %v439
      %v819 = vpop.f32.mrb[0].mxu0
      %v820 = vadd.f32 %v506, %v819
      %v821 = vpop.f32.mrb[0].mxu0
      %822 = vmatprep.mubr.f32.mxu0 %v442
      %823 = vmatmul.mubr.f32.gmra.mrb[0].mxu0 %v441
      %v824 = vpop.f32.mrb[0].mxu0
      %v825 = vadd.f32 %v506, %v824
      %v826 = vpop.f32.mrb[0].mxu0
      %827 = vmatprep.mubr.f32.mxu0 %v444
      %828 = vmatmul.mubr.f32.gmra.mrb[0].mxu0 %v443
      %v829 = vpop.f32.mrb[0].mxu0
      %v830 = vadd.f32 %v506, %v829
      %v831 = vpop.f32.mrb[0].mxu0
      %832 = vmatprep.mubr.f32.mxu0 %v446
      %833 = vmatmul.mubr.f32.gmra.mrb[0].mxu0 %v445
      %v834 = vpop.f32.mrb[0].mxu0
      %v835 = vadd.f32 %v506, %v834
      %v836 = vpop.f32.mrb[0].mxu0
      %837 = vmatprep.mubr.f32.mxu0 %v448
      %838 = vmatmul.mubr.f32.gmra.mrb[0].mxu0 %v447
      %v839 = vpop.f32.mrb[0].mxu0
      %v840 = vadd.f32 %v506, %v839
      %v841 = vpop.f32.mrb[0].mxu0
      %842 = vmatprep.mubr.f32.mxu0 %v450
      %843 = vmatmul.mubr.f32.gmra.mrb[0].mxu0 %v449
      %v844 = vpop.f32.mrb[0].mxu0
      %v845 = vadd.f32 %v506, %v844
      %v846 = vpop.f32.mrb[0].mxu0
      %847 = vmatprep.mubr.f32.mxu0 %v452
      %848 = vmatmul.mubr.f32.gmra.mrb[0].mxu0 %v451
      %v849 = vpop.f32.mrb[0].mxu0
      %v850 = vadd.f32 %v506, %v849
      %v851 = vpop.f32.mrb[0].mxu0
      %852 = vmatprep.mubr.f32.mxu0 %v454
      %853 = vmatmul.mubr.f32.gmra.mrb[0].mxu0 %v453
      %v854 = vpop.f32.mrb[0].mxu0
      %v855 = vadd.f32 %v506, %v854
      %v856 = vpop.f32.mrb[0].mxu0
      %857 = vmatprep.mubr.f32.mxu0 %v456
      %858 = vmatmul.mubr.f32.gmra.mrb[0].mxu0 %v455
      %v859 = vpop.f32.mrb[0].mxu0
      %v860 = vadd.f32 %v506, %v859
      %v861 = vpop.f32.mrb[0].mxu0
      %862 = vmatprep.mubr.f32.mxu0 %v458
      %863 = vmatmul.mubr.f32.gmra.mrb[0].mxu0 %v457
      %v864 = vpop.f32.mrb[0].mxu0
      %v865 = vadd.f32 %v506, %v864
      %v866 = vpop.f32.mrb[0].mxu0
      %867 = vmatprep.mubr.f32.mxu0 %v460
      %868 = vmatmul.mubr.f32.gmra.mrb[0].mxu0 %v459
      %v869 = vpop.f32.mrb[0].mxu0
      %v870 = vadd.f32 %v506, %v869
      %v871 = vpop.f32.mrb[0].mxu0
      %872 = vmatprep.mubr.f32.mxu0 %v462
      %873 = vmatmul.mubr.f32.gmra.mrb[0].mxu0 %v461
      %v874 = vpop.f32.mrb[0].mxu0
      %v875 = vadd.f32 %v506, %v874
      %v876 = vpop.f32.mrb[0].mxu0
      %877 = vmatprep.mubr.f32.mxu0 %v464
      %878 = vmatmul.mubr.f32.gmra.mrb[0].mxu0 %v463
      %v879 = vpop.f32.mrb[0].mxu0
      %v880 = vadd.f32 %v506, %v879
      %v881 = vpop.f32.mrb[0].mxu0
      %882 = vmatprep.mubr.f32.mxu0 %v466
      %883 = vmatmul.mubr.f32.gmra.mrb[0].mxu0 %v465
      %v884 = vpop.f32.mrb[0].mxu0
      %v885 = vadd.f32 %v506, %v884
      %v886 = vpop.f32.mrb[0].mxu0
      %887 = vmatprep.mubr.f32.mxu0 %v468
      %888 = vmatmul.mubr.f32.gmra.mrb[0].mxu0 %v467
      %v889 = vpop.f32.mrb[0].mxu0
      %v890 = vadd.f32 %v506, %v889
      %v891 = vpop.f32.mrb[0].mxu0
      %892 = vdwg.mxu0
      %v893 = vxor.u32 %v575, 2147483648
      %v894 = vxor.u32 %v580, 2147483648
      %v895 = vxor.u32 %v585, 2147483648
      %v896 = vxor.u32 %v590, 2147483648
      %v897 = vxor.u32 %v595, 2147483648
      %v898 = vxor.u32 %v600, 2147483648
      %v899 = vxor.u32 %v605, 2147483648
      %v900 = vxor.u32 %v610, 2147483648
      %v901 = vxor.u32 %v615, 2147483648
      %v902 = vxor.u32 %v620, 2147483648
      %v903 = vxor.u32 %v625, 2147483648
      %v904 = vxor.u32 %v630, 2147483648
      %v905 = vxor.u32 %v635, 2147483648
      %v906 = vxor.u32 %v640, 2147483648
      %v907 = vxor.u32 %v645, 2147483648
      %v908 = vxor.u32 %v650, 2147483648
      %v909 = vxor.u32 %v655, 2147483648
      %v910 = vxor.u32 %v660, 2147483648
      %v911 = vxor.u32 %v665, 2147483648
      %v912 = vxor.u32 %v670, 2147483648
      %v913 = vxor.u32 %v675, 2147483648
      %v914 = vxor.u32 %v680, 2147483648
      %v915 = vxor.u32 %v685, 2147483648
      %v916 = vxor.u32 %v690, 2147483648
      %v917 = vxor.u32 %v695, 2147483648
      %v918 = vxor.u32 %v700, 2147483648
      %v919 = vxor.u32 %v705, 2147483648
      %v920 = vxor.u32 %v710, 2147483648
      %v921 = vxor.u32 %v715, 2147483648
      %v922 = vxor.u32 %v720, 2147483648
      %v923 = vxor.u32 %v725, 2147483648
      %v924 = vxor.u32 %v730, 2147483648
      %v925 = vxor.u32 %v735, 2147483648
      %v926 = vxor.u32 %v740, 2147483648
      %v927 = vxor.u32 %v745, 2147483648
      %v928 = vxor.u32 %v750, 2147483648
      %v929 = vxor.u32 %v755, 2147483648
      %v930 = vxor.u32 %v760, 2147483648
      %v931 = vxor.u32 %v765, 2147483648
      %v932 = vxor.u32 %v770, 2147483648
      %v933 = vxor.u32 %v775, 2147483648
      %v934 = vxor.u32 %v780, 2147483648
      %v935 = vxor.u32 %v785, 2147483648
      %v936 = vxor.u32 %v790, 2147483648
      %v937 = vxor.u32 %v795, 2147483648
      %v938 = vxor.u32 %v800, 2147483648
      %v939 = vxor.u32 %v805, 2147483648
      %v940 = vxor.u32 %v810, 2147483648
      %v941 = vxor.u32 %v815, 2147483648
      %v942 = vxor.u32 %v820, 2147483648
      %v943 = vxor.u32 %v825, 2147483648
      %v944 = vxor.u32 %v830, 2147483648
      %v945 = vxor.u32 %v835, 2147483648
      %v946 = vxor.u32 %v840, 2147483648
      %v947 = vxor.u32 %v845, 2147483648
      %v948 = vxor.u32 %v850, 2147483648
      %v949 = vxor.u32 %v855, 2147483648
      %v950 = vxor.u32 %v860, 2147483648
      %v951 = vxor.u32 %v865, 2147483648
      %v952 = vxor.u32 %v870, 2147483648
      %v953 = vxor.u32 %v875, 2147483648
      %v954 = vxor.u32 %v880, 2147483648
      %v955 = vxor.u32 %v885, 2147483648
      %v956 = vxor.u32 %v890, 2147483648
      %v957 = vmul.f32 %v893, 1.442695
      %v958 = vpow.pop %v957
      %v959 = vmul.f32 %v894, 1.442695
      %v960 = vpow.pop %v959
      %v961 = vmul.f32 %v895, 1.442695
      %v962 = vpow.pop %v961
      %v963 = vmul.f32 %v896, 1.442695
      %v964 = vpow.pop %v963
      %v965 = vmul.f32 %v897, 1.442695
      %v966 = vpow.pop %v965
      %v967 = vmul.f32 %v898, 1.442695
      %v968 = vpow.pop %v967
      %v969 = vmul.f32 %v899, 1.442695
      %v970 = vpow.pop %v969
      %v971 = vmul.f32 %v900, 1.442695
      %v972 = vpow.pop %v971
      %v973 = vmul.f32 %v901, 1.442695
      %v974 = vpow.pop %v973
      %v975 = vmul.f32 %v902, 1.442695
      %v976 = vpow.pop %v975
      %v977 = vmul.f32 %v903, 1.442695
      %v978 = vpow.pop %v977
      %v979 = vmul.f32 %v904, 1.442695
      %v980 = vpow.pop %v979
      %v981 = vmul.f32 %v905, 1.442695
      %v982 = vpow.pop %v981
      %v983 = vmul.f32 %v906, 1.442695
      %v984 = vpow.pop %v983
      %v985 = vmul.f32 %v907, 1.442695
      %v986 = vpow.pop %v985
      %v987 = vmul.f32 %v908, 1.442695
      %v988 = vpow.pop %v987
      %v989 = vmul.f32 %v909, 1.442695
      %v990 = vpow.pop %v989
      %v991 = vmul.f32 %v910, 1.442695
      %v992 = vpow.pop %v991
      %v993 = vmul.f32 %v911, 1.442695
      %v994 = vpow.pop %v993
      %v995 = vmul.f32 %v912, 1.442695
      %v996 = vpow.pop %v995
      %v997 = vmul.f32 %v913, 1.442695
      %v998 = vpow.pop %v997
      %v999 = vmul.f32 %v914, 1.442695
      %v1000 = vpow.pop %v999
      %v1001 = vmul.f32 %v915, 1.442695
      %v1002 = vpow.pop %v1001
      %v1003 = vmul.f32 %v916, 1.442695
      %v1004 = vpow.pop %v1003
      %v1005 = vmul.f32 %v917, 1.442695
      %v1006 = vpow.pop %v1005
      %v1007 = vmul.f32 %v918, 1.442695
      %v1008 = vpow.pop %v1007
      %v1009 = vmul.f32 %v919, 1.442695
      %v1010 = vpow.pop %v1009
      %v1011 = vmul.f32 %v920, 1.442695
      %v1012 = vpow.pop %v1011
      %v1013 = vmul.f32 %v921, 1.442695
      %v1014 = vpow.pop %v1013
      %v1015 = vmul.f32 %v922, 1.442695
      %v1016 = vpow.pop %v1015
      %v1017 = vmul.f32 %v923, 1.442695
      %v1018 = vpow.pop %v1017
      %v1019 = vmul.f32 %v924, 1.442695
      %v1020 = vpow.pop %v1019
      %v1021 = vmul.f32 %v925, 1.442695
      %v1022 = vpow.pop %v1021
      %v1023 = vmul.f32 %v926, 1.442695
      %v1024 = vpow.pop %v1023
      %v1025 = vmul.f32 %v927, 1.442695
      %v1026 = vpow.pop %v1025
      %v1027 = vmul.f32 %v928, 1.442695
      %v1028 = vpow.pop %v1027
      %v1029 = vmul.f32 %v929, 1.442695
      %v1030 = vpow.pop %v1029
      %v1031 = vmul.f32 %v930, 1.442695
      %v1032 = vpow.pop %v1031
      %v1033 = vmul.f32 %v931, 1.442695
      %v1034 = vpow.pop %v1033
      %v1035 = vmul.f32 %v932, 1.442695
      %v1036 = vpow.pop %v1035
      %v1037 = vmul.f32 %v933, 1.442695
      %v1038 = vpow.pop %v1037
      %v1039 = vmul.f32 %v934, 1.442695
      %v1040 = vpow.pop %v1039
      %v1041 = vmul.f32 %v935, 1.442695
      %v1042 = vpow.pop %v1041
      %v1043 = vmul.f32 %v936, 1.442695
      %v1044 = vpow.pop %v1043
      %v1045 = vmul.f32 %v937, 1.442695
      %v1046 = vpow.pop %v1045
      %v1047 = vmul.f32 %v938, 1.442695
      %v1048 = vpow.pop %v1047
      %v1049 = vmul.f32 %v939, 1.442695
      %v1050 = vpow.pop %v1049
      %v1051 = vmul.f32 %v940, 1.442695
      %v1052 = vpow.pop %v1051
      %v1053 = vmul.f32 %v941, 1.442695
      %v1054 = vpow.pop %v1053
      %v1055 = vmul.f32 %v942, 1.442695
      %v1056 = vpow.pop %v1055
      %v1057 = vmul.f32 %v943, 1.442695
      %v1058 = vpow.pop %v1057
      %v1059 = vmul.f32 %v944, 1.442695
      %v1060 = vpow.pop %v1059
      %v1061 = vmul.f32 %v945, 1.442695
      %v1062 = vpow.pop %v1061
      %v1063 = vmul.f32 %v946, 1.442695
      %v1064 = vpow.pop %v1063
      %v1065 = vmul.f32 %v947, 1.442695
      %v1066 = vpow.pop %v1065
      %v1067 = vmul.f32 %v948, 1.442695
      %v1068 = vpow.pop %v1067
      %v1069 = vmul.f32 %v949, 1.442695
      %v1070 = vpow.pop %v1069
      %v1071 = vmul.f32 %v950, 1.442695
      %v1072 = vpow.pop %v1071
      %v1073 = vmul.f32 %v951, 1.442695
      %v1074 = vpow.pop %v1073
      %v1075 = vmul.f32 %v952, 1.442695
      %v1076 = vpow.pop %v1075
      %v1077 = vmul.f32 %v953, 1.442695
      %v1078 = vpow.pop %v1077
      %v1079 = vmul.f32 %v954, 1.442695
      %v1080 = vpow.pop %v1079
      %v1081 = vmul.f32 %v955, 1.442695
      %v1082 = vpow.pop %v1081
      %v1083 = vmul.f32 %v956, 1.442695
      %v1084 = vpow.pop %v1083
      %v1085 = vadd.f32 %v958, 1.0
      %v1086 = vadd.f32 %v960, 1.0
      %v1087 = vadd.f32 %v962, 1.0
      %v1088 = vadd.f32 %v964, 1.0
      %v1089 = vadd.f32 %v966, 1.0
      %v1090 = vadd.f32 %v968, 1.0
      %v1091 = vadd.f32 %v970, 1.0
      %v1092 = vadd.f32 %v972, 1.0
      %v1093 = vadd.f32 %v974, 1.0
      %v1094 = vadd.f32 %v976, 1.0
      %v1095 = vadd.f32 %v978, 1.0
      %v1096 = vadd.f32 %v980, 1.0
      %v1097 = vadd.f32 %v982, 1.0
      %v1098 = vadd.f32 %v984, 1.0
      %v1099 = vadd.f32 %v986, 1.0
      %v1100 = vadd.f32 %v988, 1.0
      %v1101 = vadd.f32 %v990, 1.0
      %v1102 = vadd.f32 %v992, 1.0
      %v1103 = vadd.f32 %v994, 1.0
      %v1104 = vadd.f32 %v996, 1.0
      %v1105 = vadd.f32 %v998, 1.0
      %v1106 = vadd.f32 %v1000, 1.0
      %v1107 = vadd.f32 %v1002, 1.0
      %v1108 = vadd.f32 %v1004, 1.0
      %v1109 = vadd.f32 %v1006, 1.0
      %v1110 = vadd.f32 %v1008, 1.0
      %v1111 = vadd.f32 %v1010, 1.0
      %v1112 = vadd.f32 %v1012, 1.0
      %v1113 = vadd.f32 %v1014, 1.0
      %v1114 = vadd.f32 %v1016, 1.0
      %v1115 = vadd.f32 %v1018, 1.0
      %v1116 = vadd.f32 %v1020, 1.0
      %v1117 = vadd.f32 %v1022, 1.0
      %v1118 = vadd.f32 %v1024, 1.0
      %v1119 = vadd.f32 %v1026, 1.0
      %v1120 = vadd.f32 %v1028, 1.0
      %v1121 = vadd.f32 %v1030, 1.0
      %v1122 = vadd.f32 %v1032, 1.0
      %v1123 = vadd.f32 %v1034, 1.0
      %v1124 = vadd.f32 %v1036, 1.0
      %v1125 = vadd.f32 %v1038, 1.0
      %v1126 = vadd.f32 %v1040, 1.0
      %v1127 = vadd.f32 %v1042, 1.0
      %v1128 = vadd.f32 %v1044, 1.0
      %v1129 = vadd.f32 %v1046, 1.0
      %v1130 = vadd.f32 %v1048, 1.0
      %v1131 = vadd.f32 %v1050, 1.0
      %v1132 = vadd.f32 %v1052, 1.0
      %v1133 = vadd.f32 %v1054, 1.0
      %v1134 = vadd.f32 %v1056, 1.0
      %v1135 = vadd.f32 %v1058, 1.0
      %v1136 = vadd.f32 %v1060, 1.0
      %v1137 = vadd.f32 %v1062, 1.0
      %v1138 = vadd.f32 %v1064, 1.0
      %v1139 = vadd.f32 %v1066, 1.0
      %v1140 = vadd.f32 %v1068, 1.0
      %v1141 = vadd.f32 %v1070, 1.0
      %v1142 = vadd.f32 %v1072, 1.0
      %v1143 = vadd.f32 %v1074, 1.0
      %v1144 = vadd.f32 %v1076, 1.0
      %v1145 = vadd.f32 %v1078, 1.0
      %v1146 = vadd.f32 %v1080, 1.0
      %v1147 = vadd.f32 %v1082, 1.0
      %v1148 = vadd.f32 %v1084, 1.0
      %v1149 = vrcp.pop %v1085
      %v1150 = vmul.f32 1.0, %v1149
      %v1151 = vrcp.pop %v1086
      %v1152 = vmul.f32 1.0, %v1151
      %v1153 = vrcp.pop %v1087
      %v1154 = vmul.f32 1.0, %v1153
      %v1155 = vrcp.pop %v1088
      %v1156 = vmul.f32 1.0, %v1155
      %v1157 = vrcp.pop %v1089
      %v1158 = vmul.f32 1.0, %v1157
      %v1159 = vrcp.pop %v1090
      %v1160 = vmul.f32 1.0, %v1159
      %v1161 = vrcp.pop %v1091
      %v1162 = vmul.f32 1.0, %v1161
      %v1163 = vrcp.pop %v1092
      %v1164 = vmul.f32 1.0, %v1163
      %v1165 = vrcp.pop %v1093
      %v1166 = vmul.f32 1.0, %v1165
      %v1167 = vrcp.pop %v1094
      %v1168 = vmul.f32 1.0, %v1167
      %v1169 = vrcp.pop %v1095
      %v1170 = vmul.f32 1.0, %v1169
      %v1171 = vrcp.pop %v1096
      %v1172 = vmul.f32 1.0, %v1171
      %v1173 = vrcp.pop %v1097
      %v1174 = vmul.f32 1.0, %v1173
      %v1175 = vrcp.pop %v1098
      %v1176 = vmul.f32 1.0, %v1175
      %v1177 = vrcp.pop %v1099
      %v1178 = vmul.f32 1.0, %v1177
      %v1179 = vrcp.pop %v1100
      %v1180 = vmul.f32 1.0, %v1179
      %v1181 = vrcp.pop %v1101
      %v1182 = vmul.f32 1.0, %v1181
      %v1183 = vrcp.pop %v1102
      %v1184 = vmul.f32 1.0, %v1183
      %v1185 = vrcp.pop %v1103
      %v1186 = vmul.f32 1.0, %v1185
      %v1187 = vrcp.pop %v1104
      %v1188 = vmul.f32 1.0, %v1187
      %v1189 = vrcp.pop %v1105
      %v1190 = vmul.f32 1.0, %v1189
      %v1191 = vrcp.pop %v1106
      %v1192 = vmul.f32 1.0, %v1191
      %v1193 = vrcp.pop %v1107
      %v1194 = vmul.f32 1.0, %v1193
      %v1195 = vrcp.pop %v1108
      %v1196 = vmul.f32 1.0, %v1195
      %v1197 = vrcp.pop %v1109
      %v1198 = vmul.f32 1.0, %v1197
      %v1199 = vrcp.pop %v1110
      %v1200 = vmul.f32 1.0, %v1199
      %v1201 = vrcp.pop %v1111
      %v1202 = vmul.f32 1.0, %v1201
      %v1203 = vrcp.pop %v1112
      %v1204 = vmul.f32 1.0, %v1203
      %v1205 = vrcp.pop %v1113
      %v1206 = vmul.f32 1.0, %v1205
      %v1207 = vrcp.pop %v1114
      %v1208 = vmul.f32 1.0, %v1207
      %v1209 = vrcp.pop %v1115
      %v1210 = vmul.f32 1.0, %v1209
      %v1211 = vrcp.pop %v1116
      %v1212 = vmul.f32 1.0, %v1211
      %v1213 = vrcp.pop %v1117
      %v1214 = vmul.f32 1.0, %v1213
      %v1215 = vrcp.pop %v1118
      %v1216 = vmul.f32 1.0, %v1215
      %v1217 = vrcp.pop %v1119
      %v1218 = vmul.f32 1.0, %v1217
      %v1219 = vrcp.pop %v1120
      %v1220 = vmul.f32 1.0, %v1219
      %v1221 = vrcp.pop %v1121
      %v1222 = vmul.f32 1.0, %v1221
      %v1223 = vrcp.pop %v1122
      %v1224 = vmul.f32 1.0, %v1223
      %v1225 = vrcp.pop %v1123
      %v1226 = vmul.f32 1.0, %v1225
      %v1227 = vrcp.pop %v1124
      %v1228 = vmul.f32 1.0, %v1227
      %v1229 = vrcp.pop %v1125
      %v1230 = vmul.f32 1.0, %v1229
      %v1231 = vrcp.pop %v1126
      %v1232 = vmul.f32 1.0, %v1231
      %v1233 = vrcp.pop %v1127
      %v1234 = vmul.f32 1.0, %v1233
      %v1235 = vrcp.pop %v1128
      %v1236 = vmul.f32 1.0, %v1235
      %v1237 = vrcp.pop %v1129
      %v1238 = vmul.f32 1.0, %v1237
      %v1239 = vrcp.pop %v1130
      %v1240 = vmul.f32 1.0, %v1239
      %v1241 = vrcp.pop %v1131
      %v1242 = vmul.f32 1.0, %v1241
      %v1243 = vrcp.pop %v1132
      %v1244 = vmul.f32 1.0, %v1243
      %v1245 = vrcp.pop %v1133
      %v1246 = vmul.f32 1.0, %v1245
      %v1247 = vrcp.pop %v1134
      %v1248 = vmul.f32 1.0, %v1247
      %v1249 = vrcp.pop %v1135
      %v1250 = vmul.f32 1.0, %v1249
      %v1251 = vrcp.pop %v1136
      %v1252 = vmul.f32 1.0, %v1251
      %v1253 = vrcp.pop %v1137
      %v1254 = vmul.f32 1.0, %v1253
      %v1255 = vrcp.pop %v1138
      %v1256 = vmul.f32 1.0, %v1255
      %v1257 = vrcp.pop %v1139
      %v1258 = vmul.f32 1.0, %v1257
      %v1259 = vrcp.pop %v1140
      %v1260 = vmul.f32 1.0, %v1259
      %v1261 = vrcp.pop %v1141
      %v1262 = vmul.f32 1.0, %v1261
      %v1263 = vrcp.pop %v1142
      %v1264 = vmul.f32 1.0, %v1263
      %v1265 = vrcp.pop %v1143
      %v1266 = vmul.f32 1.0, %v1265
      %v1267 = vrcp.pop %v1144
      %v1268 = vmul.f32 1.0, %v1267
      %v1269 = vrcp.pop %v1145
      %v1270 = vmul.f32 1.0, %v1269
      %v1271 = vrcp.pop %v1146
      %v1272 = vmul.f32 1.0, %v1271
      %v1273 = vrcp.pop %v1147
      %v1274 = vmul.f32 1.0, %v1273
      %v1275 = vrcp.pop %v1148
      %v1276 = vmul.f32 1.0, %v1275
      %v1277 = vld [vmem:[%s3] sm:$0xff]
      %v1278 = vld [vmem:[%s3 + $0x8] sm:$0xff]
      %v1279 = vld [vmem:[%s3 + $0x10] sm:$0xff]
      %v1280 = vld [vmem:[%s3 + $0x18] sm:$0xff]
      %v1281 = vld [vmem:[%s3 + $0x20] sm:$0xff]
      %v1282 = vld [vmem:[%s3 + $0x28] sm:$0xff]
      %v1283 = vld [vmem:[%s3 + $0x30] sm:$0xff]
      %v1284 = vld [vmem:[%s3 + $0x38] sm:$0xff]
      %v1285 = vld [vmem:[%s4] sm:$0x1]
      %v1287 = vlaneseq
      %v1288 = vshrl.u32 %v1287, 7
      %v1289 = vsub.s32 0, %v1288
      %v1290 = vrot.slane %v1285, %v1289
      %vm1292 = vcmask 523264
      %v1294 = vsel %vm1292, %v1150, 0
      %v1297 = vsel %vm1292, %v1152, 0
      %v1300 = vsel %vm1292, %v1154, 0
      %v1303 = vsel %vm1292, %v1156, 0
      %v1306 = vsel %vm1292, %v1158, 0
      %v1309 = vsel %vm1292, %v1160, 0
      %v1312 = vsel %vm1292, %v1162, 0
      %v1315 = vsel %vm1292, %v1164, 0
      %v1318 = vsel %vm1292, %v1166, 0
      %v1321 = vsel %vm1292, %v1168, 0
      %v1324 = vsel %vm1292, %v1170, 0
      %v1327 = vsel %vm1292, %v1172, 0
      %v1330 = vsel %vm1292, %v1174, 0
      %v1333 = vsel %vm1292, %v1176, 0
      %v1336 = vsel %vm1292, %v1178, 0
      %v1339 = vsel %vm1292, %v1180, 0
      %v1342 = vsel %vm1292, %v1182, 0
      %v1345 = vsel %vm1292, %v1184, 0
      %v1348 = vsel %vm1292, %v1186, 0
      %v1351 = vsel %vm1292, %v1188, 0
      %v1354 = vsel %vm1292, %v1190, 0
      %v1357 = vsel %vm1292, %v1192, 0
      %v1360 = vsel %vm1292, %v1194, 0
      %v1363 = vsel %vm1292, %v1196, 0
      %v1366 = vsel %vm1292, %v1198, 0
      %v1369 = vsel %vm1292, %v1200, 0
      %v1372 = vsel %vm1292, %v1202, 0
      %v1375 = vsel %vm1292, %v1204, 0
      %v1378 = vsel %vm1292, %v1206, 0
      %v1381 = vsel %vm1292, %v1208, 0
      %v1384 = vsel %vm1292, %v1210, 0
      %v1387 = vsel %vm1292, %v1212, 0
      %v1390 = vsel %vm1292, %v1214, 0
      %v1393 = vsel %vm1292, %v1216, 0
      %v1396 = vsel %vm1292, %v1218, 0
      %v1399 = vsel %vm1292, %v1220, 0
      %v1402 = vsel %vm1292, %v1222, 0
      %v1405 = vsel %vm1292, %v1224, 0
      %v1408 = vsel %vm1292, %v1226, 0
      %v1411 = vsel %vm1292, %v1228, 0
      %v1414 = vsel %vm1292, %v1230, 0
      %v1417 = vsel %vm1292, %v1232, 0
      %v1420 = vsel %vm1292, %v1234, 0
      %v1423 = vsel %vm1292, %v1236, 0
      %v1426 = vsel %vm1292, %v1238, 0
      %v1429 = vsel %vm1292, %v1240, 0
      %v1432 = vsel %vm1292, %v1242, 0
      %v1435 = vsel %vm1292, %v1244, 0
      %v1438 = vsel %vm1292, %v1246, 0
      %v1441 = vsel %vm1292, %v1248, 0
      %v1444 = vsel %vm1292, %v1250, 0
      %v1447 = vsel %vm1292, %v1252, 0
      %v1450 = vsel %vm1292, %v1254, 0
      %v1453 = vsel %vm1292, %v1256, 0
      %v1456 = vsel %vm1292, %v1258, 0
      %v1459 = vsel %vm1292, %v1260, 0
      %v1462 = vsel %vm1292, %v1262, 0
      %v1465 = vsel %vm1292, %v1264, 0
      %v1468 = vsel %vm1292, %v1266, 0
      %v1471 = vsel %vm1292, %v1268, 0
      %v1474 = vsel %vm1292, %v1270, 0
      %v1477 = vsel %vm1292, %v1272, 0
      %v1480 = vsel %vm1292, %v1274, 0
      %v1483 = vsel %vm1292, %v1276, 0
      %1485 = vmatprep.subr.mxu0 0.0
      %1486 = vmatpush1.msra.mxu0 %v1277
      %1487 = vmatprep.subr.mxu0 0.0
      %1488 = vmatpush1.msra.mxu0 %v1278
      %1489 = vmatprep.subr.mxu0 0.0
      %1490 = vmatpush1.msra.mxu0 %v1279
      %1491 = vmatprep.subr.mxu0 0.0
      %1492 = vmatpush1.msra.mxu0 %v1280
      %1493 = vmatprep.subr.mxu0 0.0
      %1494 = vmatpush1.msra.mxu0 %v1281
      %1495 = vmatprep.subr.mxu0 0.0
      %1496 = vmatpush1.msra.mxu0 %v1282
      %1497 = vmatprep.subr.mxu0 0.0
      %1498 = vmatpush1.msra.mxu0 %v1283
      %1499 = vmatprep.subr.mxu0 0.0
      %1500 = vmatpush1.msra.mxu0 %v1284
      %1501 = vmatprep.subr.mxu0 0.0
      %1502 = vmatpush1.msra.mxu0 0.0
      %1503 = vmatprep.subr.mxu0 0.0
      %1504 = vmatpush1.msra.mxu0 0.0
      %1505 = vmatprep.subr.mxu0 0.0
      %1506 = vmatpush1.msra.mxu0 0.0
      %1507 = vmatprep.subr.mxu0 0.0
      %1508 = vmatpush1.msra.mxu0 0.0
      %1509 = vmatprep.subr.mxu0 0.0
      %1510 = vmatpush1.msra.mxu0 0.0
      %1511 = vmatprep.subr.mxu0 0.0
      %1512 = vmatpush1.msra.mxu0 0.0
      %1513 = vmatprep.subr.mxu0 0.0
      %1514 = vmatpush1.msra.mxu0 0.0
      %1515 = vmatprep.subr.mxu0 0.0
      %1516 = vmatpush1.msra.mxu0 0.0
      %1517 = vmatprep.subr.mxu0 0.0
      %1518 = vmatpush1.msra.mxu0 0.0
      %1519 = vmatprep.subr.mxu0 0.0
      %1520 = vmatpush1.msra.mxu0 0.0
      %1521 = vmatprep.subr.mxu0 0.0
      %1522 = vmatpush1.msra.mxu0 0.0
      %1523 = vmatprep.subr.mxu0 0.0
      %1524 = vmatpush1.msra.mxu0 0.0
      %1525 = vmatprep.subr.mxu0 0.0
      %1526 = vmatpush1.msra.mxu0 0.0
      %1527 = vmatprep.subr.mxu0 0.0
      %1528 = vmatpush1.msra.mxu0 0.0
      %1529 = vmatprep.subr.mxu0 0.0
      %1530 = vmatpush1.msra.mxu0 0.0
      %1531 = vmatprep.subr.mxu0 0.0
      %1532 = vmatpush1.msra.mxu0 0.0
      %1533 = vmatprep.subr.mxu0 0.0
      %1534 = vmatpush1.msra.mxu0 0.0
      %1535 = vmatprep.subr.mxu0 0.0
      %1536 = vmatpush1.msra.mxu0 0.0
      %1537 = vmatprep.subr.mxu0 0.0
      %1538 = vmatpush1.msra.mxu0 0.0
      %1539 = vmatprep.subr.mxu0 0.0
      %1540 = vmatpush1.msra.mxu0 0.0
      %1541 = vmatprep.subr.mxu0 0.0
      %1542 = vmatpush1.msra.mxu0 0.0
      %1543 = vmatprep.subr.mxu0 0.0
      %1544 = vmatpush1.msra.mxu0 0.0
      %1545 = vmatprep.subr.mxu0 0.0
      %1546 = vmatpush1.msra.mxu0 0.0
      %1547 = vmatprep.subr.mxu0 0.0
      %1548 = vmatpush1.msra.mxu0 0.0
      %1549 = vmatprep.mubr.f32.mxu0 0.0
      %1550 = vmatmul.mubr.f32.gmra.mrb[0].mxu0 %v1294
      %v1551 = vpop.f32.mrb[0].mxu0
      %v1552 = vadd.f32 %v1290, %v1551
      %v1553 = vpop.f32.mrb[0].mxu0
      %1554 = vmatprep.mubr.f32.mxu0 0.0
      %1555 = vmatmul.mubr.f32.gmra.mrb[0].mxu0 %v1297
      %v1556 = vpop.f32.mrb[0].mxu0
      %v1557 = vadd.f32 %v1290, %v1556
      %v1558 = vpop.f32.mrb[0].mxu0
      %1559 = vmatprep.mubr.f32.mxu0 0.0
      %1560 = vmatmul.mubr.f32.gmra.mrb[0].mxu0 %v1300
      %v1561 = vpop.f32.mrb[0].mxu0
      %v1562 = vadd.f32 %v1290, %v1561
      %v1563 = vpop.f32.mrb[0].mxu0
      %1564 = vmatprep.mubr.f32.mxu0 0.0
      %1565 = vmatmul.mubr.f32.gmra.mrb[0].mxu0 %v1303
      %v1566 = vpop.f32.mrb[0].mxu0
      %v1567 = vadd.f32 %v1290, %v1566
      %v1568 = vpop.f32.mrb[0].mxu0
      %1569 = vmatprep.mubr.f32.mxu0 0.0
      %1570 = vmatmul.mubr.f32.gmra.mrb[0].mxu0 %v1306
      %v1571 = vpop.f32.mrb[0].mxu0
      %v1572 = vadd.f32 %v1290, %v1571
      %v1573 = vpop.f32.mrb[0].mxu0
      %1574 = vmatprep.mubr.f32.mxu0 0.0
      %1575 = vmatmul.mubr.f32.gmra.mrb[0].mxu0 %v1309
      %v1576 = vpop.f32.mrb[0].mxu0
      %v1577 = vadd.f32 %v1290, %v1576
      %v1578 = vpop.f32.mrb[0].mxu0
      %1579 = vmatprep.mubr.f32.mxu0 0.0
      %1580 = vmatmul.mubr.f32.gmra.mrb[0].mxu0 %v1312
      %v1581 = vpop.f32.mrb[0].mxu0
      %v1582 = vadd.f32 %v1290, %v1581
      %v1583 = vpop.f32.mrb[0].mxu0
      %1584 = vmatprep.mubr.f32.mxu0 0.0
      %1585 = vmatmul.mubr.f32.gmra.mrb[0].mxu0 %v1315
      %v1586 = vpop.f32.mrb[0].mxu0
      %v1587 = vadd.f32 %v1290, %v1586
      %v1588 = vpop.f32.mrb[0].mxu0
      %1589 = vmatprep.mubr.f32.mxu0 0.0
      %1590 = vmatmul.mubr.f32.gmra.mrb[0].mxu0 %v1318
      %v1591 = vpop.f32.mrb[0].mxu0
      %v1592 = vadd.f32 %v1290, %v1591
      %v1593 = vpop.f32.mrb[0].mxu0
      %1594 = vmatprep.mubr.f32.mxu0 0.0
      %1595 = vmatmul.mubr.f32.gmra.mrb[0].mxu0 %v1321
      %v1596 = vpop.f32.mrb[0].mxu0
      %v1597 = vadd.f32 %v1290, %v1596
      %v1598 = vpop.f32.mrb[0].mxu0
      %1599 = vmatprep.mubr.f32.mxu0 0.0
      %1600 = vmatmul.mubr.f32.gmra.mrb[0].mxu0 %v1324
      %v1601 = vpop.f32.mrb[0].mxu0
      %v1602 = vadd.f32 %v1290, %v1601
      %v1603 = vpop.f32.mrb[0].mxu0
      %1604 = vmatprep.mubr.f32.mxu0 0.0
      %1605 = vmatmul.mubr.f32.gmra.mrb[0].mxu0 %v1327
      %v1606 = vpop.f32.mrb[0].mxu0
      %v1607 = vadd.f32 %v1290, %v1606
      %v1608 = vpop.f32.mrb[0].mxu0
      %1609 = vmatprep.mubr.f32.mxu0 0.0
      %1610 = vmatmul.mubr.f32.gmra.mrb[0].mxu0 %v1330
      %v1611 = vpop.f32.mrb[0].mxu0
      %v1612 = vadd.f32 %v1290, %v1611
      %v1613 = vpop.f32.mrb[0].mxu0
      %1614 = vmatprep.mubr.f32.mxu0 0.0
      %1615 = vmatmul.mubr.f32.gmra.mrb[0].mxu0 %v1333
      %v1616 = vpop.f32.mrb[0].mxu0
      %v1617 = vadd.f32 %v1290, %v1616
      %v1618 = vpop.f32.mrb[0].mxu0
      %1619 = vmatprep.mubr.f32.mxu0 0.0
      %1620 = vmatmul.mubr.f32.gmra.mrb[0].mxu0 %v1336
      %v1621 = vpop.f32.mrb[0].mxu0
      %v1622 = vadd.f32 %v1290, %v1621
      %v1623 = vpop.f32.mrb[0].mxu0
      %1624 = vmatprep.mubr.f32.mxu0 0.0
      %1625 = vmatmul.mubr.f32.gmra.mrb[0].mxu0 %v1339
      %v1626 = vpop.f32.mrb[0].mxu0
      %v1627 = vadd.f32 %v1290, %v1626
      %v1628 = vpop.f32.mrb[0].mxu0
      %1629 = vmatprep.mubr.f32.mxu0 0.0
      %1630 = vmatmul.mubr.f32.gmra.mrb[0].mxu0 %v1342
      %v1631 = vpop.f32.mrb[0].mxu0
      %v1632 = vadd.f32 %v1290, %v1631
      %v1633 = vpop.f32.mrb[0].mxu0
      %1634 = vmatprep.mubr.f32.mxu0 0.0
      %1635 = vmatmul.mubr.f32.gmra.mrb[0].mxu0 %v1345
      %v1636 = vpop.f32.mrb[0].mxu0
      %v1637 = vadd.f32 %v1290, %v1636
      %v1638 = vpop.f32.mrb[0].mxu0
      %1639 = vmatprep.mubr.f32.mxu0 0.0
      %1640 = vmatmul.mubr.f32.gmra.mrb[0].mxu0 %v1348
      %v1641 = vpop.f32.mrb[0].mxu0
      %v1642 = vadd.f32 %v1290, %v1641
      %v1643 = vpop.f32.mrb[0].mxu0
      %1644 = vmatprep.mubr.f32.mxu0 0.0
      %1645 = vmatmul.mubr.f32.gmra.mrb[0].mxu0 %v1351
      %v1646 = vpop.f32.mrb[0].mxu0
      %v1647 = vadd.f32 %v1290, %v1646
      %v1648 = vpop.f32.mrb[0].mxu0
      %1649 = vmatprep.mubr.f32.mxu0 0.0
      %1650 = vmatmul.mubr.f32.gmra.mrb[0].mxu0 %v1354
      %v1651 = vpop.f32.mrb[0].mxu0
      %v1652 = vadd.f32 %v1290, %v1651
      %v1653 = vpop.f32.mrb[0].mxu0
      %1654 = vmatprep.mubr.f32.mxu0 0.0
      %1655 = vmatmul.mubr.f32.gmra.mrb[0].mxu0 %v1357
      %v1656 = vpop.f32.mrb[0].mxu0
      %v1657 = vadd.f32 %v1290, %v1656
      %v1658 = vpop.f32.mrb[0].mxu0
      %1659 = vmatprep.mubr.f32.mxu0 0.0
      %1660 = vmatmul.mubr.f32.gmra.mrb[0].mxu0 %v1360
      %v1661 = vpop.f32.mrb[0].mxu0
      %v1662 = vadd.f32 %v1290, %v1661
      %v1663 = vpop.f32.mrb[0].mxu0
      %1664 = vmatprep.mubr.f32.mxu0 0.0
      %1665 = vmatmul.mubr.f32.gmra.mrb[0].mxu0 %v1363
      %v1666 = vpop.f32.mrb[0].mxu0
      %v1667 = vadd.f32 %v1290, %v1666
      %v1668 = vpop.f32.mrb[0].mxu0
      %1669 = vmatprep.mubr.f32.mxu0 0.0
      %1670 = vmatmul.mubr.f32.gmra.mrb[0].mxu0 %v1366
      %v1671 = vpop.f32.mrb[0].mxu0
      %v1672 = vadd.f32 %v1290, %v1671
      %v1673 = vpop.f32.mrb[0].mxu0
      %1674 = vmatprep.mubr.f32.mxu0 0.0
      %1675 = vmatmul.mubr.f32.gmra.mrb[0].mxu0 %v1369
      %v1676 = vpop.f32.mrb[0].mxu0
      %v1677 = vadd.f32 %v1290, %v1676
      %v1678 = vpop.f32.mrb[0].mxu0
      %1679 = vmatprep.mubr.f32.mxu0 0.0
      %1680 = vmatmul.mubr.f32.gmra.mrb[0].mxu0 %v1372
      %v1681 = vpop.f32.mrb[0].mxu0
      %v1682 = vadd.f32 %v1290, %v1681
      %v1683 = vpop.f32.mrb[0].mxu0
      %1684 = vmatprep.mubr.f32.mxu0 0.0
      %1685 = vmatmul.mubr.f32.gmra.mrb[0].mxu0 %v1375
      %v1686 = vpop.f32.mrb[0].mxu0
      %v1687 = vadd.f32 %v1290, %v1686
      %v1688 = vpop.f32.mrb[0].mxu0
      %1689 = vmatprep.mubr.f32.mxu0 0.0
      %1690 = vmatmul.mubr.f32.gmra.mrb[0].mxu0 %v1378
      %v1691 = vpop.f32.mrb[0].mxu0
      %v1692 = vadd.f32 %v1290, %v1691
      %v1693 = vpop.f32.mrb[0].mxu0
      %1694 = vmatprep.mubr.f32.mxu0 0.0
      %1695 = vmatmul.mubr.f32.gmra.mrb[0].mxu0 %v1381
      %v1696 = vpop.f32.mrb[0].mxu0
      %v1697 = vadd.f32 %v1290, %v1696
      %v1698 = vpop.f32.mrb[0].mxu0
      %1699 = vmatprep.mubr.f32.mxu0 0.0
      %1700 = vmatmul.mubr.f32.gmra.mrb[0].mxu0 %v1384
      %v1701 = vpop.f32.mrb[0].mxu0
      %v1702 = vadd.f32 %v1290, %v1701
      %v1703 = vpop.f32.mrb[0].mxu0
      %1704 = vmatprep.mubr.f32.mxu0 0.0
      %1705 = vmatmul.mubr.f32.gmra.mrb[0].mxu0 %v1387
      %v1706 = vpop.f32.mrb[0].mxu0
      %v1707 = vadd.f32 %v1290, %v1706
      %v1708 = vpop.f32.mrb[0].mxu0
      %1709 = vmatprep.mubr.f32.mxu0 0.0
      %1710 = vmatmul.mubr.f32.gmra.mrb[0].mxu0 %v1390
      %v1711 = vpop.f32.mrb[0].mxu0
      %v1712 = vadd.f32 %v1290, %v1711
      %v1713 = vpop.f32.mrb[0].mxu0
      %1714 = vmatprep.mubr.f32.mxu0 0.0
      %1715 = vmatmul.mubr.f32.gmra.mrb[0].mxu0 %v1393
      %v1716 = vpop.f32.mrb[0].mxu0
      %v1717 = vadd.f32 %v1290, %v1716
      %v1718 = vpop.f32.mrb[0].mxu0
      %1719 = vmatprep.mubr.f32.mxu0 0.0
      %1720 = vmatmul.mubr.f32.gmra.mrb[0].mxu0 %v1396
      %v1721 = vpop.f32.mrb[0].mxu0
      %v1722 = vadd.f32 %v1290, %v1721
      %v1723 = vpop.f32.mrb[0].mxu0
      %1724 = vmatprep.mubr.f32.mxu0 0.0
      %1725 = vmatmul.mubr.f32.gmra.mrb[0].mxu0 %v1399
      %v1726 = vpop.f32.mrb[0].mxu0
      %v1727 = vadd.f32 %v1290, %v1726
      %v1728 = vpop.f32.mrb[0].mxu0
      %1729 = vmatprep.mubr.f32.mxu0 0.0
      %1730 = vmatmul.mubr.f32.gmra.mrb[0].mxu0 %v1402
      %v1731 = vpop.f32.mrb[0].mxu0
      %v1732 = vadd.f32 %v1290, %v1731
      %v1733 = vpop.f32.mrb[0].mxu0
      %1734 = vmatprep.mubr.f32.mxu0 0.0
      %1735 = vmatmul.mubr.f32.gmra.mrb[0].mxu0 %v1405
      %v1736 = vpop.f32.mrb[0].mxu0
      %v1737 = vadd.f32 %v1290, %v1736
      %v1738 = vpop.f32.mrb[0].mxu0
      %1739 = vmatprep.mubr.f32.mxu0 0.0
      %1740 = vmatmul.mubr.f32.gmra.mrb[0].mxu0 %v1408
      %v1741 = vpop.f32.mrb[0].mxu0
      %v1742 = vadd.f32 %v1290, %v1741
      %v1743 = vpop.f32.mrb[0].mxu0
      %1744 = vmatprep.mubr.f32.mxu0 0.0
      %1745 = vmatmul.mubr.f32.gmra.mrb[0].mxu0 %v1411
      %v1746 = vpop.f32.mrb[0].mxu0
      %v1747 = vadd.f32 %v1290, %v1746
      %v1748 = vpop.f32.mrb[0].mxu0
      %1749 = vmatprep.mubr.f32.mxu0 0.0
      %1750 = vmatmul.mubr.f32.gmra.mrb[0].mxu0 %v1414
      %v1751 = vpop.f32.mrb[0].mxu0
      %v1752 = vadd.f32 %v1290, %v1751
      %v1753 = vpop.f32.mrb[0].mxu0
      %1754 = vmatprep.mubr.f32.mxu0 0.0
      %1755 = vmatmul.mubr.f32.gmra.mrb[0].mxu0 %v1417
      %v1756 = vpop.f32.mrb[0].mxu0
      %v1757 = vadd.f32 %v1290, %v1756
      %v1758 = vpop.f32.mrb[0].mxu0
      %1759 = vmatprep.mubr.f32.mxu0 0.0
      %1760 = vmatmul.mubr.f32.gmra.mrb[0].mxu0 %v1420
      %v1761 = vpop.f32.mrb[0].mxu0
      %v1762 = vadd.f32 %v1290, %v1761
      %v1763 = vpop.f32.mrb[0].mxu0
      %1764 = vmatprep.mubr.f32.mxu0 0.0
      %1765 = vmatmul.mubr.f32.gmra.mrb[0].mxu0 %v1423
      %v1766 = vpop.f32.mrb[0].mxu0
      %v1767 = vadd.f32 %v1290, %v1766
      %v1768 = vpop.f32.mrb[0].mxu0
      %1769 = vmatprep.mubr.f32.mxu0 0.0
      %1770 = vmatmul.mubr.f32.gmra.mrb[0].mxu0 %v1426
      %v1771 = vpop.f32.mrb[0].mxu0
      %v1772 = vadd.f32 %v1290, %v1771
      %v1773 = vpop.f32.mrb[0].mxu0
      %1774 = vmatprep.mubr.f32.mxu0 0.0
      %1775 = vmatmul.mubr.f32.gmra.mrb[0].mxu0 %v1429
      %v1776 = vpop.f32.mrb[0].mxu0
      %v1777 = vadd.f32 %v1290, %v1776
      %v1778 = vpop.f32.mrb[0].mxu0
      %1779 = vmatprep.mubr.f32.mxu0 0.0
      %1780 = vmatmul.mubr.f32.gmra.mrb[0].mxu0 %v1432
      %v1781 = vpop.f32.mrb[0].mxu0
      %v1782 = vadd.f32 %v1290, %v1781
      %v1783 = vpop.f32.mrb[0].mxu0
      %1784 = vmatprep.mubr.f32.mxu0 0.0
      %1785 = vmatmul.mubr.f32.gmra.mrb[0].mxu0 %v1435
      %v1786 = vpop.f32.mrb[0].mxu0
      %v1787 = vadd.f32 %v1290, %v1786
      %v1788 = vpop.f32.mrb[0].mxu0
      %1789 = vmatprep.mubr.f32.mxu0 0.0
      %1790 = vmatmul.mubr.f32.gmra.mrb[0].mxu0 %v1438
      %v1791 = vpop.f32.mrb[0].mxu0
      %v1792 = vadd.f32 %v1290, %v1791
      %v1793 = vpop.f32.mrb[0].mxu0
      %1794 = vmatprep.mubr.f32.mxu0 0.0
      %1795 = vmatmul.mubr.f32.gmra.mrb[0].mxu0 %v1441
      %v1796 = vpop.f32.mrb[0].mxu0
      %v1797 = vadd.f32 %v1290, %v1796
      %v1798 = vpop.f32.mrb[0].mxu0
      %1799 = vmatprep.mubr.f32.mxu0 0.0
      %1800 = vmatmul.mubr.f32.gmra.mrb[0].mxu0 %v1444
      %v1801 = vpop.f32.mrb[0].mxu0
      %v1802 = vadd.f32 %v1290, %v1801
      %v1803 = vpop.f32.mrb[0].mxu0
      %1804 = vmatprep.mubr.f32.mxu0 0.0
      %1805 = vmatmul.mubr.f32.gmra.mrb[0].mxu0 %v1447
      %v1806 = vpop.f32.mrb[0].mxu0
      %v1807 = vadd.f32 %v1290, %v1806
      %v1808 = vpop.f32.mrb[0].mxu0
      %1809 = vmatprep.mubr.f32.mxu0 0.0
      %1810 = vmatmul.mubr.f32.gmra.mrb[0].mxu0 %v1450
      %v1811 = vpop.f32.mrb[0].mxu0
      %v1812 = vadd.f32 %v1290, %v1811
      %v1813 = vpop.f32.mrb[0].mxu0
      %1814 = vmatprep.mubr.f32.mxu0 0.0
      %1815 = vmatmul.mubr.f32.gmra.mrb[0].mxu0 %v1453
      %v1816 = vpop.f32.mrb[0].mxu0
      %v1817 = vadd.f32 %v1290, %v1816
      %v1818 = vpop.f32.mrb[0].mxu0
      %1819 = vmatprep.mubr.f32.mxu0 0.0
      %1820 = vmatmul.mubr.f32.gmra.mrb[0].mxu0 %v1456
      %v1821 = vpop.f32.mrb[0].mxu0
      %v1822 = vadd.f32 %v1290, %v1821
      %v1823 = vpop.f32.mrb[0].mxu0
      %1824 = vmatprep.mubr.f32.mxu0 0.0
      %1825 = vmatmul.mubr.f32.gmra.mrb[0].mxu0 %v1459
      %v1826 = vpop.f32.mrb[0].mxu0
      %v1827 = vadd.f32 %v1290, %v1826
      %v1828 = vpop.f32.mrb[0].mxu0
      %1829 = vmatprep.mubr.f32.mxu0 0.0
      %1830 = vmatmul.mubr.f32.gmra.mrb[0].mxu0 %v1462
      %v1831 = vpop.f32.mrb[0].mxu0
      %v1832 = vadd.f32 %v1290, %v1831
      %v1833 = vpop.f32.mrb[0].mxu0
      %1834 = vmatprep.mubr.f32.mxu0 0.0
      %1835 = vmatmul.mubr.f32.gmra.mrb[0].mxu0 %v1465
      %v1836 = vpop.f32.mrb[0].mxu0
      %v1837 = vadd.f32 %v1290, %v1836
      %v1838 = vpop.f32.mrb[0].mxu0
      %1839 = vmatprep.mubr.f32.mxu0 0.0
      %1840 = vmatmul.mubr.f32.gmra.mrb[0].mxu0 %v1468
      %v1841 = vpop.f32.mrb[0].mxu0
      %v1842 = vadd.f32 %v1290, %v1841
      %v1843 = vpop.f32.mrb[0].mxu0
      %1844 = vmatprep.mubr.f32.mxu0 0.0
      %1845 = vmatmul.mubr.f32.gmra.mrb[0].mxu0 %v1471
      %v1846 = vpop.f32.mrb[0].mxu0
      %v1847 = vadd.f32 %v1290, %v1846
      %v1848 = vpop.f32.mrb[0].mxu0
      %1849 = vmatprep.mubr.f32.mxu0 0.0
      %1850 = vmatmul.mubr.f32.gmra.mrb[0].mxu0 %v1474
      %v1851 = vpop.f32.mrb[0].mxu0
      %v1852 = vadd.f32 %v1290, %v1851
      %v1853 = vpop.f32.mrb[0].mxu0
      %1854 = vmatprep.mubr.f32.mxu0 0.0
      %1855 = vmatmul.mubr.f32.gmra.mrb[0].mxu0 %v1477
      %v1856 = vpop.f32.mrb[0].mxu0
      %v1857 = vadd.f32 %v1290, %v1856
      %v1858 = vpop.f32.mrb[0].mxu0
      %1859 = vmatprep.mubr.f32.mxu0 0.0
      %1860 = vmatmul.mubr.f32.gmra.mrb[0].mxu0 %v1480
      %v1861 = vpop.f32.mrb[0].mxu0
      %v1862 = vadd.f32 %v1290, %v1861
      %v1863 = vpop.f32.mrb[0].mxu0
      %1864 = vmatprep.mubr.f32.mxu0 0.0
      %1865 = vmatmul.mubr.f32.gmra.mrb[0].mxu0 %v1483
      %v1866 = vpop.f32.mrb[0].mxu0
      %v1867 = vadd.f32 %v1290, %v1866
      %v1868 = vpop.f32.mrb[0].mxu0
      %1869 = vdwg.mxu0
      %v1870 = vxor.u32 %v1552, 2147483648
      %v1871 = vxor.u32 %v1557, 2147483648
      %v1872 = vxor.u32 %v1562, 2147483648
      %v1873 = vxor.u32 %v1567, 2147483648
      %v1874 = vxor.u32 %v1572, 2147483648
      %v1875 = vxor.u32 %v1577, 2147483648
      %v1876 = vxor.u32 %v1582, 2147483648
      %v1877 = vxor.u32 %v1587, 2147483648
      %v1878 = vxor.u32 %v1592, 2147483648
      %v1879 = vxor.u32 %v1597, 2147483648
      %v1880 = vxor.u32 %v1602, 2147483648
      %v1881 = vxor.u32 %v1607, 2147483648
      %v1882 = vxor.u32 %v1612, 2147483648
      %v1883 = vxor.u32 %v1617, 2147483648
      %v1884 = vxor.u32 %v1622, 2147483648
      %v1885 = vxor.u32 %v1627, 2147483648
      %v1886 = vxor.u32 %v1632, 2147483648
      %v1887 = vxor.u32 %v1637, 2147483648
      %v1888 = vxor.u32 %v1642, 2147483648
      %v1889 = vxor.u32 %v1647, 2147483648
      %v1890 = vxor.u32 %v1652, 2147483648
      %v1891 = vxor.u32 %v1657, 2147483648
      %v1892 = vxor.u32 %v1662, 2147483648
      %v1893 = vxor.u32 %v1667, 2147483648
      %v1894 = vxor.u32 %v1672, 2147483648
      %v1895 = vxor.u32 %v1677, 2147483648
      %v1896 = vxor.u32 %v1682, 2147483648
      %v1897 = vxor.u32 %v1687, 2147483648
      %v1898 = vxor.u32 %v1692, 2147483648
      %v1899 = vxor.u32 %v1697, 2147483648
      %v1900 = vxor.u32 %v1702, 2147483648
      %v1901 = vxor.u32 %v1707, 2147483648
      %v1902 = vxor.u32 %v1712, 2147483648
      %v1903 = vxor.u32 %v1717, 2147483648
      %v1904 = vxor.u32 %v1722, 2147483648
      %v1905 = vxor.u32 %v1727, 2147483648
      %v1906 = vxor.u32 %v1732, 2147483648
      %v1907 = vxor.u32 %v1737, 2147483648
      %v1908 = vxor.u32 %v1742, 2147483648
      %v1909 = vxor.u32 %v1747, 2147483648
      %v1910 = vxor.u32 %v1752, 2147483648
      %v1911 = vxor.u32 %v1757, 2147483648
      %v1912 = vxor.u32 %v1762, 2147483648
      %v1913 = vxor.u32 %v1767, 2147483648
      %v1914 = vxor.u32 %v1772, 2147483648
      %v1915 = vxor.u32 %v1777, 2147483648
      %v1916 = vxor.u32 %v1782, 2147483648
      %v1917 = vxor.u32 %v1787, 2147483648
      %v1918 = vxor.u32 %v1792, 2147483648
      %v1919 = vxor.u32 %v1797, 2147483648
      %v1920 = vxor.u32 %v1802, 2147483648
      %v1921 = vxor.u32 %v1807, 2147483648
      %v1922 = vxor.u32 %v1812, 2147483648
      %v1923 = vxor.u32 %v1817, 2147483648
      %v1924 = vxor.u32 %v1822, 2147483648
      %v1925 = vxor.u32 %v1827, 2147483648
      %v1926 = vxor.u32 %v1832, 2147483648
      %v1927 = vxor.u32 %v1837, 2147483648
      %v1928 = vxor.u32 %v1842, 2147483648
      %v1929 = vxor.u32 %v1847, 2147483648
      %v1930 = vxor.u32 %v1852, 2147483648
      %v1931 = vxor.u32 %v1857, 2147483648
      %v1932 = vxor.u32 %v1862, 2147483648
      %v1933 = vxor.u32 %v1867, 2147483648
      %v1934 = vmul.f32 %v1870, 1.442695
      %v1935 = vpow.pop %v1934
      %v1936 = vmul.f32 %v1871, 1.442695
      %v1937 = vpow.pop %v1936
      %v1938 = vmul.f32 %v1872, 1.442695
      %v1939 = vpow.pop %v1938
      %v1940 = vmul.f32 %v1873, 1.442695
      %v1941 = vpow.pop %v1940
      %v1942 = vmul.f32 %v1874, 1.442695
      %v1943 = vpow.pop %v1942
      %v1944 = vmul.f32 %v1875, 1.442695
      %v1945 = vpow.pop %v1944
      %v1946 = vmul.f32 %v1876, 1.442695
      %v1947 = vpow.pop %v1946
      %v1948 = vmul.f32 %v1877, 1.442695
      %v1949 = vpow.pop %v1948
      %v1950 = vmul.f32 %v1878, 1.442695
      %v1951 = vpow.pop %v1950
      %v1952 = vmul.f32 %v1879, 1.442695
      %v1953 = vpow.pop %v1952
      %v1954 = vmul.f32 %v1880, 1.442695
      %v1955 = vpow.pop %v1954
      %v1956 = vmul.f32 %v1881, 1.442695
      %v1957 = vpow.pop %v1956
      %v1958 = vmul.f32 %v1882, 1.442695
      %v1959 = vpow.pop %v1958
      %v1960 = vmul.f32 %v1883, 1.442695
      %v1961 = vpow.pop %v1960
      %v1962 = vmul.f32 %v1884, 1.442695
      %v1963 = vpow.pop %v1962
      %v1964 = vmul.f32 %v1885, 1.442695
      %v1965 = vpow.pop %v1964
      %v1966 = vmul.f32 %v1886, 1.442695
      %v1967 = vpow.pop %v1966
      %v1968 = vmul.f32 %v1887, 1.442695
      %v1969 = vpow.pop %v1968
      %v1970 = vmul.f32 %v1888, 1.442695
      %v1971 = vpow.pop %v1970
      %v1972 = vmul.f32 %v1889, 1.442695
      %v1973 = vpow.pop %v1972
      %v1974 = vmul.f32 %v1890, 1.442695
      %v1975 = vpow.pop %v1974
      %v1976 = vmul.f32 %v1891, 1.442695
      %v1977 = vpow.pop %v1976
      %v1978 = vmul.f32 %v1892, 1.442695
      %v1979 = vpow.pop %v1978
      %v1980 = vmul.f32 %v1893, 1.442695
      %v1981 = vpow.pop %v1980
      %v1982 = vmul.f32 %v1894, 1.442695
      %v1983 = vpow.pop %v1982
      %v1984 = vmul.f32 %v1895, 1.442695
      %v1985 = vpow.pop %v1984
      %v1986 = vmul.f32 %v1896, 1.442695
      %v1987 = vpow.pop %v1986
      %v1988 = vmul.f32 %v1897, 1.442695
      %v1989 = vpow.pop %v1988
      %v1990 = vmul.f32 %v1898, 1.442695
      %v1991 = vpow.pop %v1990
      %v1992 = vmul.f32 %v1899, 1.442695
      %v1993 = vpow.pop %v1992
      %v1994 = vmul.f32 %v1900, 1.442695
      %v1995 = vpow.pop %v1994
      %v1996 = vmul.f32 %v1901, 1.442695
      %v1997 = vpow.pop %v1996
      %v1998 = vmul.f32 %v1902, 1.442695
      %v1999 = vpow.pop %v1998
      %v2000 = vmul.f32 %v1903, 1.442695
      %v2001 = vpow.pop %v2000
      %v2002 = vmul.f32 %v1904, 1.442695
      %v2003 = vpow.pop %v2002
      %v2004 = vmul.f32 %v1905, 1.442695
      %v2005 = vpow.pop %v2004
      %v2006 = vmul.f32 %v1906, 1.442695
      %v2007 = vpow.pop %v2006
      %v2008 = vmul.f32 %v1907, 1.442695
      %v2009 = vpow.pop %v2008
      %v2010 = vmul.f32 %v1908, 1.442695
      %v2011 = vpow.pop %v2010
      %v2012 = vmul.f32 %v1909, 1.442695
      %v2013 = vpow.pop %v2012
      %v2014 = vmul.f32 %v1910, 1.442695
      %v2015 = vpow.pop %v2014
      %v2016 = vmul.f32 %v1911, 1.442695
      %v2017 = vpow.pop %v2016
      %v2018 = vmul.f32 %v1912, 1.442695
      %v2019 = vpow.pop %v2018
      %v2020 = vmul.f32 %v1913, 1.442695
      %v2021 = vpow.pop %v2020
      %v2022 = vmul.f32 %v1914, 1.442695
      %v2023 = vpow.pop %v2022
      %v2024 = vmul.f32 %v1915, 1.442695
      %v2025 = vpow.pop %v2024
      %v2026 = vmul.f32 %v1916, 1.442695
      %v2027 = vpow.pop %v2026
      %v2028 = vmul.f32 %v1917, 1.442695
      %v2029 = vpow.pop %v2028
      %v2030 = vmul.f32 %v1918, 1.442695
      %v2031 = vpow.pop %v2030
      %v2032 = vmul.f32 %v1919, 1.442695
      %v2033 = vpow.pop %v2032
      %v2034 = vmul.f32 %v1920, 1.442695
      %v2035 = vpow.pop %v2034
      %v2036 = vmul.f32 %v1921, 1.442695
      %v2037 = vpow.pop %v2036
      %v2038 = vmul.f32 %v1922, 1.442695
      %v2039 = vpow.pop %v2038
      %v2040 = vmul.f32 %v1923, 1.442695
      %v2041 = vpow.pop %v2040
      %v2042 = vmul.f32 %v1924, 1.442695
      %v2043 = vpow.pop %v2042
      %v2044 = vmul.f32 %v1925, 1.442695
      %v2045 = vpow.pop %v2044
      %v2046 = vmul.f32 %v1926, 1.442695
      %v2047 = vpow.pop %v2046
      %v2048 = vmul.f32 %v1927, 1.442695
      %v2049 = vpow.pop %v2048
      %v2050 = vmul.f32 %v1928, 1.442695
      %v2051 = vpow.pop %v2050
      %v2052 = vmul.f32 %v1929, 1.442695
      %v2053 = vpow.pop %v2052
      %v2054 = vmul.f32 %v1930, 1.442695
      %v2055 = vpow.pop %v2054
      %v2056 = vmul.f32 %v1931, 1.442695
      %v2057 = vpow.pop %v2056
      %v2058 = vmul.f32 %v1932, 1.442695
      %v2059 = vpow.pop %v2058
      %v2060 = vmul.f32 %v1933, 1.442695
      %v2061 = vpow.pop %v2060
      %v2062 = vadd.f32 %v1935, 1.0
      %v2063 = vadd.f32 %v1937, 1.0
      %v2064 = vadd.f32 %v1939, 1.0
      %v2065 = vadd.f32 %v1941, 1.0
      %v2066 = vadd.f32 %v1943, 1.0
      %v2067 = vadd.f32 %v1945, 1.0
      %v2068 = vadd.f32 %v1947, 1.0
      %v2069 = vadd.f32 %v1949, 1.0
      %v2070 = vadd.f32 %v1951, 1.0
      %v2071 = vadd.f32 %v1953, 1.0
      %v2072 = vadd.f32 %v1955, 1.0
      %v2073 = vadd.f32 %v1957, 1.0
      %v2074 = vadd.f32 %v1959, 1.0
      %v2075 = vadd.f32 %v1961, 1.0
      %v2076 = vadd.f32 %v1963, 1.0
      %v2077 = vadd.f32 %v1965, 1.0
      %v2078 = vadd.f32 %v1967, 1.0
      %v2079 = vadd.f32 %v1969, 1.0
      %v2080 = vadd.f32 %v1971, 1.0
      %v2081 = vadd.f32 %v1973, 1.0
      %v2082 = vadd.f32 %v1975, 1.0
      %v2083 = vadd.f32 %v1977, 1.0
      %v2084 = vadd.f32 %v1979, 1.0
      %v2085 = vadd.f32 %v1981, 1.0
      %v2086 = vadd.f32 %v1983, 1.0
      %v2087 = vadd.f32 %v1985, 1.0
      %v2088 = vadd.f32 %v1987, 1.0
      %v2089 = vadd.f32 %v1989, 1.0
      %v2090 = vadd.f32 %v1991, 1.0
      %v2091 = vadd.f32 %v1993, 1.0
      %v2092 = vadd.f32 %v1995, 1.0
      %v2093 = vadd.f32 %v1997, 1.0
      %v2094 = vadd.f32 %v1999, 1.0
      %v2095 = vadd.f32 %v2001, 1.0
      %v2096 = vadd.f32 %v2003, 1.0
      %v2097 = vadd.f32 %v2005, 1.0
      %v2098 = vadd.f32 %v2007, 1.0
      %v2099 = vadd.f32 %v2009, 1.0
      %v2100 = vadd.f32 %v2011, 1.0
      %v2101 = vadd.f32 %v2013, 1.0
      %v2102 = vadd.f32 %v2015, 1.0
      %v2103 = vadd.f32 %v2017, 1.0
      %v2104 = vadd.f32 %v2019, 1.0
      %v2105 = vadd.f32 %v2021, 1.0
      %v2106 = vadd.f32 %v2023, 1.0
      %v2107 = vadd.f32 %v2025, 1.0
      %v2108 = vadd.f32 %v2027, 1.0
      %v2109 = vadd.f32 %v2029, 1.0
      %v2110 = vadd.f32 %v2031, 1.0
      %v2111 = vadd.f32 %v2033, 1.0
      %v2112 = vadd.f32 %v2035, 1.0
      %v2113 = vadd.f32 %v2037, 1.0
      %v2114 = vadd.f32 %v2039, 1.0
      %v2115 = vadd.f32 %v2041, 1.0
      %v2116 = vadd.f32 %v2043, 1.0
      %v2117 = vadd.f32 %v2045, 1.0
      %v2118 = vadd.f32 %v2047, 1.0
      %v2119 = vadd.f32 %v2049, 1.0
      %v2120 = vadd.f32 %v2051, 1.0
      %v2121 = vadd.f32 %v2053, 1.0
      %v2122 = vadd.f32 %v2055, 1.0
      %v2123 = vadd.f32 %v2057, 1.0
      %v2124 = vadd.f32 %v2059, 1.0
      %v2125 = vadd.f32 %v2061, 1.0
      %v2126 = vrcp.pop %v2062
      %v2127 = vmul.f32 1.0, %v2126
      %v2128 = vrcp.pop %v2063
      %v2129 = vmul.f32 1.0, %v2128
      %v2130 = vrcp.pop %v2064
      %v2131 = vmul.f32 1.0, %v2130
      %v2132 = vrcp.pop %v2065
      %v2133 = vmul.f32 1.0, %v2132
      %v2134 = vrcp.pop %v2066
      %v2135 = vmul.f32 1.0, %v2134
      %v2136 = vrcp.pop %v2067
      %v2137 = vmul.f32 1.0, %v2136
      %v2138 = vrcp.pop %v2068
      %v2139 = vmul.f32 1.0, %v2138
      %v2140 = vrcp.pop %v2069
      %v2141 = vmul.f32 1.0, %v2140
      %v2142 = vrcp.pop %v2070
      %v2143 = vmul.f32 1.0, %v2142
      %v2144 = vrcp.pop %v2071
      %v2145 = vmul.f32 1.0, %v2144
      %v2146 = vrcp.pop %v2072
      %v2147 = vmul.f32 1.0, %v2146
      %v2148 = vrcp.pop %v2073
      %v2149 = vmul.f32 1.0, %v2148
      %v2150 = vrcp.pop %v2074
      %v2151 = vmul.f32 1.0, %v2150
      %v2152 = vrcp.pop %v2075
      %v2153 = vmul.f32 1.0, %v2152
      %v2154 = vrcp.pop %v2076
      %v2155 = vmul.f32 1.0, %v2154
      %v2156 = vrcp.pop %v2077
      %v2157 = vmul.f32 1.0, %v2156
      %v2158 = vrcp.pop %v2078
      %v2159 = vmul.f32 1.0, %v2158
      %v2160 = vrcp.pop %v2079
      %v2161 = vmul.f32 1.0, %v2160
      %v2162 = vrcp.pop %v2080
      %v2163 = vmul.f32 1.0, %v2162
      %v2164 = vrcp.pop %v2081
      %v2165 = vmul.f32 1.0, %v2164
      %v2166 = vrcp.pop %v2082
      %v2167 = vmul.f32 1.0, %v2166
      %v2168 = vrcp.pop %v2083
      %v2169 = vmul.f32 1.0, %v2168
      %v2170 = vrcp.pop %v2084
      %v2171 = vmul.f32 1.0, %v2170
      %v2172 = vrcp.pop %v2085
      %v2173 = vmul.f32 1.0, %v2172
      %v2174 = vrcp.pop %v2086
      %v2175 = vmul.f32 1.0, %v2174
      %v2176 = vrcp.pop %v2087
      %v2177 = vmul.f32 1.0, %v2176
      %v2178 = vrcp.pop %v2088
      %v2179 = vmul.f32 1.0, %v2178
      %v2180 = vrcp.pop %v2089
      %v2181 = vmul.f32 1.0, %v2180
      %v2182 = vrcp.pop %v2090
      %v2183 = vmul.f32 1.0, %v2182
      %v2184 = vrcp.pop %v2091
      %v2185 = vmul.f32 1.0, %v2184
      %v2186 = vrcp.pop %v2092
      %v2187 = vmul.f32 1.0, %v2186
      %v2188 = vrcp.pop %v2093
      %v2189 = vmul.f32 1.0, %v2188
      %v2190 = vrcp.pop %v2094
      %v2191 = vmul.f32 1.0, %v2190
      %v2192 = vrcp.pop %v2095
      %v2193 = vmul.f32 1.0, %v2192
      %v2194 = vrcp.pop %v2096
      %v2195 = vmul.f32 1.0, %v2194
      %v2196 = vrcp.pop %v2097
      %v2197 = vmul.f32 1.0, %v2196
      %v2198 = vrcp.pop %v2098
      %v2199 = vmul.f32 1.0, %v2198
      %v2200 = vrcp.pop %v2099
      %v2201 = vmul.f32 1.0, %v2200
      %v2202 = vrcp.pop %v2100
      %v2203 = vmul.f32 1.0, %v2202
      %v2204 = vrcp.pop %v2101
      %v2205 = vmul.f32 1.0, %v2204
      %v2206 = vrcp.pop %v2102
      %v2207 = vmul.f32 1.0, %v2206
      %v2208 = vrcp.pop %v2103
      %v2209 = vmul.f32 1.0, %v2208
      %v2210 = vrcp.pop %v2104
      %v2211 = vmul.f32 1.0, %v2210
      %v2212 = vrcp.pop %v2105
      %v2213 = vmul.f32 1.0, %v2212
      %v2214 = vrcp.pop %v2106
      %v2215 = vmul.f32 1.0, %v2214
      %v2216 = vrcp.pop %v2107
      %v2217 = vmul.f32 1.0, %v2216
      %v2218 = vrcp.pop %v2108
      %v2219 = vmul.f32 1.0, %v2218
      %v2220 = vrcp.pop %v2109
      %v2221 = vmul.f32 1.0, %v2220
      %v2222 = vrcp.pop %v2110
      %v2223 = vmul.f32 1.0, %v2222
      %v2224 = vrcp.pop %v2111
      %v2225 = vmul.f32 1.0, %v2224
      %v2226 = vrcp.pop %v2112
      %v2227 = vmul.f32 1.0, %v2226
      %v2228 = vrcp.pop %v2113
      %v2229 = vmul.f32 1.0, %v2228
      %v2230 = vrcp.pop %v2114
      %v2231 = vmul.f32 1.0, %v2230
      %v2232 = vrcp.pop %v2115
      %v2233 = vmul.f32 1.0, %v2232
      %v2234 = vrcp.pop %v2116
      %v2235 = vmul.f32 1.0, %v2234
      %v2236 = vrcp.pop %v2117
      %v2237 = vmul.f32 1.0, %v2236
      %v2238 = vrcp.pop %v2118
      %v2239 = vmul.f32 1.0, %v2238
      %v2240 = vrcp.pop %v2119
      %v2241 = vmul.f32 1.0, %v2240
      %v2242 = vrcp.pop %v2120
      %v2243 = vmul.f32 1.0, %v2242
      %v2244 = vrcp.pop %v2121
      %v2245 = vmul.f32 1.0, %v2244
      %v2246 = vrcp.pop %v2122
      %v2247 = vmul.f32 1.0, %v2246
      %v2248 = vrcp.pop %v2123
      %v2249 = vmul.f32 1.0, %v2248
      %v2250 = vrcp.pop %v2124
      %v2251 = vmul.f32 1.0, %v2250
      %v2252 = vrcp.pop %v2125
      %v2253 = vmul.f32 1.0, %v2252
      %v2254 = vld [vmem:[%s5] sm:$0xff]
      %v2255 = vld [vmem:[%s5 + $0x8] sm:$0xff]
      %v2256 = vld [vmem:[%s5 + $0x10] sm:$0xff]
      %v2257 = vld [vmem:[%s5 + $0x18] sm:$0xff]
      %v2258 = vld [vmem:[%s6] sm:$0x1]
      %v2260 = vlaneseq
      %v2261 = vshrl.u32 %v2260, 7
      %v2262 = vsub.s32 0, %v2261
      %v2263 = vrot.slane %v2258, %v2262
      %vm2265 = vcmask 261120
      %v2267 = vsel %vm2265, %v2127, 0
      %v2270 = vsel %vm2265, %v2129, 0
      %v2273 = vsel %vm2265, %v2131, 0
      %v2276 = vsel %vm2265, %v2133, 0
      %v2279 = vsel %vm2265, %v2135, 0
      %v2282 = vsel %vm2265, %v2137, 0
      %v2285 = vsel %vm2265, %v2139, 0
      %v2288 = vsel %vm2265, %v2141, 0
      %v2291 = vsel %vm2265, %v2143, 0
      %v2294 = vsel %vm2265, %v2145, 0
      %v2297 = vsel %vm2265, %v2147, 0
      %v2300 = vsel %vm2265, %v2149, 0
      %v2303 = vsel %vm2265, %v2151, 0
      %v2306 = vsel %vm2265, %v2153, 0
      %v2309 = vsel %vm2265, %v2155, 0
      %v2312 = vsel %vm2265, %v2157, 0
      %v2315 = vsel %vm2265, %v2159, 0
      %v2318 = vsel %vm2265, %v2161, 0
      %v2321 = vsel %vm2265, %v2163, 0
      %v2324 = vsel %vm2265, %v2165, 0
      %v2327 = vsel %vm2265, %v2167, 0
      %v2330 = vsel %vm2265, %v2169, 0
      %v2333 = vsel %vm2265, %v2171, 0
      %v2336 = vsel %vm2265, %v2173, 0
      %v2339 = vsel %vm2265, %v2175, 0
      %v2342 = vsel %vm2265, %v2177, 0
      %v2345 = vsel %vm2265, %v2179, 0
      %v2348 = vsel %vm2265, %v2181, 0
      %v2351 = vsel %vm2265, %v2183, 0
      %v2354 = vsel %vm2265, %v2185, 0
      %v2357 = vsel %vm2265, %v2187, 0
      %v2360 = vsel %vm2265, %v2189, 0
      %v2363 = vsel %vm2265, %v2191, 0
      %v2366 = vsel %vm2265, %v2193, 0
      %v2369 = vsel %vm2265, %v2195, 0
      %v2372 = vsel %vm2265, %v2197, 0
      %v2375 = vsel %vm2265, %v2199, 0
      %v2378 = vsel %vm2265, %v2201, 0
      %v2381 = vsel %vm2265, %v2203, 0
      %v2384 = vsel %vm2265, %v2205, 0
      %v2387 = vsel %vm2265, %v2207, 0
      %v2390 = vsel %vm2265, %v2209, 0
      %v2393 = vsel %vm2265, %v2211, 0
      %v2396 = vsel %vm2265, %v2213, 0
      %v2399 = vsel %vm2265, %v2215, 0
      %v2402 = vsel %vm2265, %v2217, 0
      %v2405 = vsel %vm2265, %v2219, 0
      %v2408 = vsel %vm2265, %v2221, 0
      %v2411 = vsel %vm2265, %v2223, 0
      %v2414 = vsel %vm2265, %v2225, 0
      %v2417 = vsel %vm2265, %v2227, 0
      %v2420 = vsel %vm2265, %v2229, 0
      %v2423 = vsel %vm2265, %v2231, 0
      %v2426 = vsel %vm2265, %v2233, 0
      %v2429 = vsel %vm2265, %v2235, 0
      %v2432 = vsel %vm2265, %v2237, 0
      %v2435 = vsel %vm2265, %v2239, 0
      %v2438 = vsel %vm2265, %v2241, 0
      %v2441 = vsel %vm2265, %v2243, 0
      %v2444 = vsel %vm2265, %v2245, 0
      %v2447 = vsel %vm2265, %v2247, 0
      %v2450 = vsel %vm2265, %v2249, 0
      %v2453 = vsel %vm2265, %v2251, 0
      %v2456 = vsel %vm2265, %v2253, 0
      %2458 = vmatprep.subr.mxu0 0.0
      %2459 = vmatpush1.msra.mxu0 %v2254
      %2460 = vmatprep.subr.mxu0 0.0
      %2461 = vmatpush1.msra.mxu0 %v2255
      %2462 = vmatprep.subr.mxu0 0.0
      %2463 = vmatpush1.msra.mxu0 %v2256
      %2464 = vmatprep.subr.mxu0 0.0
      %2465 = vmatpush1.msra.mxu0 %v2257
      %2466 = vmatprep.subr.mxu0 0.0
      %2467 = vmatpush1.msra.mxu0 0.0
      %2468 = vmatprep.subr.mxu0 0.0
      %2469 = vmatpush1.msra.mxu0 0.0
      %2470 = vmatprep.subr.mxu0 0.0
      %2471 = vmatpush1.msra.mxu0 0.0
      %2472 = vmatprep.subr.mxu0 0.0
      %2473 = vmatpush1.msra.mxu0 0.0
      %2474 = vmatprep.subr.mxu0 0.0
      %2475 = vmatpush1.msra.mxu0 0.0
      %2476 = vmatprep.subr.mxu0 0.0
      %2477 = vmatpush1.msra.mxu0 0.0
      %2478 = vmatprep.subr.mxu0 0.0
      %2479 = vmatpush1.msra.mxu0 0.0
      %2480 = vmatprep.subr.mxu0 0.0
      %2481 = vmatpush1.msra.mxu0 0.0
      %2482 = vmatprep.subr.mxu0 0.0
      %2483 = vmatpush1.msra.mxu0 0.0
      %2484 = vmatprep.subr.mxu0 0.0
      %2485 = vmatpush1.msra.mxu0 0.0
      %2486 = vmatprep.subr.mxu0 0.0
      %2487 = vmatpush1.msra.mxu0 0.0
      %2488 = vmatprep.subr.mxu0 0.0
      %2489 = vmatpush1.msra.mxu0 0.0
      %2490 = vmatprep.subr.mxu0 0.0
      %2491 = vmatpush1.msra.mxu0 0.0
      %2492 = vmatprep.subr.mxu0 0.0
      %2493 = vmatpush1.msra.mxu0 0.0
      %2494 = vmatprep.subr.mxu0 0.0
      %2495 = vmatpush1.msra.mxu0 0.0
      %2496 = vmatprep.subr.mxu0 0.0
      %2497 = vmatpush1.msra.mxu0 0.0
      %2498 = vmatprep.subr.mxu0 0.0
      %2499 = vmatpush1.msra.mxu0 0.0
      %2500 = vmatprep.subr.mxu0 0.0
      %2501 = vmatpush1.msra.mxu0 0.0
      %2502 = vmatprep.subr.mxu0 0.0
      %2503 = vmatpush1.msra.mxu0 0.0
      %2504 = vmatprep.subr.mxu0 0.0
      %2505 = vmatpush1.msra.mxu0 0.0
      %2506 = vmatprep.subr.mxu0 0.0
      %2507 = vmatpush1.msra.mxu0 0.0
      %2508 = vmatprep.subr.mxu0 0.0
      %2509 = vmatpush1.msra.mxu0 0.0
      %2510 = vmatprep.subr.mxu0 0.0
      %2511 = vmatpush1.msra.mxu0 0.0
      %2512 = vmatprep.subr.mxu0 0.0
      %2513 = vmatpush1.msra.mxu0 0.0
      %2514 = vmatprep.subr.mxu0 0.0
      %2515 = vmatpush1.msra.mxu0 0.0
      %2516 = vmatprep.subr.mxu0 0.0
      %2517 = vmatpush1.msra.mxu0 0.0
      %2518 = vmatprep.subr.mxu0 0.0
      %2519 = vmatpush1.msra.mxu0 0.0
      %2520 = vmatprep.subr.mxu0 0.0
      %2521 = vmatpush1.msra.mxu0 0.0
      %2522 = vmatprep.mubr.f32.mxu0 0.0
      %2523 = vmatmul.mubr.f32.gmra.mrb[0].mxu0 %v2267
      %v2524 = vpop.f32.mrb[0].mxu0
      %v2525 = vadd.f32 %v2263, %v2524
      %v2526 = vpop.f32.mrb[0].mxu0
      %2527 = vmatprep.mubr.f32.mxu0 0.0
      %2528 = vmatmul.mubr.f32.gmra.mrb[0].mxu0 %v2270
      %v2529 = vpop.f32.mrb[0].mxu0
      %v2530 = vadd.f32 %v2263, %v2529
      %v2531 = vpop.f32.mrb[0].mxu0
      %2532 = vmatprep.mubr.f32.mxu0 0.0
      %2533 = vmatmul.mubr.f32.gmra.mrb[0].mxu0 %v2273
      %v2534 = vpop.f32.mrb[0].mxu0
      %v2535 = vadd.f32 %v2263, %v2534
      %v2536 = vpop.f32.mrb[0].mxu0
      %2537 = vmatprep.mubr.f32.mxu0 0.0
      %2538 = vmatmul.mubr.f32.gmra.mrb[0].mxu0 %v2276
      %v2539 = vpop.f32.mrb[0].mxu0
      %v2540 = vadd.f32 %v2263, %v2539
      %v2541 = vpop.f32.mrb[0].mxu0
      %2542 = vmatprep.mubr.f32.mxu0 0.0
      %2543 = vmatmul.mubr.f32.gmra.mrb[0].mxu0 %v2279
      %v2544 = vpop.f32.mrb[0].mxu0
      %v2545 = vadd.f32 %v2263, %v2544
      %v2546 = vpop.f32.mrb[0].mxu0
      %2547 = vmatprep.mubr.f32.mxu0 0.0
      %2548 = vmatmul.mubr.f32.gmra.mrb[0].mxu0 %v2282
      %v2549 = vpop.f32.mrb[0].mxu0
      %v2550 = vadd.f32 %v2263, %v2549
      %v2551 = vpop.f32.mrb[0].mxu0
      %2552 = vmatprep.mubr.f32.mxu0 0.0
      %2553 = vmatmul.mubr.f32.gmra.mrb[0].mxu0 %v2285
      %v2554 = vpop.f32.mrb[0].mxu0
      %v2555 = vadd.f32 %v2263, %v2554
      %v2556 = vpop.f32.mrb[0].mxu0
      %2557 = vmatprep.mubr.f32.mxu0 0.0
      %2558 = vmatmul.mubr.f32.gmra.mrb[0].mxu0 %v2288
      %v2559 = vpop.f32.mrb[0].mxu0
      %v2560 = vadd.f32 %v2263, %v2559
      %v2561 = vpop.f32.mrb[0].mxu0
      %2562 = vmatprep.mubr.f32.mxu0 0.0
      %2563 = vmatmul.mubr.f32.gmra.mrb[0].mxu0 %v2291
      %v2564 = vpop.f32.mrb[0].mxu0
      %v2565 = vadd.f32 %v2263, %v2564
      %v2566 = vpop.f32.mrb[0].mxu0
      %2567 = vmatprep.mubr.f32.mxu0 0.0
      %2568 = vmatmul.mubr.f32.gmra.mrb[0].mxu0 %v2294
      %v2569 = vpop.f32.mrb[0].mxu0
      %v2570 = vadd.f32 %v2263, %v2569
      %v2571 = vpop.f32.mrb[0].mxu0
      %2572 = vmatprep.mubr.f32.mxu0 0.0
      %2573 = vmatmul.mubr.f32.gmra.mrb[0].mxu0 %v2297
      %v2574 = vpop.f32.mrb[0].mxu0
      %v2575 = vadd.f32 %v2263, %v2574
      %v2576 = vpop.f32.mrb[0].mxu0
      %2577 = vmatprep.mubr.f32.mxu0 0.0
      %2578 = vmatmul.mubr.f32.gmra.mrb[0].mxu0 %v2300
      %v2579 = vpop.f32.mrb[0].mxu0
      %v2580 = vadd.f32 %v2263, %v2579
      %v2581 = vpop.f32.mrb[0].mxu0
      %2582 = vmatprep.mubr.f32.mxu0 0.0
      %2583 = vmatmul.mubr.f32.gmra.mrb[0].mxu0 %v2303
      %v2584 = vpop.f32.mrb[0].mxu0
      %v2585 = vadd.f32 %v2263, %v2584
      %v2586 = vpop.f32.mrb[0].mxu0
      %2587 = vmatprep.mubr.f32.mxu0 0.0
      %2588 = vmatmul.mubr.f32.gmra.mrb[0].mxu0 %v2306
      %v2589 = vpop.f32.mrb[0].mxu0
      %v2590 = vadd.f32 %v2263, %v2589
      %v2591 = vpop.f32.mrb[0].mxu0
      %2592 = vmatprep.mubr.f32.mxu0 0.0
      %2593 = vmatmul.mubr.f32.gmra.mrb[0].mxu0 %v2309
      %v2594 = vpop.f32.mrb[0].mxu0
      %v2595 = vadd.f32 %v2263, %v2594
      %v2596 = vpop.f32.mrb[0].mxu0
      %2597 = vmatprep.mubr.f32.mxu0 0.0
      %2598 = vmatmul.mubr.f32.gmra.mrb[0].mxu0 %v2312
      %v2599 = vpop.f32.mrb[0].mxu0
      %v2600 = vadd.f32 %v2263, %v2599
      %v2601 = vpop.f32.mrb[0].mxu0
      %2602 = vmatprep.mubr.f32.mxu0 0.0
      %2603 = vmatmul.mubr.f32.gmra.mrb[0].mxu0 %v2315
      %v2604 = vpop.f32.mrb[0].mxu0
      %v2605 = vadd.f32 %v2263, %v2604
      %v2606 = vpop.f32.mrb[0].mxu0
      %2607 = vmatprep.mubr.f32.mxu0 0.0
      %2608 = vmatmul.mubr.f32.gmra.mrb[0].mxu0 %v2318
      %v2609 = vpop.f32.mrb[0].mxu0
      %v2610 = vadd.f32 %v2263, %v2609
      %v2611 = vpop.f32.mrb[0].mxu0
      %2612 = vmatprep.mubr.f32.mxu0 0.0
      %2613 = vmatmul.mubr.f32.gmra.mrb[0].mxu0 %v2321
      %v2614 = vpop.f32.mrb[0].mxu0
      %v2615 = vadd.f32 %v2263, %v2614
      %v2616 = vpop.f32.mrb[0].mxu0
      %2617 = vmatprep.mubr.f32.mxu0 0.0
      %2618 = vmatmul.mubr.f32.gmra.mrb[0].mxu0 %v2324
      %v2619 = vpop.f32.mrb[0].mxu0
      %v2620 = vadd.f32 %v2263, %v2619
      %v2621 = vpop.f32.mrb[0].mxu0
      %2622 = vmatprep.mubr.f32.mxu0 0.0
      %2623 = vmatmul.mubr.f32.gmra.mrb[0].mxu0 %v2327
      %v2624 = vpop.f32.mrb[0].mxu0
      %v2625 = vadd.f32 %v2263, %v2624
      %v2626 = vpop.f32.mrb[0].mxu0
      %2627 = vmatprep.mubr.f32.mxu0 0.0
      %2628 = vmatmul.mubr.f32.gmra.mrb[0].mxu0 %v2330
      %v2629 = vpop.f32.mrb[0].mxu0
      %v2630 = vadd.f32 %v2263, %v2629
      %v2631 = vpop.f32.mrb[0].mxu0
      %2632 = vmatprep.mubr.f32.mxu0 0.0
      %2633 = vmatmul.mubr.f32.gmra.mrb[0].mxu0 %v2333
      %v2634 = vpop.f32.mrb[0].mxu0
      %v2635 = vadd.f32 %v2263, %v2634
      %v2636 = vpop.f32.mrb[0].mxu0
      %2637 = vmatprep.mubr.f32.mxu0 0.0
      %2638 = vmatmul.mubr.f32.gmra.mrb[0].mxu0 %v2336
      %v2639 = vpop.f32.mrb[0].mxu0
      %v2640 = vadd.f32 %v2263, %v2639
      %v2641 = vpop.f32.mrb[0].mxu0
      %2642 = vmatprep.mubr.f32.mxu0 0.0
      %2643 = vmatmul.mubr.f32.gmra.mrb[0].mxu0 %v2339
      %v2644 = vpop.f32.mrb[0].mxu0
      %v2645 = vadd.f32 %v2263, %v2644
      %v2646 = vpop.f32.mrb[0].mxu0
      %2647 = vmatprep.mubr.f32.mxu0 0.0
      %2648 = vmatmul.mubr.f32.gmra.mrb[0].mxu0 %v2342
      %v2649 = vpop.f32.mrb[0].mxu0
      %v2650 = vadd.f32 %v2263, %v2649
      %v2651 = vpop.f32.mrb[0].mxu0
      %2652 = vmatprep.mubr.f32.mxu0 0.0
      %2653 = vmatmul.mubr.f32.gmra.mrb[0].mxu0 %v2345
      %v2654 = vpop.f32.mrb[0].mxu0
      %v2655 = vadd.f32 %v2263, %v2654
      %v2656 = vpop.f32.mrb[0].mxu0
      %2657 = vmatprep.mubr.f32.mxu0 0.0
      %2658 = vmatmul.mubr.f32.gmra.mrb[0].mxu0 %v2348
      %v2659 = vpop.f32.mrb[0].mxu0
      %v2660 = vadd.f32 %v2263, %v2659
      %v2661 = vpop.f32.mrb[0].mxu0
      %2662 = vmatprep.mubr.f32.mxu0 0.0
      %2663 = vmatmul.mubr.f32.gmra.mrb[0].mxu0 %v2351
      %v2664 = vpop.f32.mrb[0].mxu0
      %v2665 = vadd.f32 %v2263, %v2664
      %v2666 = vpop.f32.mrb[0].mxu0
      %2667 = vmatprep.mubr.f32.mxu0 0.0
      %2668 = vmatmul.mubr.f32.gmra.mrb[0].mxu0 %v2354
      %v2669 = vpop.f32.mrb[0].mxu0
      %v2670 = vadd.f32 %v2263, %v2669
      %v2671 = vpop.f32.mrb[0].mxu0
      %2672 = vmatprep.mubr.f32.mxu0 0.0
      %2673 = vmatmul.mubr.f32.gmra.mrb[0].mxu0 %v2357
      %v2674 = vpop.f32.mrb[0].mxu0
      %v2675 = vadd.f32 %v2263, %v2674
      %v2676 = vpop.f32.mrb[0].mxu0
      %2677 = vmatprep.mubr.f32.mxu0 0.0
      %2678 = vmatmul.mubr.f32.gmra.mrb[0].mxu0 %v2360
      %v2679 = vpop.f32.mrb[0].mxu0
      %v2680 = vadd.f32 %v2263, %v2679
      %v2681 = vpop.f32.mrb[0].mxu0
      %2682 = vmatprep.mubr.f32.mxu0 0.0
      %2683 = vmatmul.mubr.f32.gmra.mrb[0].mxu0 %v2363
      %v2684 = vpop.f32.mrb[0].mxu0
      %v2685 = vadd.f32 %v2263, %v2684
      %v2686 = vpop.f32.mrb[0].mxu0
      %2687 = vmatprep.mubr.f32.mxu0 0.0
      %2688 = vmatmul.mubr.f32.gmra.mrb[0].mxu0 %v2366
      %v2689 = vpop.f32.mrb[0].mxu0
      %v2690 = vadd.f32 %v2263, %v2689
      %v2691 = vpop.f32.mrb[0].mxu0
      %2692 = vmatprep.mubr.f32.mxu0 0.0
      %2693 = vmatmul.mubr.f32.gmra.mrb[0].mxu0 %v2369
      %v2694 = vpop.f32.mrb[0].mxu0
      %v2695 = vadd.f32 %v2263, %v2694
      %v2696 = vpop.f32.mrb[0].mxu0
      %2697 = vmatprep.mubr.f32.mxu0 0.0
      %2698 = vmatmul.mubr.f32.gmra.mrb[0].mxu0 %v2372
      %v2699 = vpop.f32.mrb[0].mxu0
      %v2700 = vadd.f32 %v2263, %v2699
      %v2701 = vpop.f32.mrb[0].mxu0
      %2702 = vmatprep.mubr.f32.mxu0 0.0
      %2703 = vmatmul.mubr.f32.gmra.mrb[0].mxu0 %v2375
      %v2704 = vpop.f32.mrb[0].mxu0
      %v2705 = vadd.f32 %v2263, %v2704
      %v2706 = vpop.f32.mrb[0].mxu0
      %2707 = vmatprep.mubr.f32.mxu0 0.0
      %2708 = vmatmul.mubr.f32.gmra.mrb[0].mxu0 %v2378
      %v2709 = vpop.f32.mrb[0].mxu0
      %v2710 = vadd.f32 %v2263, %v2709
      %v2711 = vpop.f32.mrb[0].mxu0
      %2712 = vmatprep.mubr.f32.mxu0 0.0
      %2713 = vmatmul.mubr.f32.gmra.mrb[0].mxu0 %v2381
      %v2714 = vpop.f32.mrb[0].mxu0
      %v2715 = vadd.f32 %v2263, %v2714
      %v2716 = vpop.f32.mrb[0].mxu0
      %2717 = vmatprep.mubr.f32.mxu0 0.0
      %2718 = vmatmul.mubr.f32.gmra.mrb[0].mxu0 %v2384
      %v2719 = vpop.f32.mrb[0].mxu0
      %v2720 = vadd.f32 %v2263, %v2719
      %v2721 = vpop.f32.mrb[0].mxu0
      %2722 = vmatprep.mubr.f32.mxu0 0.0
      %2723 = vmatmul.mubr.f32.gmra.mrb[0].mxu0 %v2387
      %v2724 = vpop.f32.mrb[0].mxu0
      %v2725 = vadd.f32 %v2263, %v2724
      %v2726 = vpop.f32.mrb[0].mxu0
      %2727 = vmatprep.mubr.f32.mxu0 0.0
      %2728 = vmatmul.mubr.f32.gmra.mrb[0].mxu0 %v2390
      %v2729 = vpop.f32.mrb[0].mxu0
      %v2730 = vadd.f32 %v2263, %v2729
      %v2731 = vpop.f32.mrb[0].mxu0
      %2732 = vmatprep.mubr.f32.mxu0 0.0
      %2733 = vmatmul.mubr.f32.gmra.mrb[0].mxu0 %v2393
      %v2734 = vpop.f32.mrb[0].mxu0
      %v2735 = vadd.f32 %v2263, %v2734
      %v2736 = vpop.f32.mrb[0].mxu0
      %2737 = vmatprep.mubr.f32.mxu0 0.0
      %2738 = vmatmul.mubr.f32.gmra.mrb[0].mxu0 %v2396
      %v2739 = vpop.f32.mrb[0].mxu0
      %v2740 = vadd.f32 %v2263, %v2739
      %v2741 = vpop.f32.mrb[0].mxu0
      %2742 = vmatprep.mubr.f32.mxu0 0.0
      %2743 = vmatmul.mubr.f32.gmra.mrb[0].mxu0 %v2399
      %v2744 = vpop.f32.mrb[0].mxu0
      %v2745 = vadd.f32 %v2263, %v2744
      %v2746 = vpop.f32.mrb[0].mxu0
      %2747 = vmatprep.mubr.f32.mxu0 0.0
      %2748 = vmatmul.mubr.f32.gmra.mrb[0].mxu0 %v2402
      %v2749 = vpop.f32.mrb[0].mxu0
      %v2750 = vadd.f32 %v2263, %v2749
      %v2751 = vpop.f32.mrb[0].mxu0
      %2752 = vmatprep.mubr.f32.mxu0 0.0
      %2753 = vmatmul.mubr.f32.gmra.mrb[0].mxu0 %v2405
      %v2754 = vpop.f32.mrb[0].mxu0
      %v2755 = vadd.f32 %v2263, %v2754
      %v2756 = vpop.f32.mrb[0].mxu0
      %2757 = vmatprep.mubr.f32.mxu0 0.0
      %2758 = vmatmul.mubr.f32.gmra.mrb[0].mxu0 %v2408
      %v2759 = vpop.f32.mrb[0].mxu0
      %v2760 = vadd.f32 %v2263, %v2759
      %v2761 = vpop.f32.mrb[0].mxu0
      %2762 = vmatprep.mubr.f32.mxu0 0.0
      %2763 = vmatmul.mubr.f32.gmra.mrb[0].mxu0 %v2411
      %v2764 = vpop.f32.mrb[0].mxu0
      %v2765 = vadd.f32 %v2263, %v2764
      %v2766 = vpop.f32.mrb[0].mxu0
      %2767 = vmatprep.mubr.f32.mxu0 0.0
      %2768 = vmatmul.mubr.f32.gmra.mrb[0].mxu0 %v2414
      %v2769 = vpop.f32.mrb[0].mxu0
      %v2770 = vadd.f32 %v2263, %v2769
      %v2771 = vpop.f32.mrb[0].mxu0
      %2772 = vmatprep.mubr.f32.mxu0 0.0
      %2773 = vmatmul.mubr.f32.gmra.mrb[0].mxu0 %v2417
      %v2774 = vpop.f32.mrb[0].mxu0
      %v2775 = vadd.f32 %v2263, %v2774
      %v2776 = vpop.f32.mrb[0].mxu0
      %2777 = vmatprep.mubr.f32.mxu0 0.0
      %2778 = vmatmul.mubr.f32.gmra.mrb[0].mxu0 %v2420
      %v2779 = vpop.f32.mrb[0].mxu0
      %v2780 = vadd.f32 %v2263, %v2779
      %v2781 = vpop.f32.mrb[0].mxu0
      %2782 = vmatprep.mubr.f32.mxu0 0.0
      %2783 = vmatmul.mubr.f32.gmra.mrb[0].mxu0 %v2423
      %v2784 = vpop.f32.mrb[0].mxu0
      %v2785 = vadd.f32 %v2263, %v2784
      %v2786 = vpop.f32.mrb[0].mxu0
      %2787 = vmatprep.mubr.f32.mxu0 0.0
      %2788 = vmatmul.mubr.f32.gmra.mrb[0].mxu0 %v2426
      %v2789 = vpop.f32.mrb[0].mxu0
      %v2790 = vadd.f32 %v2263, %v2789
      %v2791 = vpop.f32.mrb[0].mxu0
      %2792 = vmatprep.mubr.f32.mxu0 0.0
      %2793 = vmatmul.mubr.f32.gmra.mrb[0].mxu0 %v2429
      %v2794 = vpop.f32.mrb[0].mxu0
      %v2795 = vadd.f32 %v2263, %v2794
      %v2796 = vpop.f32.mrb[0].mxu0
      %2797 = vmatprep.mubr.f32.mxu0 0.0
      %2798 = vmatmul.mubr.f32.gmra.mrb[0].mxu0 %v2432
      %v2799 = vpop.f32.mrb[0].mxu0
      %v2800 = vadd.f32 %v2263, %v2799
      %v2801 = vpop.f32.mrb[0].mxu0
      %2802 = vmatprep.mubr.f32.mxu0 0.0
      %2803 = vmatmul.mubr.f32.gmra.mrb[0].mxu0 %v2435
      %v2804 = vpop.f32.mrb[0].mxu0
      %v2805 = vadd.f32 %v2263, %v2804
      %v2806 = vpop.f32.mrb[0].mxu0
      %2807 = vmatprep.mubr.f32.mxu0 0.0
      %2808 = vmatmul.mubr.f32.gmra.mrb[0].mxu0 %v2438
      %v2809 = vpop.f32.mrb[0].mxu0
      %v2810 = vadd.f32 %v2263, %v2809
      %v2811 = vpop.f32.mrb[0].mxu0
      %2812 = vmatprep.mubr.f32.mxu0 0.0
      %2813 = vmatmul.mubr.f32.gmra.mrb[0].mxu0 %v2441
      %v2814 = vpop.f32.mrb[0].mxu0
      %v2815 = vadd.f32 %v2263, %v2814
      %v2816 = vpop.f32.mrb[0].mxu0
      %2817 = vmatprep.mubr.f32.mxu0 0.0
      %2818 = vmatmul.mubr.f32.gmra.mrb[0].mxu0 %v2444
      %v2819 = vpop.f32.mrb[0].mxu0
      %v2820 = vadd.f32 %v2263, %v2819
      %v2821 = vpop.f32.mrb[0].mxu0
      %2822 = vmatprep.mubr.f32.mxu0 0.0
      %2823 = vmatmul.mubr.f32.gmra.mrb[0].mxu0 %v2447
      %v2824 = vpop.f32.mrb[0].mxu0
      %v2825 = vadd.f32 %v2263, %v2824
      %v2826 = vpop.f32.mrb[0].mxu0
      %2827 = vmatprep.mubr.f32.mxu0 0.0
      %2828 = vmatmul.mubr.f32.gmra.mrb[0].mxu0 %v2450
      %v2829 = vpop.f32.mrb[0].mxu0
      %v2830 = vadd.f32 %v2263, %v2829
      %v2831 = vpop.f32.mrb[0].mxu0
      %2832 = vmatprep.mubr.f32.mxu0 0.0
      %2833 = vmatmul.mubr.f32.gmra.mrb[0].mxu0 %v2453
      %v2834 = vpop.f32.mrb[0].mxu0
      %v2835 = vadd.f32 %v2263, %v2834
      %v2836 = vpop.f32.mrb[0].mxu0
      %2837 = vmatprep.mubr.f32.mxu0 0.0
      %2838 = vmatmul.mubr.f32.gmra.mrb[0].mxu0 %v2456
      %v2839 = vpop.f32.mrb[0].mxu0
      %v2840 = vadd.f32 %v2263, %v2839
      %v2841 = vpop.f32.mrb[0].mxu0
      %2842 = vdwg.mxu0
      %v2843 = vxor.u32 %v2525, 2147483648
      %v2844 = vxor.u32 %v2530, 2147483648
      %v2845 = vxor.u32 %v2535, 2147483648
      %v2846 = vxor.u32 %v2540, 2147483648
      %v2847 = vxor.u32 %v2545, 2147483648
      %v2848 = vxor.u32 %v2550, 2147483648
      %v2849 = vxor.u32 %v2555, 2147483648
      %v2850 = vxor.u32 %v2560, 2147483648
      %v2851 = vxor.u32 %v2565, 2147483648
      %v2852 = vxor.u32 %v2570, 2147483648
      %v2853 = vxor.u32 %v2575, 2147483648
      %v2854 = vxor.u32 %v2580, 2147483648
      %v2855 = vxor.u32 %v2585, 2147483648
      %v2856 = vxor.u32 %v2590, 2147483648
      %v2857 = vxor.u32 %v2595, 2147483648
      %v2858 = vxor.u32 %v2600, 2147483648
      %v2859 = vxor.u32 %v2605, 2147483648
      %v2860 = vxor.u32 %v2610, 2147483648
      %v2861 = vxor.u32 %v2615, 2147483648
      %v2862 = vxor.u32 %v2620, 2147483648
      %v2863 = vxor.u32 %v2625, 2147483648
      %v2864 = vxor.u32 %v2630, 2147483648
      %v2865 = vxor.u32 %v2635, 2147483648
      %v2866 = vxor.u32 %v2640, 2147483648
      %v2867 = vxor.u32 %v2645, 2147483648
      %v2868 = vxor.u32 %v2650, 2147483648
      %v2869 = vxor.u32 %v2655, 2147483648
      %v2870 = vxor.u32 %v2660, 2147483648
      %v2871 = vxor.u32 %v2665, 2147483648
      %v2872 = vxor.u32 %v2670, 2147483648
      %v2873 = vxor.u32 %v2675, 2147483648
      %v2874 = vxor.u32 %v2680, 2147483648
      %v2875 = vxor.u32 %v2685, 2147483648
      %v2876 = vxor.u32 %v2690, 2147483648
      %v2877 = vxor.u32 %v2695, 2147483648
      %v2878 = vxor.u32 %v2700, 2147483648
      %v2879 = vxor.u32 %v2705, 2147483648
      %v2880 = vxor.u32 %v2710, 2147483648
      %v2881 = vxor.u32 %v2715, 2147483648
      %v2882 = vxor.u32 %v2720, 2147483648
      %v2883 = vxor.u32 %v2725, 2147483648
      %v2884 = vxor.u32 %v2730, 2147483648
      %v2885 = vxor.u32 %v2735, 2147483648
      %v2886 = vxor.u32 %v2740, 2147483648
      %v2887 = vxor.u32 %v2745, 2147483648
      %v2888 = vxor.u32 %v2750, 2147483648
      %v2889 = vxor.u32 %v2755, 2147483648
      %v2890 = vxor.u32 %v2760, 2147483648
      %v2891 = vxor.u32 %v2765, 2147483648
      %v2892 = vxor.u32 %v2770, 2147483648
      %v2893 = vxor.u32 %v2775, 2147483648
      %v2894 = vxor.u32 %v2780, 2147483648
      %v2895 = vxor.u32 %v2785, 2147483648
      %v2896 = vxor.u32 %v2790, 2147483648
      %v2897 = vxor.u32 %v2795, 2147483648
      %v2898 = vxor.u32 %v2800, 2147483648
      %v2899 = vxor.u32 %v2805, 2147483648
      %v2900 = vxor.u32 %v2810, 2147483648
      %v2901 = vxor.u32 %v2815, 2147483648
      %v2902 = vxor.u32 %v2820, 2147483648
      %v2903 = vxor.u32 %v2825, 2147483648
      %v2904 = vxor.u32 %v2830, 2147483648
      %v2905 = vxor.u32 %v2835, 2147483648
      %v2906 = vxor.u32 %v2840, 2147483648
      %v2907 = vmul.f32 %v2843, 1.442695
      %v2908 = vpow.pop %v2907
      %v2909 = vmul.f32 %v2844, 1.442695
      %v2910 = vpow.pop %v2909
      %v2911 = vmul.f32 %v2845, 1.442695
      %v2912 = vpow.pop %v2911
      %v2913 = vmul.f32 %v2846, 1.442695
      %v2914 = vpow.pop %v2913
      %v2915 = vmul.f32 %v2847, 1.442695
      %v2916 = vpow.pop %v2915
      %v2917 = vmul.f32 %v2848, 1.442695
      %v2918 = vpow.pop %v2917
      %v2919 = vmul.f32 %v2849, 1.442695
      %v2920 = vpow.pop %v2919
      %v2921 = vmul.f32 %v2850, 1.442695
      %v2922 = vpow.pop %v2921
      %v2923 = vmul.f32 %v2851, 1.442695
      %v2924 = vpow.pop %v2923
      %v2925 = vmul.f32 %v2852, 1.442695
      %v2926 = vpow.pop %v2925
      %v2927 = vmul.f32 %v2853, 1.442695
      %v2928 = vpow.pop %v2927
      %v2929 = vmul.f32 %v2854, 1.442695
      %v2930 = vpow.pop %v2929
      %v2931 = vmul.f32 %v2855, 1.442695
      %v2932 = vpow.pop %v2931
      %v2933 = vmul.f32 %v2856, 1.442695
      %v2934 = vpow.pop %v2933
      %v2935 = vmul.f32 %v2857, 1.442695
      %v2936 = vpow.pop %v2935
      %v2937 = vmul.f32 %v2858, 1.442695
      %v2938 = vpow.pop %v2937
      %v2939 = vmul.f32 %v2859, 1.442695
      %v2940 = vpow.pop %v2939
      %v2941 = vmul.f32 %v2860, 1.442695
      %v2942 = vpow.pop %v2941
      %v2943 = vmul.f32 %v2861, 1.442695
      %v2944 = vpow.pop %v2943
      %v2945 = vmul.f32 %v2862, 1.442695
      %v2946 = vpow.pop %v2945
      %v2947 = vmul.f32 %v2863, 1.442695
      %v2948 = vpow.pop %v2947
      %v2949 = vmul.f32 %v2864, 1.442695
      %v2950 = vpow.pop %v2949
      %v2951 = vmul.f32 %v2865, 1.442695
      %v2952 = vpow.pop %v2951
      %v2953 = vmul.f32 %v2866, 1.442695
      %v2954 = vpow.pop %v2953
      %v2955 = vmul.f32 %v2867, 1.442695
      %v2956 = vpow.pop %v2955
      %v2957 = vmul.f32 %v2868, 1.442695
      %v2958 = vpow.pop %v2957
      %v2959 = vmul.f32 %v2869, 1.442695
      %v2960 = vpow.pop %v2959
      %v2961 = vmul.f32 %v2870, 1.442695
      %v2962 = vpow.pop %v2961
      %v2963 = vmul.f32 %v2871, 1.442695
      %v2964 = vpow.pop %v2963
      %v2965 = vmul.f32 %v2872, 1.442695
      %v2966 = vpow.pop %v2965
      %v2967 = vmul.f32 %v2873, 1.442695
      %v2968 = vpow.pop %v2967
      %v2969 = vmul.f32 %v2874, 1.442695
      %v2970 = vpow.pop %v2969
      %v2971 = vmul.f32 %v2875, 1.442695
      %v2972 = vpow.pop %v2971
      %v2973 = vmul.f32 %v2876, 1.442695
      %v2974 = vpow.pop %v2973
      %v2975 = vmul.f32 %v2877, 1.442695
      %v2976 = vpow.pop %v2975
      %v2977 = vmul.f32 %v2878, 1.442695
      %v2978 = vpow.pop %v2977
      %v2979 = vmul.f32 %v2879, 1.442695
      %v2980 = vpow.pop %v2979
      %v2981 = vmul.f32 %v2880, 1.442695
      %v2982 = vpow.pop %v2981
      %v2983 = vmul.f32 %v2881, 1.442695
      %v2984 = vpow.pop %v2983
      %v2985 = vmul.f32 %v2882, 1.442695
      %v2986 = vpow.pop %v2985
      %v2987 = vmul.f32 %v2883, 1.442695
      %v2988 = vpow.pop %v2987
      %v2989 = vmul.f32 %v2884, 1.442695
      %v2990 = vpow.pop %v2989
      %v2991 = vmul.f32 %v2885, 1.442695
      %v2992 = vpow.pop %v2991
      %v2993 = vmul.f32 %v2886, 1.442695
      %v2994 = vpow.pop %v2993
      %v2995 = vmul.f32 %v2887, 1.442695
      %v2996 = vpow.pop %v2995
      %v2997 = vmul.f32 %v2888, 1.442695
      %v2998 = vpow.pop %v2997
      %v2999 = vmul.f32 %v2889, 1.442695
      %v3000 = vpow.pop %v2999
      %v3001 = vmul.f32 %v2890, 1.442695
      %v3002 = vpow.pop %v3001
      %v3003 = vmul.f32 %v2891, 1.442695
      %v3004 = vpow.pop %v3003
      %v3005 = vmul.f32 %v2892, 1.442695
      %v3006 = vpow.pop %v3005
      %v3007 = vmul.f32 %v2893, 1.442695
      %v3008 = vpow.pop %v3007
      %v3009 = vmul.f32 %v2894, 1.442695
      %v3010 = vpow.pop %v3009
      %v3011 = vmul.f32 %v2895, 1.442695
      %v3012 = vpow.pop %v3011
      %v3013 = vmul.f32 %v2896, 1.442695
      %v3014 = vpow.pop %v3013
      %v3015 = vmul.f32 %v2897, 1.442695
      %v3016 = vpow.pop %v3015
      %v3017 = vmul.f32 %v2898, 1.442695
      %v3018 = vpow.pop %v3017
      %v3019 = vmul.f32 %v2899, 1.442695
      %v3020 = vpow.pop %v3019
      %v3021 = vmul.f32 %v2900, 1.442695
      %v3022 = vpow.pop %v3021
      %v3023 = vmul.f32 %v2901, 1.442695
      %v3024 = vpow.pop %v3023
      %v3025 = vmul.f32 %v2902, 1.442695
      %v3026 = vpow.pop %v3025
      %v3027 = vmul.f32 %v2903, 1.442695
      %v3028 = vpow.pop %v3027
      %v3029 = vmul.f32 %v2904, 1.442695
      %v3030 = vpow.pop %v3029
      %v3031 = vmul.f32 %v2905, 1.442695
      %v3032 = vpow.pop %v3031
      %v3033 = vmul.f32 %v2906, 1.442695
      %v3034 = vpow.pop %v3033
      %v3035 = vadd.f32 %v2908, 1.0
      %v3036 = vadd.f32 %v2910, 1.0
      %v3037 = vadd.f32 %v2912, 1.0
      %v3038 = vadd.f32 %v2914, 1.0
      %v3039 = vadd.f32 %v2916, 1.0
      %v3040 = vadd.f32 %v2918, 1.0
      %v3041 = vadd.f32 %v2920, 1.0
      %v3042 = vadd.f32 %v2922, 1.0
      %v3043 = vadd.f32 %v2924, 1.0
      %v3044 = vadd.f32 %v2926, 1.0
      %v3045 = vadd.f32 %v2928, 1.0
      %v3046 = vadd.f32 %v2930, 1.0
      %v3047 = vadd.f32 %v2932, 1.0
      %v3048 = vadd.f32 %v2934, 1.0
      %v3049 = vadd.f32 %v2936, 1.0
      %v3050 = vadd.f32 %v2938, 1.0
      %v3051 = vadd.f32 %v2940, 1.0
      %v3052 = vadd.f32 %v2942, 1.0
      %v3053 = vadd.f32 %v2944, 1.0
      %v3054 = vadd.f32 %v2946, 1.0
      %v3055 = vadd.f32 %v2948, 1.0
      %v3056 = vadd.f32 %v2950, 1.0
      %v3057 = vadd.f32 %v2952, 1.0
      %v3058 = vadd.f32 %v2954, 1.0
      %v3059 = vadd.f32 %v2956, 1.0
      %v3060 = vadd.f32 %v2958, 1.0
      %v3061 = vadd.f32 %v2960, 1.0
      %v3062 = vadd.f32 %v2962, 1.0
      %v3063 = vadd.f32 %v2964, 1.0
      %v3064 = vadd.f32 %v2966, 1.0
      %v3065 = vadd.f32 %v2968, 1.0
      %v3066 = vadd.f32 %v2970, 1.0
      %v3067 = vadd.f32 %v2972, 1.0
      %v3068 = vadd.f32 %v2974, 1.0
      %v3069 = vadd.f32 %v2976, 1.0
      %v3070 = vadd.f32 %v2978, 1.0
      %v3071 = vadd.f32 %v2980, 1.0
      %v3072 = vadd.f32 %v2982, 1.0
      %v3073 = vadd.f32 %v2984, 1.0
      %v3074 = vadd.f32 %v2986, 1.0
      %v3075 = vadd.f32 %v2988, 1.0
      %v3076 = vadd.f32 %v2990, 1.0
      %v3077 = vadd.f32 %v2992, 1.0
      %v3078 = vadd.f32 %v2994, 1.0
      %v3079 = vadd.f32 %v2996, 1.0
      %v3080 = vadd.f32 %v2998, 1.0
      %v3081 = vadd.f32 %v3000, 1.0
      %v3082 = vadd.f32 %v3002, 1.0
      %v3083 = vadd.f32 %v3004, 1.0
      %v3084 = vadd.f32 %v3006, 1.0
      %v3085 = vadd.f32 %v3008, 1.0
      %v3086 = vadd.f32 %v3010, 1.0
      %v3087 = vadd.f32 %v3012, 1.0
      %v3088 = vadd.f32 %v3014, 1.0
      %v3089 = vadd.f32 %v3016, 1.0
      %v3090 = vadd.f32 %v3018, 1.0
      %v3091 = vadd.f32 %v3020, 1.0
      %v3092 = vadd.f32 %v3022, 1.0
      %v3093 = vadd.f32 %v3024, 1.0
      %v3094 = vadd.f32 %v3026, 1.0
      %v3095 = vadd.f32 %v3028, 1.0
      %v3096 = vadd.f32 %v3030, 1.0
      %v3097 = vadd.f32 %v3032, 1.0
      %v3098 = vadd.f32 %v3034, 1.0
      %v3099 = vrcp.pop %v3035
      %v3100 = vmul.f32 1.0, %v3099
      %v3101 = vrcp.pop %v3036
      %v3102 = vmul.f32 1.0, %v3101
      %v3103 = vrcp.pop %v3037
      %v3104 = vmul.f32 1.0, %v3103
      %v3105 = vrcp.pop %v3038
      %v3106 = vmul.f32 1.0, %v3105
      %v3107 = vrcp.pop %v3039
      %v3108 = vmul.f32 1.0, %v3107
      %v3109 = vrcp.pop %v3040
      %v3110 = vmul.f32 1.0, %v3109
      %v3111 = vrcp.pop %v3041
      %v3112 = vmul.f32 1.0, %v3111
      %v3113 = vrcp.pop %v3042
      %v3114 = vmul.f32 1.0, %v3113
      %v3115 = vrcp.pop %v3043
      %v3116 = vmul.f32 1.0, %v3115
      %v3117 = vrcp.pop %v3044
      %v3118 = vmul.f32 1.0, %v3117
      %v3119 = vrcp.pop %v3045
      %v3120 = vmul.f32 1.0, %v3119
      %v3121 = vrcp.pop %v3046
      %v3122 = vmul.f32 1.0, %v3121
      %v3123 = vrcp.pop %v3047
      %v3124 = vmul.f32 1.0, %v3123
      %v3125 = vrcp.pop %v3048
      %v3126 = vmul.f32 1.0, %v3125
      %v3127 = vrcp.pop %v3049
      %v3128 = vmul.f32 1.0, %v3127
      %v3129 = vrcp.pop %v3050
      %v3130 = vmul.f32 1.0, %v3129
      %v3131 = vrcp.pop %v3051
      %v3132 = vmul.f32 1.0, %v3131
      %v3133 = vrcp.pop %v3052
      %v3134 = vmul.f32 1.0, %v3133
      %v3135 = vrcp.pop %v3053
      %v3136 = vmul.f32 1.0, %v3135
      %v3137 = vrcp.pop %v3054
      %v3138 = vmul.f32 1.0, %v3137
      %v3139 = vrcp.pop %v3055
      %v3140 = vmul.f32 1.0, %v3139
      %v3141 = vrcp.pop %v3056
      %v3142 = vmul.f32 1.0, %v3141
      %v3143 = vrcp.pop %v3057
      %v3144 = vmul.f32 1.0, %v3143
      %v3145 = vrcp.pop %v3058
      %v3146 = vmul.f32 1.0, %v3145
      %v3147 = vrcp.pop %v3059
      %v3148 = vmul.f32 1.0, %v3147
      %v3149 = vrcp.pop %v3060
      %v3150 = vmul.f32 1.0, %v3149
      %v3151 = vrcp.pop %v3061
      %v3152 = vmul.f32 1.0, %v3151
      %v3153 = vrcp.pop %v3062
      %v3154 = vmul.f32 1.0, %v3153
      %v3155 = vrcp.pop %v3063
      %v3156 = vmul.f32 1.0, %v3155
      %v3157 = vrcp.pop %v3064
      %v3158 = vmul.f32 1.0, %v3157
      %v3159 = vrcp.pop %v3065
      %v3160 = vmul.f32 1.0, %v3159
      %v3161 = vrcp.pop %v3066
      %v3162 = vmul.f32 1.0, %v3161
      %v3163 = vrcp.pop %v3067
      %v3164 = vmul.f32 1.0, %v3163
      %v3165 = vrcp.pop %v3068
      %v3166 = vmul.f32 1.0, %v3165
      %v3167 = vrcp.pop %v3069
      %v3168 = vmul.f32 1.0, %v3167
      %v3169 = vrcp.pop %v3070
      %v3170 = vmul.f32 1.0, %v3169
      %v3171 = vrcp.pop %v3071
      %v3172 = vmul.f32 1.0, %v3171
      %v3173 = vrcp.pop %v3072
      %v3174 = vmul.f32 1.0, %v3173
      %v3175 = vrcp.pop %v3073
      %v3176 = vmul.f32 1.0, %v3175
      %v3177 = vrcp.pop %v3074
      %v3178 = vmul.f32 1.0, %v3177
      %v3179 = vrcp.pop %v3075
      %v3180 = vmul.f32 1.0, %v3179
      %v3181 = vrcp.pop %v3076
      %v3182 = vmul.f32 1.0, %v3181
      %v3183 = vrcp.pop %v3077
      %v3184 = vmul.f32 1.0, %v3183
      %v3185 = vrcp.pop %v3078
      %v3186 = vmul.f32 1.0, %v3185
      %v3187 = vrcp.pop %v3079
      %v3188 = vmul.f32 1.0, %v3187
      %v3189 = vrcp.pop %v3080
      %v3190 = vmul.f32 1.0, %v3189
      %v3191 = vrcp.pop %v3081
      %v3192 = vmul.f32 1.0, %v3191
      %v3193 = vrcp.pop %v3082
      %v3194 = vmul.f32 1.0, %v3193
      %v3195 = vrcp.pop %v3083
      %v3196 = vmul.f32 1.0, %v3195
      %v3197 = vrcp.pop %v3084
      %v3198 = vmul.f32 1.0, %v3197
      %v3199 = vrcp.pop %v3085
      %v3200 = vmul.f32 1.0, %v3199
      %v3201 = vrcp.pop %v3086
      %v3202 = vmul.f32 1.0, %v3201
      %v3203 = vrcp.pop %v3087
      %v3204 = vmul.f32 1.0, %v3203
      %v3205 = vrcp.pop %v3088
      %v3206 = vmul.f32 1.0, %v3205
      %v3207 = vrcp.pop %v3089
      %v3208 = vmul.f32 1.0, %v3207
      %v3209 = vrcp.pop %v3090
      %v3210 = vmul.f32 1.0, %v3209
      %v3211 = vrcp.pop %v3091
      %v3212 = vmul.f32 1.0, %v3211
      %v3213 = vrcp.pop %v3092
      %v3214 = vmul.f32 1.0, %v3213
      %v3215 = vrcp.pop %v3093
      %v3216 = vmul.f32 1.0, %v3215
      %v3217 = vrcp.pop %v3094
      %v3218 = vmul.f32 1.0, %v3217
      %v3219 = vrcp.pop %v3095
      %v3220 = vmul.f32 1.0, %v3219
      %v3221 = vrcp.pop %v3096
      %v3222 = vmul.f32 1.0, %v3221
      %v3223 = vrcp.pop %v3097
      %v3224 = vmul.f32 1.0, %v3223
      %v3225 = vrcp.pop %v3098
      %v3226 = vmul.f32 1.0, %v3225
      %v3227 = vld [vmem:[%s7] sm:$0xff]
      %v3228 = vld [vmem:[%s7 + $0x8] sm:$0xff]
      %v3229 = vld [vmem:[%s7 + $0x10] sm:$0xff]
      %v3230 = vld [vmem:[%s7 + $0x18] sm:$0xff]
      %v3231 = vld [vmem:[%s7 + $0x20] sm:$0xff]
      %v3232 = vld [vmem:[%s7 + $0x28] sm:$0xff]
      %v3233 = vld [vmem:[%s7 + $0x30] sm:$0xff]
      %v3234 = vld [vmem:[%s7 + $0x38] sm:$0xff]
      %v3235 = vld [vmem:[%s7 + $0x40] sm:$0xff]
      %v3236 = vld [vmem:[%s7 + $0x48] sm:$0xff]
      %v3237 = vld [vmem:[%s7 + $0x50] sm:$0xff]
      %v3238 = vld [vmem:[%s7 + $0x58] sm:$0xff]
      %v3239 = vld [vmem:[%s7 + $0x60] sm:$0xff]
      %v3240 = vld [vmem:[%s7 + $0x68] sm:$0xff]
      %v3241 = vld [vmem:[%s7 + $0x70] sm:$0xff]
      %v3242 = vld [vmem:[%s7 + $0x78] sm:$0xff]
      %v3243 = vld [vmem:[%s8] sm:$0x3]
      %v3245 = vlaneseq
      %v3246 = vshrl.u32 %v3245, 7
      %v3247 = vsub.s32 0, %v3246
      %v3248 = vrot.slane %v3243, %v3247
      %v3249 = vlaneseq
      %v3250 = vshrl.u32 %v3249, 7
      %v3251 = vsub.s32 1, %v3250
      %v3252 = vrot.slane %v3243, %v3251
      %v3256 = vsel %vm1292, %v3100, 0
      %v3259 = vsel %vm1292, %v3102, 0
      %v3262 = vsel %vm1292, %v3104, 0
      %v3265 = vsel %vm1292, %v3106, 0
      %v3268 = vsel %vm1292, %v3108, 0
      %v3271 = vsel %vm1292, %v3110, 0
      %v3274 = vsel %vm1292, %v3112, 0
      %v3277 = vsel %vm1292, %v3114, 0
      %v3280 = vsel %vm1292, %v3116, 0
      %v3283 = vsel %vm1292, %v3118, 0
      %v3286 = vsel %vm1292, %v3120, 0
      %v3289 = vsel %vm1292, %v3122, 0
      %v3292 = vsel %vm1292, %v3124, 0
      %v3295 = vsel %vm1292, %v3126, 0
      %v3298 = vsel %vm1292, %v3128, 0
      %v3301 = vsel %vm1292, %v3130, 0
      %v3304 = vsel %vm1292, %v3132, 0
      %v3307 = vsel %vm1292, %v3134, 0
      %v3310 = vsel %vm1292, %v3136, 0
      %v3313 = vsel %vm1292, %v3138, 0
      %v3316 = vsel %vm1292, %v3140, 0
      %v3319 = vsel %vm1292, %v3142, 0
      %v3322 = vsel %vm1292, %v3144, 0
      %v3325 = vsel %vm1292, %v3146, 0
      %v3328 = vsel %vm1292, %v3148, 0
      %v3331 = vsel %vm1292, %v3150, 0
      %v3334 = vsel %vm1292, %v3152, 0
      %v3337 = vsel %vm1292, %v3154, 0
      %v3340 = vsel %vm1292, %v3156, 0
      %v3343 = vsel %vm1292, %v3158, 0
      %v3346 = vsel %vm1292, %v3160, 0
      %v3349 = vsel %vm1292, %v3162, 0
      %v3352 = vsel %vm1292, %v3164, 0
      %v3355 = vsel %vm1292, %v3166, 0
      %v3358 = vsel %vm1292, %v3168, 0
      %v3361 = vsel %vm1292, %v3170, 0
      %v3364 = vsel %vm1292, %v3172, 0
      %v3367 = vsel %vm1292, %v3174, 0
      %v3370 = vsel %vm1292, %v3176, 0
      %v3373 = vsel %vm1292, %v3178, 0
      %v3376 = vsel %vm1292, %v3180, 0
      %v3379 = vsel %vm1292, %v3182, 0
      %v3382 = vsel %vm1292, %v3184, 0
      %v3385 = vsel %vm1292, %v3186, 0
      %v3388 = vsel %vm1292, %v3188, 0
      %v3391 = vsel %vm1292, %v3190, 0
      %v3394 = vsel %vm1292, %v3192, 0
      %v3397 = vsel %vm1292, %v3194, 0
      %v3400 = vsel %vm1292, %v3196, 0
      %v3403 = vsel %vm1292, %v3198, 0
      %v3406 = vsel %vm1292, %v3200, 0
      %v3409 = vsel %vm1292, %v3202, 0
      %v3412 = vsel %vm1292, %v3204, 0
      %v3415 = vsel %vm1292, %v3206, 0
      %v3418 = vsel %vm1292, %v3208, 0
      %v3421 = vsel %vm1292, %v3210, 0
      %v3424 = vsel %vm1292, %v3212, 0
      %v3427 = vsel %vm1292, %v3214, 0
      %v3430 = vsel %vm1292, %v3216, 0
      %v3433 = vsel %vm1292, %v3218, 0
      %v3436 = vsel %vm1292, %v3220, 0
      %v3439 = vsel %vm1292, %v3222, 0
      %v3442 = vsel %vm1292, %v3224, 0
      %v3445 = vsel %vm1292, %v3226, 0
      %3447 = vmatprep.subr.mxu0 %v3228
      %3448 = vmatpush1.msra.mxu0 %v3227
      %3449 = vmatprep.subr.mxu0 %v3230
      %3450 = vmatpush1.msra.mxu0 %v3229
      %3451 = vmatprep.subr.mxu0 %v3232
      %3452 = vmatpush1.msra.mxu0 %v3231
      %3453 = vmatprep.subr.mxu0 %v3234
      %3454 = vmatpush1.msra.mxu0 %v3233
      %3455 = vmatprep.subr.mxu0 %v3236
      %3456 = vmatpush1.msra.mxu0 %v3235
      %3457 = vmatprep.subr.mxu0 %v3238
      %3458 = vmatpush1.msra.mxu0 %v3237
      %3459 = vmatprep.subr.mxu0 %v3240
      %3460 = vmatpush1.msra.mxu0 %v3239
      %3461 = vmatprep.subr.mxu0 %v3242
      %3462 = vmatpush1.msra.mxu0 %v3241
      %3463 = vmatprep.subr.mxu0 0.0
      %3464 = vmatpush1.msra.mxu0 0.0
      %3465 = vmatprep.subr.mxu0 0.0
      %3466 = vmatpush1.msra.mxu0 0.0
      %3467 = vmatprep.subr.mxu0 0.0
      %3468 = vmatpush1.msra.mxu0 0.0
      %3469 = vmatprep.subr.mxu0 0.0
      %3470 = vmatpush1.msra.mxu0 0.0
      %3471 = vmatprep.subr.mxu0 0.0
      %3472 = vmatpush1.msra.mxu0 0.0
      %3473 = vmatprep.subr.mxu0 0.0
      %3474 = vmatpush1.msra.mxu0 0.0
      %3475 = vmatprep.subr.mxu0 0.0
      %3476 = vmatpush1.msra.mxu0 0.0
      %3477 = vmatprep.subr.mxu0 0.0
      %3478 = vmatpush1.msra.mxu0 0.0
      %3479 = vmatprep.subr.mxu0 0.0
      %3480 = vmatpush1.msra.mxu0 0.0
      %3481 = vmatprep.subr.mxu0 0.0
      %3482 = vmatpush1.msra.mxu0 0.0
      %3483 = vmatprep.subr.mxu0 0.0
      %3484 = vmatpush1.msra.mxu0 0.0
      %3485 = vmatprep.subr.mxu0 0.0
      %3486 = vmatpush1.msra.mxu0 0.0
      %3487 = vmatprep.subr.mxu0 0.0
      %3488 = vmatpush1.msra.mxu0 0.0
      %3489 = vmatprep.subr.mxu0 0.0
      %3490 = vmatpush1.msra.mxu0 0.0
      %3491 = vmatprep.subr.mxu0 0.0
      %3492 = vmatpush1.msra.mxu0 0.0
      %3493 = vmatprep.subr.mxu0 0.0
      %3494 = vmatpush1.msra.mxu0 0.0
      %3495 = vmatprep.subr.mxu0 0.0
      %3496 = vmatpush1.msra.mxu0 0.0
      %3497 = vmatprep.subr.mxu0 0.0
      %3498 = vmatpush1.msra.mxu0 0.0
      %3499 = vmatprep.subr.mxu0 0.0
      %3500 = vmatpush1.msra.mxu0 0.0
      %3501 = vmatprep.subr.mxu0 0.0
      %3502 = vmatpush1.msra.mxu0 0.0
      %3503 = vmatprep.subr.mxu0 0.0
      %3504 = vmatpush1.msra.mxu0 0.0
      %3505 = vmatprep.subr.mxu0 0.0
      %3506 = vmatpush1.msra.mxu0 0.0
      %3507 = vmatprep.subr.mxu0 0.0
      %3508 = vmatpush1.msra.mxu0 0.0
      %3509 = vmatprep.subr.mxu0 0.0
      %3510 = vmatpush1.msra.mxu0 0.0
      %3511 = vmatprep.mubr.f32.mxu0 0.0
      %3512 = vmatmul.mubr.f32.gmra.mrb[0].mxu0 %v3256
      %v3513 = vpop.f32.mrb[0].mxu0
      %v3514 = vadd.f32 %v3248, %v3513
      %v3515 = vpop.f32.mrb[0].mxu0
      %v3516 = vadd.f32 %v3252, %v3515
      %3517 = vmatprep.mubr.f32.mxu0 0.0
      %3518 = vmatmul.mubr.f32.gmra.mrb[0].mxu0 %v3259
      %v3519 = vpop.f32.mrb[0].mxu0
      %v3520 = vadd.f32 %v3248, %v3519
      %v3521 = vpop.f32.mrb[0].mxu0
      %v3522 = vadd.f32 %v3252, %v3521
      %3523 = vmatprep.mubr.f32.mxu0 0.0
      %3524 = vmatmul.mubr.f32.gmra.mrb[0].mxu0 %v3262
      %v3525 = vpop.f32.mrb[0].mxu0
      %v3526 = vadd.f32 %v3248, %v3525
      %v3527 = vpop.f32.mrb[0].mxu0
      %v3528 = vadd.f32 %v3252, %v3527
      %3529 = vmatprep.mubr.f32.mxu0 0.0
      %3530 = vmatmul.mubr.f32.gmra.mrb[0].mxu0 %v3265
      %v3531 = vpop.f32.mrb[0].mxu0
      %v3532 = vadd.f32 %v3248, %v3531
      %v3533 = vpop.f32.mrb[0].mxu0
      %v3534 = vadd.f32 %v3252, %v3533
      %3535 = vmatprep.mubr.f32.mxu0 0.0
      %3536 = vmatmul.mubr.f32.gmra.mrb[0].mxu0 %v3268
      %v3537 = vpop.f32.mrb[0].mxu0
      %v3538 = vadd.f32 %v3248, %v3537
      %v3539 = vpop.f32.mrb[0].mxu0
      %v3540 = vadd.f32 %v3252, %v3539
      %3541 = vmatprep.mubr.f32.mxu0 0.0
      %3542 = vmatmul.mubr.f32.gmra.mrb[0].mxu0 %v3271
      %v3543 = vpop.f32.mrb[0].mxu0
      %v3544 = vadd.f32 %v3248, %v3543
      %v3545 = vpop.f32.mrb[0].mxu0
      %v3546 = vadd.f32 %v3252, %v3545
      %3547 = vmatprep.mubr.f32.mxu0 0.0
      %3548 = vmatmul.mubr.f32.gmra.mrb[0].mxu0 %v3274
      %v3549 = vpop.f32.mrb[0].mxu0
      %v3550 = vadd.f32 %v3248, %v3549
      %v3551 = vpop.f32.mrb[0].mxu0
      %v3552 = vadd.f32 %v3252, %v3551
      %3553 = vmatprep.mubr.f32.mxu0 0.0
      %3554 = vmatmul.mubr.f32.gmra.mrb[0].mxu0 %v3277
      %v3555 = vpop.f32.mrb[0].mxu0
      %v3556 = vadd.f32 %v3248, %v3555
      %v3557 = vpop.f32.mrb[0].mxu0
      %v3558 = vadd.f32 %v3252, %v3557
      %3559 = vmatprep.mubr.f32.mxu0 0.0
      %3560 = vmatmul.mubr.f32.gmra.mrb[0].mxu0 %v3280
      %v3561 = vpop.f32.mrb[0].mxu0
      %v3562 = vadd.f32 %v3248, %v3561
      %v3563 = vpop.f32.mrb[0].mxu0
      %v3564 = vadd.f32 %v3252, %v3563
      %3565 = vmatprep.mubr.f32.mxu0 0.0
      %3566 = vmatmul.mubr.f32.gmra.mrb[0].mxu0 %v3283
      %v3567 = vpop.f32.mrb[0].mxu0
      %v3568 = vadd.f32 %v3248, %v3567
      %v3569 = vpop.f32.mrb[0].mxu0
      %v3570 = vadd.f32 %v3252, %v3569
      %3571 = vmatprep.mubr.f32.mxu0 0.0
      %3572 = vmatmul.mubr.f32.gmra.mrb[0].mxu0 %v3286
      %v3573 = vpop.f32.mrb[0].mxu0
      %v3574 = vadd.f32 %v3248, %v3573
      %v3575 = vpop.f32.mrb[0].mxu0
      %v3576 = vadd.f32 %v3252, %v3575
      %3577 = vmatprep.mubr.f32.mxu0 0.0
      %3578 = vmatmul.mubr.f32.gmra.mrb[0].mxu0 %v3289
      %v3579 = vpop.f32.mrb[0].mxu0
      %v3580 = vadd.f32 %v3248, %v3579
      %v3581 = vpop.f32.mrb[0].mxu0
      %v3582 = vadd.f32 %v3252, %v3581
      %3583 = vmatprep.mubr.f32.mxu0 0.0
      %3584 = vmatmul.mubr.f32.gmra.mrb[0].mxu0 %v3292
      %v3585 = vpop.f32.mrb[0].mxu0
      %v3586 = vadd.f32 %v3248, %v3585
      %v3587 = vpop.f32.mrb[0].mxu0
      %v3588 = vadd.f32 %v3252, %v3587
      %3589 = vmatprep.mubr.f32.mxu0 0.0
      %3590 = vmatmul.mubr.f32.gmra.mrb[0].mxu0 %v3295
      %v3591 = vpop.f32.mrb[0].mxu0
      %v3592 = vadd.f32 %v3248, %v3591
      %v3593 = vpop.f32.mrb[0].mxu0
      %v3594 = vadd.f32 %v3252, %v3593
      %3595 = vmatprep.mubr.f32.mxu0 0.0
      %3596 = vmatmul.mubr.f32.gmra.mrb[0].mxu0 %v3298
      %v3597 = vpop.f32.mrb[0].mxu0
      %v3598 = vadd.f32 %v3248, %v3597
      %v3599 = vpop.f32.mrb[0].mxu0
      %v3600 = vadd.f32 %v3252, %v3599
      %3601 = vmatprep.mubr.f32.mxu0 0.0
      %3602 = vmatmul.mubr.f32.gmra.mrb[0].mxu0 %v3301
      %v3603 = vpop.f32.mrb[0].mxu0
      %v3604 = vadd.f32 %v3248, %v3603
      %v3605 = vpop.f32.mrb[0].mxu0
      %v3606 = vadd.f32 %v3252, %v3605
      %3607 = vmatprep.mubr.f32.mxu0 0.0
      %3608 = vmatmul.mubr.f32.gmra.mrb[0].mxu0 %v3304
      %v3609 = vpop.f32.mrb[0].mxu0
      %v3610 = vadd.f32 %v3248, %v3609
      %v3611 = vpop.f32.mrb[0].mxu0
      %v3612 = vadd.f32 %v3252, %v3611
      %3613 = vmatprep.mubr.f32.mxu0 0.0
      %3614 = vmatmul.mubr.f32.gmra.mrb[0].mxu0 %v3307
      %v3615 = vpop.f32.mrb[0].mxu0
      %v3616 = vadd.f32 %v3248, %v3615
      %v3617 = vpop.f32.mrb[0].mxu0
      %v3618 = vadd.f32 %v3252, %v3617
      %3619 = vmatprep.mubr.f32.mxu0 0.0
      %3620 = vmatmul.mubr.f32.gmra.mrb[0].mxu0 %v3310
      %v3621 = vpop.f32.mrb[0].mxu0
      %v3622 = vadd.f32 %v3248, %v3621
      %v3623 = vpop.f32.mrb[0].mxu0
      %v3624 = vadd.f32 %v3252, %v3623
      %3625 = vmatprep.mubr.f32.mxu0 0.0
      %3626 = vmatmul.mubr.f32.gmra.mrb[0].mxu0 %v3313
      %v3627 = vpop.f32.mrb[0].mxu0
      %v3628 = vadd.f32 %v3248, %v3627
      %v3629 = vpop.f32.mrb[0].mxu0
      %v3630 = vadd.f32 %v3252, %v3629
      %3631 = vmatprep.mubr.f32.mxu0 0.0
      %3632 = vmatmul.mubr.f32.gmra.mrb[0].mxu0 %v3316
      %v3633 = vpop.f32.mrb[0].mxu0
      %v3634 = vadd.f32 %v3248, %v3633
      %v3635 = vpop.f32.mrb[0].mxu0
      %v3636 = vadd.f32 %v3252, %v3635
      %3637 = vmatprep.mubr.f32.mxu0 0.0
      %3638 = vmatmul.mubr.f32.gmra.mrb[0].mxu0 %v3319
      %v3639 = vpop.f32.mrb[0].mxu0
      %v3640 = vadd.f32 %v3248, %v3639
      %v3641 = vpop.f32.mrb[0].mxu0
      %v3642 = vadd.f32 %v3252, %v3641
      %3643 = vmatprep.mubr.f32.mxu0 0.0
      %3644 = vmatmul.mubr.f32.gmra.mrb[0].mxu0 %v3322
      %v3645 = vpop.f32.mrb[0].mxu0
      %v3646 = vadd.f32 %v3248, %v3645
      %v3647 = vpop.f32.mrb[0].mxu0
      %v3648 = vadd.f32 %v3252, %v3647
      %3649 = vmatprep.mubr.f32.mxu0 0.0
      %3650 = vmatmul.mubr.f32.gmra.mrb[0].mxu0 %v3325
      %v3651 = vpop.f32.mrb[0].mxu0
      %v3652 = vadd.f32 %v3248, %v3651
      %v3653 = vpop.f32.mrb[0].mxu0
      %v3654 = vadd.f32 %v3252, %v3653
      %3655 = vmatprep.mubr.f32.mxu0 0.0
      %3656 = vmatmul.mubr.f32.gmra.mrb[0].mxu0 %v3328
      %v3657 = vpop.f32.mrb[0].mxu0
      %v3658 = vadd.f32 %v3248, %v3657
      %v3659 = vpop.f32.mrb[0].mxu0
      %v3660 = vadd.f32 %v3252, %v3659
      %3661 = vmatprep.mubr.f32.mxu0 0.0
      %3662 = vmatmul.mubr.f32.gmra.mrb[0].mxu0 %v3331
      %v3663 = vpop.f32.mrb[0].mxu0
      %v3664 = vadd.f32 %v3248, %v3663
      %v3665 = vpop.f32.mrb[0].mxu0
      %v3666 = vadd.f32 %v3252, %v3665
      %3667 = vmatprep.mubr.f32.mxu0 0.0
      %3668 = vmatmul.mubr.f32.gmra.mrb[0].mxu0 %v3334
      %v3669 = vpop.f32.mrb[0].mxu0
      %v3670 = vadd.f32 %v3248, %v3669
      %v3671 = vpop.f32.mrb[0].mxu0
      %v3672 = vadd.f32 %v3252, %v3671
      %3673 = vmatprep.mubr.f32.mxu0 0.0
      %3674 = vmatmul.mubr.f32.gmra.mrb[0].mxu0 %v3337
      %v3675 = vpop.f32.mrb[0].mxu0
      %v3676 = vadd.f32 %v3248, %v3675
      %v3677 = vpop.f32.mrb[0].mxu0
      %v3678 = vadd.f32 %v3252, %v3677
      %3679 = vmatprep.mubr.f32.mxu0 0.0
      %3680 = vmatmul.mubr.f32.gmra.mrb[0].mxu0 %v3340
      %v3681 = vpop.f32.mrb[0].mxu0
      %v3682 = vadd.f32 %v3248, %v3681
      %v3683 = vpop.f32.mrb[0].mxu0
      %v3684 = vadd.f32 %v3252, %v3683
      %3685 = vmatprep.mubr.f32.mxu0 0.0
      %3686 = vmatmul.mubr.f32.gmra.mrb[0].mxu0 %v3343
      %v3687 = vpop.f32.mrb[0].mxu0
      %v3688 = vadd.f32 %v3248, %v3687
      %v3689 = vpop.f32.mrb[0].mxu0
      %v3690 = vadd.f32 %v3252, %v3689
      %3691 = vmatprep.mubr.f32.mxu0 0.0
      %3692 = vmatmul.mubr.f32.gmra.mrb[0].mxu0 %v3346
      %v3693 = vpop.f32.mrb[0].mxu0
      %v3694 = vadd.f32 %v3248, %v3693
      %v3695 = vpop.f32.mrb[0].mxu0
      %v3696 = vadd.f32 %v3252, %v3695
      %3697 = vmatprep.mubr.f32.mxu0 0.0
      %3698 = vmatmul.mubr.f32.gmra.mrb[0].mxu0 %v3349
      %v3699 = vpop.f32.mrb[0].mxu0
      %v3700 = vadd.f32 %v3248, %v3699
      %v3701 = vpop.f32.mrb[0].mxu0
      %v3702 = vadd.f32 %v3252, %v3701
      %3703 = vmatprep.mubr.f32.mxu0 0.0
      %3704 = vmatmul.mubr.f32.gmra.mrb[0].mxu0 %v3352
      %v3705 = vpop.f32.mrb[0].mxu0
      %v3706 = vadd.f32 %v3248, %v3705
      %v3707 = vpop.f32.mrb[0].mxu0
      %v3708 = vadd.f32 %v3252, %v3707
      %3709 = vmatprep.mubr.f32.mxu0 0.0
      %3710 = vmatmul.mubr.f32.gmra.mrb[0].mxu0 %v3355
      %v3711 = vpop.f32.mrb[0].mxu0
      %v3712 = vadd.f32 %v3248, %v3711
      %v3713 = vpop.f32.mrb[0].mxu0
      %v3714 = vadd.f32 %v3252, %v3713
      %3715 = vmatprep.mubr.f32.mxu0 0.0
      %3716 = vmatmul.mubr.f32.gmra.mrb[0].mxu0 %v3358
      %v3717 = vpop.f32.mrb[0].mxu0
      %v3718 = vadd.f32 %v3248, %v3717
      %v3719 = vpop.f32.mrb[0].mxu0
      %v3720 = vadd.f32 %v3252, %v3719
      %3721 = vmatprep.mubr.f32.mxu0 0.0
      %3722 = vmatmul.mubr.f32.gmra.mrb[0].mxu0 %v3361
      %v3723 = vpop.f32.mrb[0].mxu0
      %v3724 = vadd.f32 %v3248, %v3723
      %v3725 = vpop.f32.mrb[0].mxu0
      %v3726 = vadd.f32 %v3252, %v3725
      %3727 = vmatprep.mubr.f32.mxu0 0.0
      %3728 = vmatmul.mubr.f32.gmra.mrb[0].mxu0 %v3364
      %v3729 = vpop.f32.mrb[0].mxu0
      %v3730 = vadd.f32 %v3248, %v3729
      %v3731 = vpop.f32.mrb[0].mxu0
      %v3732 = vadd.f32 %v3252, %v3731
      %3733 = vmatprep.mubr.f32.mxu0 0.0
      %3734 = vmatmul.mubr.f32.gmra.mrb[0].mxu0 %v3367
      %v3735 = vpop.f32.mrb[0].mxu0
      %v3736 = vadd.f32 %v3248, %v3735
      %v3737 = vpop.f32.mrb[0].mxu0
      %v3738 = vadd.f32 %v3252, %v3737
      %3739 = vmatprep.mubr.f32.mxu0 0.0
      %3740 = vmatmul.mubr.f32.gmra.mrb[0].mxu0 %v3370
      %v3741 = vpop.f32.mrb[0].mxu0
      %v3742 = vadd.f32 %v3248, %v3741
      %v3743 = vpop.f32.mrb[0].mxu0
      %v3744 = vadd.f32 %v3252, %v3743
      %3745 = vmatprep.mubr.f32.mxu0 0.0
      %3746 = vmatmul.mubr.f32.gmra.mrb[0].mxu0 %v3373
      %v3747 = vpop.f32.mrb[0].mxu0
      %v3748 = vadd.f32 %v3248, %v3747
      %v3749 = vpop.f32.mrb[0].mxu0
      %v3750 = vadd.f32 %v3252, %v3749
      %3751 = vmatprep.mubr.f32.mxu0 0.0
      %3752 = vmatmul.mubr.f32.gmra.mrb[0].mxu0 %v3376
      %v3753 = vpop.f32.mrb[0].mxu0
      %v3754 = vadd.f32 %v3248, %v3753
      %v3755 = vpop.f32.mrb[0].mxu0
      %v3756 = vadd.f32 %v3252, %v3755
      %3757 = vmatprep.mubr.f32.mxu0 0.0
      %3758 = vmatmul.mubr.f32.gmra.mrb[0].mxu0 %v3379
      %v3759 = vpop.f32.mrb[0].mxu0
      %v3760 = vadd.f32 %v3248, %v3759
      %v3761 = vpop.f32.mrb[0].mxu0
      %v3762 = vadd.f32 %v3252, %v3761
      %3763 = vmatprep.mubr.f32.mxu0 0.0
      %3764 = vmatmul.mubr.f32.gmra.mrb[0].mxu0 %v3382
      %v3765 = vpop.f32.mrb[0].mxu0
      %v3766 = vadd.f32 %v3248, %v3765
      %v3767 = vpop.f32.mrb[0].mxu0
      %v3768 = vadd.f32 %v3252, %v3767
      %3769 = vmatprep.mubr.f32.mxu0 0.0
      %3770 = vmatmul.mubr.f32.gmra.mrb[0].mxu0 %v3385
      %v3771 = vpop.f32.mrb[0].mxu0
      %v3772 = vadd.f32 %v3248, %v3771
      %v3773 = vpop.f32.mrb[0].mxu0
      %v3774 = vadd.f32 %v3252, %v3773
      %3775 = vmatprep.mubr.f32.mxu0 0.0
      %3776 = vmatmul.mubr.f32.gmra.mrb[0].mxu0 %v3388
      %v3777 = vpop.f32.mrb[0].mxu0
      %v3778 = vadd.f32 %v3248, %v3777
      %v3779 = vpop.f32.mrb[0].mxu0
      %v3780 = vadd.f32 %v3252, %v3779
      %3781 = vmatprep.mubr.f32.mxu0 0.0
      %3782 = vmatmul.mubr.f32.gmra.mrb[0].mxu0 %v3391
      %v3783 = vpop.f32.mrb[0].mxu0
      %v3784 = vadd.f32 %v3248, %v3783
      %v3785 = vpop.f32.mrb[0].mxu0
      %v3786 = vadd.f32 %v3252, %v3785
      %3787 = vmatprep.mubr.f32.mxu0 0.0
      %3788 = vmatmul.mubr.f32.gmra.mrb[0].mxu0 %v3394
      %v3789 = vpop.f32.mrb[0].mxu0
      %v3790 = vadd.f32 %v3248, %v3789
      %v3791 = vpop.f32.mrb[0].mxu0
      %v3792 = vadd.f32 %v3252, %v3791
      %3793 = vmatprep.mubr.f32.mxu0 0.0
      %3794 = vmatmul.mubr.f32.gmra.mrb[0].mxu0 %v3397
      %v3795 = vpop.f32.mrb[0].mxu0
      %v3796 = vadd.f32 %v3248, %v3795
      %v3797 = vpop.f32.mrb[0].mxu0
      %v3798 = vadd.f32 %v3252, %v3797
      %3799 = vmatprep.mubr.f32.mxu0 0.0
      %3800 = vmatmul.mubr.f32.gmra.mrb[0].mxu0 %v3400
      %v3801 = vpop.f32.mrb[0].mxu0
      %v3802 = vadd.f32 %v3248, %v3801
      %v3803 = vpop.f32.mrb[0].mxu0
      %v3804 = vadd.f32 %v3252, %v3803
      %3805 = vmatprep.mubr.f32.mxu0 0.0
      %3806 = vmatmul.mubr.f32.gmra.mrb[0].mxu0 %v3403
      %v3807 = vpop.f32.mrb[0].mxu0
      %v3808 = vadd.f32 %v3248, %v3807
      %v3809 = vpop.f32.mrb[0].mxu0
      %v3810 = vadd.f32 %v3252, %v3809
      %3811 = vmatprep.mubr.f32.mxu0 0.0
      %3812 = vmatmul.mubr.f32.gmra.mrb[0].mxu0 %v3406
      %v3813 = vpop.f32.mrb[0].mxu0
      %v3814 = vadd.f32 %v3248, %v3813
      %v3815 = vpop.f32.mrb[0].mxu0
      %v3816 = vadd.f32 %v3252, %v3815
      %3817 = vmatprep.mubr.f32.mxu0 0.0
      %3818 = vmatmul.mubr.f32.gmra.mrb[0].mxu0 %v3409
      %v3819 = vpop.f32.mrb[0].mxu0
      %v3820 = vadd.f32 %v3248, %v3819
      %v3821 = vpop.f32.mrb[0].mxu0
      %v3822 = vadd.f32 %v3252, %v3821
      %3823 = vmatprep.mubr.f32.mxu0 0.0
      %3824 = vmatmul.mubr.f32.gmra.mrb[0].mxu0 %v3412
      %v3825 = vpop.f32.mrb[0].mxu0
      %v3826 = vadd.f32 %v3248, %v3825
      %v3827 = vpop.f32.mrb[0].mxu0
      %v3828 = vadd.f32 %v3252, %v3827
      %3829 = vmatprep.mubr.f32.mxu0 0.0
      %3830 = vmatmul.mubr.f32.gmra.mrb[0].mxu0 %v3415
      %v3831 = vpop.f32.mrb[0].mxu0
      %v3832 = vadd.f32 %v3248, %v3831
      %v3833 = vpop.f32.mrb[0].mxu0
      %v3834 = vadd.f32 %v3252, %v3833
      %3835 = vmatprep.mubr.f32.mxu0 0.0
      %3836 = vmatmul.mubr.f32.gmra.mrb[0].mxu0 %v3418
      %v3837 = vpop.f32.mrb[0].mxu0
      %v3838 = vadd.f32 %v3248, %v3837
      %v3839 = vpop.f32.mrb[0].mxu0
      %v3840 = vadd.f32 %v3252, %v3839
      %3841 = vmatprep.mubr.f32.mxu0 0.0
      %3842 = vmatmul.mubr.f32.gmra.mrb[0].mxu0 %v3421
      %v3843 = vpop.f32.mrb[0].mxu0
      %v3844 = vadd.f32 %v3248, %v3843
      %v3845 = vpop.f32.mrb[0].mxu0
      %v3846 = vadd.f32 %v3252, %v3845
      %3847 = vmatprep.mubr.f32.mxu0 0.0
      %3848 = vmatmul.mubr.f32.gmra.mrb[0].mxu0 %v3424
      %v3849 = vpop.f32.mrb[0].mxu0
      %v3850 = vadd.f32 %v3248, %v3849
      %v3851 = vpop.f32.mrb[0].mxu0
      %v3852 = vadd.f32 %v3252, %v3851
      %3853 = vmatprep.mubr.f32.mxu0 0.0
      %3854 = vmatmul.mubr.f32.gmra.mrb[0].mxu0 %v3427
      %v3855 = vpop.f32.mrb[0].mxu0
      %v3856 = vadd.f32 %v3248, %v3855
      %v3857 = vpop.f32.mrb[0].mxu0
      %v3858 = vadd.f32 %v3252, %v3857
      %3859 = vmatprep.mubr.f32.mxu0 0.0
      %3860 = vmatmul.mubr.f32.gmra.mrb[0].mxu0 %v3430
      %v3861 = vpop.f32.mrb[0].mxu0
      %v3862 = vadd.f32 %v3248, %v3861
      %v3863 = vpop.f32.mrb[0].mxu0
      %v3864 = vadd.f32 %v3252, %v3863
      %3865 = vmatprep.mubr.f32.mxu0 0.0
      %3866 = vmatmul.mubr.f32.gmra.mrb[0].mxu0 %v3433
      %v3867 = vpop.f32.mrb[0].mxu0
      %v3868 = vadd.f32 %v3248, %v3867
      %v3869 = vpop.f32.mrb[0].mxu0
      %v3870 = vadd.f32 %v3252, %v3869
      %3871 = vmatprep.mubr.f32.mxu0 0.0
      %3872 = vmatmul.mubr.f32.gmra.mrb[0].mxu0 %v3436
      %v3873 = vpop.f32.mrb[0].mxu0
      %v3874 = vadd.f32 %v3248, %v3873
      %v3875 = vpop.f32.mrb[0].mxu0
      %v3876 = vadd.f32 %v3252, %v3875
      %3877 = vmatprep.mubr.f32.mxu0 0.0
      %3878 = vmatmul.mubr.f32.gmra.mrb[0].mxu0 %v3439
      %v3879 = vpop.f32.mrb[0].mxu0
      %v3880 = vadd.f32 %v3248, %v3879
      %v3881 = vpop.f32.mrb[0].mxu0
      %v3882 = vadd.f32 %v3252, %v3881
      %3883 = vmatprep.mubr.f32.mxu0 0.0
      %3884 = vmatmul.mubr.f32.gmra.mrb[0].mxu0 %v3442
      %v3885 = vpop.f32.mrb[0].mxu0
      %v3886 = vadd.f32 %v3248, %v3885
      %v3887 = vpop.f32.mrb[0].mxu0
      %v3888 = vadd.f32 %v3252, %v3887
      %3889 = vmatprep.mubr.f32.mxu0 0.0
      %3890 = vmatmul.mubr.f32.gmra.mrb[0].mxu0 %v3445
      %v3891 = vpop.f32.mrb[0].mxu0
      %v3892 = vadd.f32 %v3248, %v3891
      %v3893 = vpop.f32.mrb[0].mxu0
      %v3894 = vadd.f32 %v3252, %v3893
      %3895 = vdwg.mxu0
      %v3896 = vxor.u32 %v3514, 2147483648
      %v3897 = vxor.u32 %v3516, 2147483648
      %v3898 = vxor.u32 %v3520, 2147483648
      %v3899 = vxor.u32 %v3522, 2147483648
      %v3900 = vxor.u32 %v3526, 2147483648
      %v3901 = vxor.u32 %v3528, 2147483648
      %v3902 = vxor.u32 %v3532, 2147483648
      %v3903 = vxor.u32 %v3534, 2147483648
      %v3904 = vxor.u32 %v3538, 2147483648
      %v3905 = vxor.u32 %v3540, 2147483648
      %v3906 = vxor.u32 %v3544, 2147483648
      %v3907 = vxor.u32 %v3546, 2147483648
      %v3908 = vxor.u32 %v3550, 2147483648
      %v3909 = vxor.u32 %v3552, 2147483648
      %v3910 = vxor.u32 %v3556, 2147483648
      %v3911 = vxor.u32 %v3558, 2147483648
      %v3912 = vxor.u32 %v3562, 2147483648
      %v3913 = vxor.u32 %v3564, 2147483648
      %v3914 = vxor.u32 %v3568, 2147483648
      %v3915 = vxor.u32 %v3570, 2147483648
      %v3916 = vxor.u32 %v3574, 2147483648
      %v3917 = vxor.u32 %v3576, 2147483648
      %v3918 = vxor.u32 %v3580, 2147483648
      %v3919 = vxor.u32 %v3582, 2147483648
      %v3920 = vxor.u32 %v3586, 2147483648
      %v3921 = vxor.u32 %v3588, 2147483648
      %v3922 = vxor.u32 %v3592, 2147483648
      %v3923 = vxor.u32 %v3594, 2147483648
      %v3924 = vxor.u32 %v3598, 2147483648
      %v3925 = vxor.u32 %v3600, 2147483648
      %v3926 = vxor.u32 %v3604, 2147483648
      %v3927 = vxor.u32 %v3606, 2147483648
      %v3928 = vxor.u32 %v3610, 2147483648
      %v3929 = vxor.u32 %v3612, 2147483648
      %v3930 = vxor.u32 %v3616, 2147483648
      %v3931 = vxor.u32 %v3618, 2147483648
      %v3932 = vxor.u32 %v3622, 2147483648
      %v3933 = vxor.u32 %v3624, 2147483648
      %v3934 = vxor.u32 %v3628, 2147483648
      %v3935 = vxor.u32 %v3630, 2147483648
      %v3936 = vxor.u32 %v3634, 2147483648
      %v3937 = vxor.u32 %v3636, 2147483648
      %v3938 = vxor.u32 %v3640, 2147483648
      %v3939 = vxor.u32 %v3642, 2147483648
      %v3940 = vxor.u32 %v3646, 2147483648
      %v3941 = vxor.u32 %v3648, 2147483648
      %v3942 = vxor.u32 %v3652, 2147483648
      %v3943 = vxor.u32 %v3654, 2147483648
      %v3944 = vxor.u32 %v3658, 2147483648
      %v3945 = vxor.u32 %v3660, 2147483648
      %v3946 = vxor.u32 %v3664, 2147483648
      %v3947 = vxor.u32 %v3666, 2147483648
      %v3948 = vxor.u32 %v3670, 2147483648
      %v3949 = vxor.u32 %v3672, 2147483648
      %v3950 = vxor.u32 %v3676, 2147483648
      %v3951 = vxor.u32 %v3678, 2147483648
      %v3952 = vxor.u32 %v3682, 2147483648
      %v3953 = vxor.u32 %v3684, 2147483648
      %v3954 = vxor.u32 %v3688, 2147483648
      %v3955 = vxor.u32 %v3690, 2147483648
      %v3956 = vxor.u32 %v3694, 2147483648
      %v3957 = vxor.u32 %v3696, 2147483648
      %v3958 = vxor.u32 %v3700, 2147483648
      %v3959 = vxor.u32 %v3702, 2147483648
      %v3960 = vxor.u32 %v3706, 2147483648
      %v3961 = vxor.u32 %v3708, 2147483648
      %v3962 = vxor.u32 %v3712, 2147483648
      %v3963 = vxor.u32 %v3714, 2147483648
      %v3964 = vxor.u32 %v3718, 2147483648
      %v3965 = vxor.u32 %v3720, 2147483648
      %v3966 = vxor.u32 %v3724, 2147483648
      %v3967 = vxor.u32 %v3726, 2147483648
      %v3968 = vxor.u32 %v3730, 2147483648
      %v3969 = vxor.u32 %v3732, 2147483648
      %v3970 = vxor.u32 %v3736, 2147483648
      %v3971 = vxor.u32 %v3738, 2147483648
      %v3972 = vxor.u32 %v3742, 2147483648
      %v3973 = vxor.u32 %v3744, 2147483648
      %v3974 = vxor.u32 %v3748, 2147483648
      %v3975 = vxor.u32 %v3750, 2147483648
      %v3976 = vxor.u32 %v3754, 2147483648
      %v3977 = vxor.u32 %v3756, 2147483648
      %v3978 = vxor.u32 %v3760, 2147483648
      %v3979 = vxor.u32 %v3762, 2147483648
      %v3980 = vxor.u32 %v3766, 2147483648
      %v3981 = vxor.u32 %v3768, 2147483648
      %v3982 = vxor.u32 %v3772, 2147483648
      %v3983 = vxor.u32 %v3774, 2147483648
      %v3984 = vxor.u32 %v3778, 2147483648
      %v3985 = vxor.u32 %v3780, 2147483648
      %v3986 = vxor.u32 %v3784, 2147483648
      %v3987 = vxor.u32 %v3786, 2147483648
      %v3988 = vxor.u32 %v3790, 2147483648
      %v3989 = vxor.u32 %v3792, 2147483648
      %v3990 = vxor.u32 %v3796, 2147483648
      %v3991 = vxor.u32 %v3798, 2147483648
      %v3992 = vxor.u32 %v3802, 2147483648
      %v3993 = vxor.u32 %v3804, 2147483648
      %v3994 = vxor.u32 %v3808, 2147483648
      %v3995 = vxor.u32 %v3810, 2147483648
      %v3996 = vxor.u32 %v3814, 2147483648
      %v3997 = vxor.u32 %v3816, 2147483648
      %v3998 = vxor.u32 %v3820, 2147483648
      %v3999 = vxor.u32 %v3822, 2147483648
      %v4000 = vxor.u32 %v3826, 2147483648
      %v4001 = vxor.u32 %v3828, 2147483648
      %v4002 = vxor.u32 %v3832, 2147483648
      %v4003 = vxor.u32 %v3834, 2147483648
      %v4004 = vxor.u32 %v3838, 2147483648
      %v4005 = vxor.u32 %v3840, 2147483648
      %v4006 = vxor.u32 %v3844, 2147483648
      %v4007 = vxor.u32 %v3846, 2147483648
      %v4008 = vxor.u32 %v3850, 2147483648
      %v4009 = vxor.u32 %v3852, 2147483648
      %v4010 = vxor.u32 %v3856, 2147483648
      %v4011 = vxor.u32 %v3858, 2147483648
      %v4012 = vxor.u32 %v3862, 2147483648
      %v4013 = vxor.u32 %v3864, 2147483648
      %v4014 = vxor.u32 %v3868, 2147483648
      %v4015 = vxor.u32 %v3870, 2147483648
      %v4016 = vxor.u32 %v3874, 2147483648
      %v4017 = vxor.u32 %v3876, 2147483648
      %v4018 = vxor.u32 %v3880, 2147483648
      %v4019 = vxor.u32 %v3882, 2147483648
      %v4020 = vxor.u32 %v3886, 2147483648
      %v4021 = vxor.u32 %v3888, 2147483648
      %v4022 = vxor.u32 %v3892, 2147483648
      %v4023 = vxor.u32 %v3894, 2147483648
      %v4024 = vmul.f32 %v3896, 1.442695
      %v4025 = vpow.pop %v4024
      %v4026 = vmul.f32 %v3897, 1.442695
      %v4027 = vpow.pop %v4026
      %v4028 = vmul.f32 %v3898, 1.442695
      %v4029 = vpow.pop %v4028
      %v4030 = vmul.f32 %v3899, 1.442695
      %v4031 = vpow.pop %v4030
      %v4032 = vmul.f32 %v3900, 1.442695
      %v4033 = vpow.pop %v4032
      %v4034 = vmul.f32 %v3901, 1.442695
      %v4035 = vpow.pop %v4034
      %v4036 = vmul.f32 %v3902, 1.442695
      %v4037 = vpow.pop %v4036
      %v4038 = vmul.f32 %v3903, 1.442695
      %v4039 = vpow.pop %v4038
      %v4040 = vmul.f32 %v3904, 1.442695
      %v4041 = vpow.pop %v4040
      %v4042 = vmul.f32 %v3905, 1.442695
      %v4043 = vpow.pop %v4042
      %v4044 = vmul.f32 %v3906, 1.442695
      %v4045 = vpow.pop %v4044
      %v4046 = vmul.f32 %v3907, 1.442695
      %v4047 = vpow.pop %v4046
      %v4048 = vmul.f32 %v3908, 1.442695
      %v4049 = vpow.pop %v4048
      %v4050 = vmul.f32 %v3909, 1.442695
      %v4051 = vpow.pop %v4050
      %v4052 = vmul.f32 %v3910, 1.442695
      %v4053 = vpow.pop %v4052
      %v4054 = vmul.f32 %v3911, 1.442695
      %v4055 = vpow.pop %v4054
      %v4056 = vmul.f32 %v3912, 1.442695
      %v4057 = vpow.pop %v4056
      %v4058 = vmul.f32 %v3913, 1.442695
      %v4059 = vpow.pop %v4058
      %v4060 = vmul.f32 %v3914, 1.442695
      %v4061 = vpow.pop %v4060
      %v4062 = vmul.f32 %v3915, 1.442695
      %v4063 = vpow.pop %v4062
      %v4064 = vmul.f32 %v3916, 1.442695
      %v4065 = vpow.pop %v4064
      %v4066 = vmul.f32 %v3917, 1.442695
      %v4067 = vpow.pop %v4066
      %v4068 = vmul.f32 %v3918, 1.442695
      %v4069 = vpow.pop %v4068
      %v4070 = vmul.f32 %v3919, 1.442695
      %v4071 = vpow.pop %v4070
      %v4072 = vmul.f32 %v3920, 1.442695
      %v4073 = vpow.pop %v4072
      %v4074 = vmul.f32 %v3921, 1.442695
      %v4075 = vpow.pop %v4074
      %v4076 = vmul.f32 %v3922, 1.442695
      %v4077 = vpow.pop %v4076
      %v4078 = vmul.f32 %v3923, 1.442695
      %v4079 = vpow.pop %v4078
      %v4080 = vmul.f32 %v3924, 1.442695
      %v4081 = vpow.pop %v4080
      %v4082 = vmul.f32 %v3925, 1.442695
      %v4083 = vpow.pop %v4082
      %v4084 = vmul.f32 %v3926, 1.442695
      %v4085 = vpow.pop %v4084
      %v4086 = vmul.f32 %v3927, 1.442695
      %v4087 = vpow.pop %v4086
      %v4088 = vmul.f32 %v3928, 1.442695
      %v4089 = vpow.pop %v4088
      %v4090 = vmul.f32 %v3929, 1.442695
      %v4091 = vpow.pop %v4090
      %v4092 = vmul.f32 %v3930, 1.442695
      %v4093 = vpow.pop %v4092
      %v4094 = vmul.f32 %v3931, 1.442695
      %v4095 = vpow.pop %v4094
      %v4096 = vmul.f32 %v3932, 1.442695
      %v4097 = vpow.pop %v4096
      %v4098 = vmul.f32 %v3933, 1.442695
      %v4099 = vpow.pop %v4098
      %v4100 = vmul.f32 %v3934, 1.442695
      %v4101 = vpow.pop %v4100
      %v4102 = vmul.f32 %v3935, 1.442695
      %v4103 = vpow.pop %v4102
      %v4104 = vmul.f32 %v3936, 1.442695
      %v4105 = vpow.pop %v4104
      %v4106 = vmul.f32 %v3937, 1.442695
      %v4107 = vpow.pop %v4106
      %v4108 = vmul.f32 %v3938, 1.442695
      %v4109 = vpow.pop %v4108
      %v4110 = vmul.f32 %v3939, 1.442695
      %v4111 = vpow.pop %v4110
      %v4112 = vmul.f32 %v3940, 1.442695
      %v4113 = vpow.pop %v4112
      %v4114 = vmul.f32 %v3941, 1.442695
      %v4115 = vpow.pop %v4114
      %v4116 = vmul.f32 %v3942, 1.442695
      %v4117 = vpow.pop %v4116
      %v4118 = vmul.f32 %v3943, 1.442695
      %v4119 = vpow.pop %v4118
      %v4120 = vmul.f32 %v3944, 1.442695
      %v4121 = vpow.pop %v4120
      %v4122 = vmul.f32 %v3945, 1.442695
      %v4123 = vpow.pop %v4122
      %v4124 = vmul.f32 %v3946, 1.442695
      %v4125 = vpow.pop %v4124
      %v4126 = vmul.f32 %v3947, 1.442695
      %v4127 = vpow.pop %v4126
      %v4128 = vmul.f32 %v3948, 1.442695
      %v4129 = vpow.pop %v4128
      %v4130 = vmul.f32 %v3949, 1.442695
      %v4131 = vpow.pop %v4130
      %v4132 = vmul.f32 %v3950, 1.442695
      %v4133 = vpow.pop %v4132
      %v4134 = vmul.f32 %v3951, 1.442695
      %v4135 = vpow.pop %v4134
      %v4136 = vmul.f32 %v3952, 1.442695
      %v4137 = vpow.pop %v4136
      %v4138 = vmul.f32 %v3953, 1.442695
      %v4139 = vpow.pop %v4138
      %v4140 = vmul.f32 %v3954, 1.442695
      %v4141 = vpow.pop %v4140
      %v4142 = vmul.f32 %v3955, 1.442695
      %v4143 = vpow.pop %v4142
      %v4144 = vmul.f32 %v3956, 1.442695
      %v4145 = vpow.pop %v4144
      %v4146 = vmul.f32 %v3957, 1.442695
      %v4147 = vpow.pop %v4146
      %v4148 = vmul.f32 %v3958, 1.442695
      %v4149 = vpow.pop %v4148
      %v4150 = vmul.f32 %v3959, 1.442695
      %v4151 = vpow.pop %v4150
      %v4152 = vmul.f32 %v3960, 1.442695
      %v4153 = vpow.pop %v4152
      %v4154 = vmul.f32 %v3961, 1.442695
      %v4155 = vpow.pop %v4154
      %v4156 = vmul.f32 %v3962, 1.442695
      %v4157 = vpow.pop %v4156
      %v4158 = vmul.f32 %v3963, 1.442695
      %v4159 = vpow.pop %v4158
      %v4160 = vmul.f32 %v3964, 1.442695
      %v4161 = vpow.pop %v4160
      %v4162 = vmul.f32 %v3965, 1.442695
      %v4163 = vpow.pop %v4162
      %v4164 = vmul.f32 %v3966, 1.442695
      %v4165 = vpow.pop %v4164
      %v4166 = vmul.f32 %v3967, 1.442695
      %v4167 = vpow.pop %v4166
      %v4168 = vmul.f32 %v3968, 1.442695
      %v4169 = vpow.pop %v4168
      %v4170 = vmul.f32 %v3969, 1.442695
      %v4171 = vpow.pop %v4170
      %v4172 = vmul.f32 %v3970, 1.442695
      %v4173 = vpow.pop %v4172
      %v4174 = vmul.f32 %v3971, 1.442695
      %v4175 = vpow.pop %v4174
      %v4176 = vmul.f32 %v3972, 1.442695
      %v4177 = vpow.pop %v4176
      %v4178 = vmul.f32 %v3973, 1.442695
      %v4179 = vpow.pop %v4178
      %v4180 = vmul.f32 %v3974, 1.442695
      %v4181 = vpow.pop %v4180
      %v4182 = vmul.f32 %v3975, 1.442695
      %v4183 = vpow.pop %v4182
      %v4184 = vmul.f32 %v3976, 1.442695
      %v4185 = vpow.pop %v4184
      %v4186 = vmul.f32 %v3977, 1.442695
      %v4187 = vpow.pop %v4186
      %v4188 = vmul.f32 %v3978, 1.442695
      %v4189 = vpow.pop %v4188
      %v4190 = vmul.f32 %v3979, 1.442695
      %v4191 = vpow.pop %v4190
      %v4192 = vmul.f32 %v3980, 1.442695
      %v4193 = vpow.pop %v4192
      %v4194 = vmul.f32 %v3981, 1.442695
      %v4195 = vpow.pop %v4194
      %v4196 = vmul.f32 %v3982, 1.442695
      %v4197 = vpow.pop %v4196
      %v4198 = vmul.f32 %v3983, 1.442695
      %v4199 = vpow.pop %v4198
      %v4200 = vmul.f32 %v3984, 1.442695
      %v4201 = vpow.pop %v4200
      %v4202 = vmul.f32 %v3985, 1.442695
      %v4203 = vpow.pop %v4202
      %v4204 = vmul.f32 %v3986, 1.442695
      %v4205 = vpow.pop %v4204
      %v4206 = vmul.f32 %v3987, 1.442695
      %v4207 = vpow.pop %v4206
      %v4208 = vmul.f32 %v3988, 1.442695
      %v4209 = vpow.pop %v4208
      %v4210 = vmul.f32 %v3989, 1.442695
      %v4211 = vpow.pop %v4210
      %v4212 = vmul.f32 %v3990, 1.442695
      %v4213 = vpow.pop %v4212
      %v4214 = vmul.f32 %v3991, 1.442695
      %v4215 = vpow.pop %v4214
      %v4216 = vmul.f32 %v3992, 1.442695
      %v4217 = vpow.pop %v4216
      %v4218 = vmul.f32 %v3993, 1.442695
      %v4219 = vpow.pop %v4218
      %v4220 = vmul.f32 %v3994, 1.442695
      %v4221 = vpow.pop %v4220
      %v4222 = vmul.f32 %v3995, 1.442695
      %v4223 = vpow.pop %v4222
      %v4224 = vmul.f32 %v3996, 1.442695
      %v4225 = vpow.pop %v4224
      %v4226 = vmul.f32 %v3997, 1.442695
      %v4227 = vpow.pop %v4226
      %v4228 = vmul.f32 %v3998, 1.442695
      %v4229 = vpow.pop %v4228
      %v4230 = vmul.f32 %v3999, 1.442695
      %v4231 = vpow.pop %v4230
      %v4232 = vmul.f32 %v4000, 1.442695
      %v4233 = vpow.pop %v4232
      %v4234 = vmul.f32 %v4001, 1.442695
      %v4235 = vpow.pop %v4234
      %v4236 = vmul.f32 %v4002, 1.442695
      %v4237 = vpow.pop %v4236
      %v4238 = vmul.f32 %v4003, 1.442695
      %v4239 = vpow.pop %v4238
      %v4240 = vmul.f32 %v4004, 1.442695
      %v4241 = vpow.pop %v4240
      %v4242 = vmul.f32 %v4005, 1.442695
      %v4243 = vpow.pop %v4242
      %v4244 = vmul.f32 %v4006, 1.442695
      %v4245 = vpow.pop %v4244
      %v4246 = vmul.f32 %v4007, 1.442695
      %v4247 = vpow.pop %v4246
      %v4248 = vmul.f32 %v4008, 1.442695
      %v4249 = vpow.pop %v4248
      %v4250 = vmul.f32 %v4009, 1.442695
      %v4251 = vpow.pop %v4250
      %v4252 = vmul.f32 %v4010, 1.442695
      %v4253 = vpow.pop %v4252
      %v4254 = vmul.f32 %v4011, 1.442695
      %v4255 = vpow.pop %v4254
      %v4256 = vmul.f32 %v4012, 1.442695
      %v4257 = vpow.pop %v4256
      %v4258 = vmul.f32 %v4013, 1.442695
      %v4259 = vpow.pop %v4258
      %v4260 = vmul.f32 %v4014, 1.442695
      %v4261 = vpow.pop %v4260
      %v4262 = vmul.f32 %v4015, 1.442695
      %v4263 = vpow.pop %v4262
      %v4264 = vmul.f32 %v4016, 1.442695
      %v4265 = vpow.pop %v4264
      %v4266 = vmul.f32 %v4017, 1.442695
      %v4267 = vpow.pop %v4266
      %v4268 = vmul.f32 %v4018, 1.442695
      %v4269 = vpow.pop %v4268
      %v4270 = vmul.f32 %v4019, 1.442695
      %v4271 = vpow.pop %v4270
      %v4272 = vmul.f32 %v4020, 1.442695
      %v4273 = vpow.pop %v4272
      %v4274 = vmul.f32 %v4021, 1.442695
      %v4275 = vpow.pop %v4274
      %v4276 = vmul.f32 %v4022, 1.442695
      %v4277 = vpow.pop %v4276
      %v4278 = vmul.f32 %v4023, 1.442695
      %v4279 = vpow.pop %v4278
      %v4280 = vadd.f32 %v4025, 1.0
      %v4281 = vadd.f32 %v4027, 1.0
      %v4282 = vadd.f32 %v4029, 1.0
      %v4283 = vadd.f32 %v4031, 1.0
      %v4284 = vadd.f32 %v4033, 1.0
      %v4285 = vadd.f32 %v4035, 1.0
      %v4286 = vadd.f32 %v4037, 1.0
      %v4287 = vadd.f32 %v4039, 1.0
      %v4288 = vadd.f32 %v4041, 1.0
      %v4289 = vadd.f32 %v4043, 1.0
      %v4290 = vadd.f32 %v4045, 1.0
      %v4291 = vadd.f32 %v4047, 1.0
      %v4292 = vadd.f32 %v4049, 1.0
      %v4293 = vadd.f32 %v4051, 1.0
      %v4294 = vadd.f32 %v4053, 1.0
      %v4295 = vadd.f32 %v4055, 1.0
      %v4296 = vadd.f32 %v4057, 1.0
      %v4297 = vadd.f32 %v4059, 1.0
      %v4298 = vadd.f32 %v4061, 1.0
      %v4299 = vadd.f32 %v4063, 1.0
      %v4300 = vadd.f32 %v4065, 1.0
      %v4301 = vadd.f32 %v4067, 1.0
      %v4302 = vadd.f32 %v4069, 1.0
      %v4303 = vadd.f32 %v4071, 1.0
      %v4304 = vadd.f32 %v4073, 1.0
      %v4305 = vadd.f32 %v4075, 1.0
      %v4306 = vadd.f32 %v4077, 1.0
      %v4307 = vadd.f32 %v4079, 1.0
      %v4308 = vadd.f32 %v4081, 1.0
      %v4309 = vadd.f32 %v4083, 1.0
      %v4310 = vadd.f32 %v4085, 1.0
      %v4311 = vadd.f32 %v4087, 1.0
      %v4312 = vadd.f32 %v4089, 1.0
      %v4313 = vadd.f32 %v4091, 1.0
      %v4314 = vadd.f32 %v4093, 1.0
      %v4315 = vadd.f32 %v4095, 1.0
      %v4316 = vadd.f32 %v4097, 1.0
      %v4317 = vadd.f32 %v4099, 1.0
      %v4318 = vadd.f32 %v4101, 1.0
      %v4319 = vadd.f32 %v4103, 1.0
      %v4320 = vadd.f32 %v4105, 1.0
      %v4321 = vadd.f32 %v4107, 1.0
      %v4322 = vadd.f32 %v4109, 1.0
      %v4323 = vadd.f32 %v4111, 1.0
      %v4324 = vadd.f32 %v4113, 1.0
      %v4325 = vadd.f32 %v4115, 1.0
      %v4326 = vadd.f32 %v4117, 1.0
      %v4327 = vadd.f32 %v4119, 1.0
      %v4328 = vadd.f32 %v4121, 1.0
      %v4329 = vadd.f32 %v4123, 1.0
      %v4330 = vadd.f32 %v4125, 1.0
      %v4331 = vadd.f32 %v4127, 1.0
      %v4332 = vadd.f32 %v4129, 1.0
      %v4333 = vadd.f32 %v4131, 1.0
      %v4334 = vadd.f32 %v4133, 1.0
      %v4335 = vadd.f32 %v4135, 1.0
      %v4336 = vadd.f32 %v4137, 1.0
      %v4337 = vadd.f32 %v4139, 1.0
      %v4338 = vadd.f32 %v4141, 1.0
      %v4339 = vadd.f32 %v4143, 1.0
      %v4340 = vadd.f32 %v4145, 1.0
      %v4341 = vadd.f32 %v4147, 1.0
      %v4342 = vadd.f32 %v4149, 1.0
      %v4343 = vadd.f32 %v4151, 1.0
      %v4344 = vadd.f32 %v4153, 1.0
      %v4345 = vadd.f32 %v4155, 1.0
      %v4346 = vadd.f32 %v4157, 1.0
      %v4347 = vadd.f32 %v4159, 1.0
      %v4348 = vadd.f32 %v4161, 1.0
      %v4349 = vadd.f32 %v4163, 1.0
      %v4350 = vadd.f32 %v4165, 1.0
      %v4351 = vadd.f32 %v4167, 1.0
      %v4352 = vadd.f32 %v4169, 1.0
      %v4353 = vadd.f32 %v4171, 1.0
      %v4354 = vadd.f32 %v4173, 1.0
      %v4355 = vadd.f32 %v4175, 1.0
      %v4356 = vadd.f32 %v4177, 1.0
      %v4357 = vadd.f32 %v4179, 1.0
      %v4358 = vadd.f32 %v4181, 1.0
      %v4359 = vadd.f32 %v4183, 1.0
      %v4360 = vadd.f32 %v4185, 1.0
      %v4361 = vadd.f32 %v4187, 1.0
      %v4362 = vadd.f32 %v4189, 1.0
      %v4363 = vadd.f32 %v4191, 1.0
      %v4364 = vadd.f32 %v4193, 1.0
      %v4365 = vadd.f32 %v4195, 1.0
      %v4366 = vadd.f32 %v4197, 1.0
      %v4367 = vadd.f32 %v4199, 1.0
      %v4368 = vadd.f32 %v4201, 1.0
      %v4369 = vadd.f32 %v4203, 1.0
      %v4370 = vadd.f32 %v4205, 1.0
      %v4371 = vadd.f32 %v4207, 1.0
      %v4372 = vadd.f32 %v4209, 1.0
      %v4373 = vadd.f32 %v4211, 1.0
      %v4374 = vadd.f32 %v4213, 1.0
      %v4375 = vadd.f32 %v4215, 1.0
      %v4376 = vadd.f32 %v4217, 1.0
      %v4377 = vadd.f32 %v4219, 1.0
      %v4378 = vadd.f32 %v4221, 1.0
      %v4379 = vadd.f32 %v4223, 1.0
      %v4380 = vadd.f32 %v4225, 1.0
      %v4381 = vadd.f32 %v4227, 1.0
      %v4382 = vadd.f32 %v4229, 1.0
      %v4383 = vadd.f32 %v4231, 1.0
      %v4384 = vadd.f32 %v4233, 1.0
      %v4385 = vadd.f32 %v4235, 1.0
      %v4386 = vadd.f32 %v4237, 1.0
      %v4387 = vadd.f32 %v4239, 1.0
      %v4388 = vadd.f32 %v4241, 1.0
      %v4389 = vadd.f32 %v4243, 1.0
      %v4390 = vadd.f32 %v4245, 1.0
      %v4391 = vadd.f32 %v4247, 1.0
      %v4392 = vadd.f32 %v4249, 1.0
      %v4393 = vadd.f32 %v4251, 1.0
      %v4394 = vadd.f32 %v4253, 1.0
      %v4395 = vadd.f32 %v4255, 1.0
      %v4396 = vadd.f32 %v4257, 1.0
      %v4397 = vadd.f32 %v4259, 1.0
      %v4398 = vadd.f32 %v4261, 1.0
      %v4399 = vadd.f32 %v4263, 1.0
      %v4400 = vadd.f32 %v4265, 1.0
      %v4401 = vadd.f32 %v4267, 1.0
      %v4402 = vadd.f32 %v4269, 1.0
      %v4403 = vadd.f32 %v4271, 1.0
      %v4404 = vadd.f32 %v4273, 1.0
      %v4405 = vadd.f32 %v4275, 1.0
      %v4406 = vadd.f32 %v4277, 1.0
      %v4407 = vadd.f32 %v4279, 1.0
      %v4408 = vrcp.pop %v4280
      %v4409 = vmul.f32 1.0, %v4408
      %v4410 = vrcp.pop %v4281
      %v4411 = vmul.f32 1.0, %v4410
      %v4412 = vrcp.pop %v4282
      %v4413 = vmul.f32 1.0, %v4412
      %v4414 = vrcp.pop %v4283
      %v4415 = vmul.f32 1.0, %v4414
      %v4416 = vrcp.pop %v4284
      %v4417 = vmul.f32 1.0, %v4416
      %v4418 = vrcp.pop %v4285
      %v4419 = vmul.f32 1.0, %v4418
      %v4420 = vrcp.pop %v4286
      %v4421 = vmul.f32 1.0, %v4420
      %v4422 = vrcp.pop %v4287
      %v4423 = vmul.f32 1.0, %v4422
      %v4424 = vrcp.pop %v4288
      %v4425 = vmul.f32 1.0, %v4424
      %v4426 = vrcp.pop %v4289
      %v4427 = vmul.f32 1.0, %v4426
      %v4428 = vrcp.pop %v4290
      %v4429 = vmul.f32 1.0, %v4428
      %v4430 = vrcp.pop %v4291
      %v4431 = vmul.f32 1.0, %v4430
      %v4432 = vrcp.pop %v4292
      %v4433 = vmul.f32 1.0, %v4432
      %v4434 = vrcp.pop %v4293
      %v4435 = vmul.f32 1.0, %v4434
      %v4436 = vrcp.pop %v4294
      %v4437 = vmul.f32 1.0, %v4436
      %v4438 = vrcp.pop %v4295
      %v4439 = vmul.f32 1.0, %v4438
      %v4440 = vrcp.pop %v4296
      %v4441 = vmul.f32 1.0, %v4440
      %v4442 = vrcp.pop %v4297
      %v4443 = vmul.f32 1.0, %v4442
      %v4444 = vrcp.pop %v4298
      %v4445 = vmul.f32 1.0, %v4444
      %v4446 = vrcp.pop %v4299
      %v4447 = vmul.f32 1.0, %v4446
      %v4448 = vrcp.pop %v4300
      %v4449 = vmul.f32 1.0, %v4448
      %v4450 = vrcp.pop %v4301
      %v4451 = vmul.f32 1.0, %v4450
      %v4452 = vrcp.pop %v4302
      %v4453 = vmul.f32 1.0, %v4452
      %v4454 = vrcp.pop %v4303
      %v4455 = vmul.f32 1.0, %v4454
      %v4456 = vrcp.pop %v4304
      %v4457 = vmul.f32 1.0, %v4456
      %v4458 = vrcp.pop %v4305
      %v4459 = vmul.f32 1.0, %v4458
      %v4460 = vrcp.pop %v4306
      %v4461 = vmul.f32 1.0, %v4460
      %v4462 = vrcp.pop %v4307
      %v4463 = vmul.f32 1.0, %v4462
      %v4464 = vrcp.pop %v4308
      %v4465 = vmul.f32 1.0, %v4464
      %v4466 = vrcp.pop %v4309
      %v4467 = vmul.f32 1.0, %v4466
      %v4468 = vrcp.pop %v4310
      %v4469 = vmul.f32 1.0, %v4468
      %v4470 = vrcp.pop %v4311
      %v4471 = vmul.f32 1.0, %v4470
      %v4472 = vrcp.pop %v4312
      %v4473 = vmul.f32 1.0, %v4472
      %v4474 = vrcp.pop %v4313
      %v4475 = vmul.f32 1.0, %v4474
      %v4476 = vrcp.pop %v4314
      %v4477 = vmul.f32 1.0, %v4476
      %v4478 = vrcp.pop %v4315
      %v4479 = vmul.f32 1.0, %v4478
      %v4480 = vrcp.pop %v4316
      %v4481 = vmul.f32 1.0, %v4480
      %v4482 = vrcp.pop %v4317
      %v4483 = vmul.f32 1.0, %v4482
      %v4484 = vrcp.pop %v4318
      %v4485 = vmul.f32 1.0, %v4484
      %v4486 = vrcp.pop %v4319
      %v4487 = vmul.f32 1.0, %v4486
      %v4488 = vrcp.pop %v4320
      %v4489 = vmul.f32 1.0, %v4488
      %v4490 = vrcp.pop %v4321
      %v4491 = vmul.f32 1.0, %v4490
      %v4492 = vrcp.pop %v4322
      %v4493 = vmul.f32 1.0, %v4492
      %v4494 = vrcp.pop %v4323
      %v4495 = vmul.f32 1.0, %v4494
      %v4496 = vrcp.pop %v4324
      %v4497 = vmul.f32 1.0, %v4496
      %v4498 = vrcp.pop %v4325
      %v4499 = vmul.f32 1.0, %v4498
      %v4500 = vrcp.pop %v4326
      %v4501 = vmul.f32 1.0, %v4500
      %v4502 = vrcp.pop %v4327
      %v4503 = vmul.f32 1.0, %v4502
      %v4504 = vrcp.pop %v4328
      %v4505 = vmul.f32 1.0, %v4504
      %v4506 = vrcp.pop %v4329
      %v4507 = vmul.f32 1.0, %v4506
      %v4508 = vrcp.pop %v4330
      %v4509 = vmul.f32 1.0, %v4508
      %v4510 = vrcp.pop %v4331
      %v4511 = vmul.f32 1.0, %v4510
      %v4512 = vrcp.pop %v4332
      %v4513 = vmul.f32 1.0, %v4512
      %v4514 = vrcp.pop %v4333
      %v4515 = vmul.f32 1.0, %v4514
      %v4516 = vrcp.pop %v4334
      %v4517 = vmul.f32 1.0, %v4516
      %v4518 = vrcp.pop %v4335
      %v4519 = vmul.f32 1.0, %v4518
      %v4520 = vrcp.pop %v4336
      %v4521 = vmul.f32 1.0, %v4520
      %v4522 = vrcp.pop %v4337
      %v4523 = vmul.f32 1.0, %v4522
      %v4524 = vrcp.pop %v4338
      %v4525 = vmul.f32 1.0, %v4524
      %v4526 = vrcp.pop %v4339
      %v4527 = vmul.f32 1.0, %v4526
      %v4528 = vrcp.pop %v4340
      %v4529 = vmul.f32 1.0, %v4528
      %v4530 = vrcp.pop %v4341
      %v4531 = vmul.f32 1.0, %v4530
      %v4532 = vrcp.pop %v4342
      %v4533 = vmul.f32 1.0, %v4532
      %v4534 = vrcp.pop %v4343
      %v4535 = vmul.f32 1.0, %v4534
      %v4536 = vrcp.pop %v4344
      %v4537 = vmul.f32 1.0, %v4536
      %v4538 = vrcp.pop %v4345
      %v4539 = vmul.f32 1.0, %v4538
      %v4540 = vrcp.pop %v4346
      %v4541 = vmul.f32 1.0, %v4540
      %v4542 = vrcp.pop %v4347
      %v4543 = vmul.f32 1.0, %v4542
      %v4544 = vrcp.pop %v4348
      %v4545 = vmul.f32 1.0, %v4544
      %v4546 = vrcp.pop %v4349
      %v4547 = vmul.f32 1.0, %v4546
      %v4548 = vrcp.pop %v4350
      %v4549 = vmul.f32 1.0, %v4548
      %v4550 = vrcp.pop %v4351
      %v4551 = vmul.f32 1.0, %v4550
      %v4552 = vrcp.pop %v4352
      %v4553 = vmul.f32 1.0, %v4552
      %v4554 = vrcp.pop %v4353
      %v4555 = vmul.f32 1.0, %v4554
      %v4556 = vrcp.pop %v4354
      %v4557 = vmul.f32 1.0, %v4556
      %v4558 = vrcp.pop %v4355
      %v4559 = vmul.f32 1.0, %v4558
      %v4560 = vrcp.pop %v4356
      %v4561 = vmul.f32 1.0, %v4560
      %v4562 = vrcp.pop %v4357
      %v4563 = vmul.f32 1.0, %v4562
      %v4564 = vrcp.pop %v4358
      %v4565 = vmul.f32 1.0, %v4564
      %v4566 = vrcp.pop %v4359
      %v4567 = vmul.f32 1.0, %v4566
      %v4568 = vrcp.pop %v4360
      %v4569 = vmul.f32 1.0, %v4568
      %v4570 = vrcp.pop %v4361
      %v4571 = vmul.f32 1.0, %v4570
      %v4572 = vrcp.pop %v4362
      %v4573 = vmul.f32 1.0, %v4572
      %v4574 = vrcp.pop %v4363
      %v4575 = vmul.f32 1.0, %v4574
      %v4576 = vrcp.pop %v4364
      %v4577 = vmul.f32 1.0, %v4576
      %v4578 = vrcp.pop %v4365
      %v4579 = vmul.f32 1.0, %v4578
      %v4580 = vrcp.pop %v4366
      %v4581 = vmul.f32 1.0, %v4580
      %v4582 = vrcp.pop %v4367
      %v4583 = vmul.f32 1.0, %v4582
      %v4584 = vrcp.pop %v4368
      %v4585 = vmul.f32 1.0, %v4584
      %v4586 = vrcp.pop %v4369
      %v4587 = vmul.f32 1.0, %v4586
      %v4588 = vrcp.pop %v4370
      %v4589 = vmul.f32 1.0, %v4588
      %v4590 = vrcp.pop %v4371
      %v4591 = vmul.f32 1.0, %v4590
      %v4592 = vrcp.pop %v4372
      %v4593 = vmul.f32 1.0, %v4592
      %v4594 = vrcp.pop %v4373
      %v4595 = vmul.f32 1.0, %v4594
      %v4596 = vrcp.pop %v4374
      %v4597 = vmul.f32 1.0, %v4596
      %v4598 = vrcp.pop %v4375
      %v4599 = vmul.f32 1.0, %v4598
      %v4600 = vrcp.pop %v4376
      %v4601 = vmul.f32 1.0, %v4600
      %v4602 = vrcp.pop %v4377
      %v4603 = vmul.f32 1.0, %v4602
      %v4604 = vrcp.pop %v4378
      %v4605 = vmul.f32 1.0, %v4604
      %v4606 = vrcp.pop %v4379
      %v4607 = vmul.f32 1.0, %v4606
      %v4608 = vrcp.pop %v4380
      %v4609 = vmul.f32 1.0, %v4608
      %v4610 = vrcp.pop %v4381
      %v4611 = vmul.f32 1.0, %v4610
      %v4612 = vrcp.pop %v4382
      %v4613 = vmul.f32 1.0, %v4612
      %v4614 = vrcp.pop %v4383
      %v4615 = vmul.f32 1.0, %v4614
      %v4616 = vrcp.pop %v4384
      %v4617 = vmul.f32 1.0, %v4616
      %v4618 = vrcp.pop %v4385
      %v4619 = vmul.f32 1.0, %v4618
      %v4620 = vrcp.pop %v4386
      %v4621 = vmul.f32 1.0, %v4620
      %v4622 = vrcp.pop %v4387
      %v4623 = vmul.f32 1.0, %v4622
      %v4624 = vrcp.pop %v4388
      %v4625 = vmul.f32 1.0, %v4624
      %v4626 = vrcp.pop %v4389
      %v4627 = vmul.f32 1.0, %v4626
      %v4628 = vrcp.pop %v4390
      %v4629 = vmul.f32 1.0, %v4628
      %v4630 = vrcp.pop %v4391
      %v4631 = vmul.f32 1.0, %v4630
      %v4632 = vrcp.pop %v4392
      %v4633 = vmul.f32 1.0, %v4632
      %v4634 = vrcp.pop %v4393
      %v4635 = vmul.f32 1.0, %v4634
      %v4636 = vrcp.pop %v4394
      %v4637 = vmul.f32 1.0, %v4636
      %v4638 = vrcp.pop %v4395
      %v4639 = vmul.f32 1.0, %v4638
      %v4640 = vrcp.pop %v4396
      %v4641 = vmul.f32 1.0, %v4640
      %v4642 = vrcp.pop %v4397
      %v4643 = vmul.f32 1.0, %v4642
      %v4644 = vrcp.pop %v4398
      %v4645 = vmul.f32 1.0, %v4644
      %v4646 = vrcp.pop %v4399
      %v4647 = vmul.f32 1.0, %v4646
      %v4648 = vrcp.pop %v4400
      %v4649 = vmul.f32 1.0, %v4648
      %v4650 = vrcp.pop %v4401
      %v4651 = vmul.f32 1.0, %v4650
      %v4652 = vrcp.pop %v4402
      %v4653 = vmul.f32 1.0, %v4652
      %v4654 = vrcp.pop %v4403
      %v4655 = vmul.f32 1.0, %v4654
      %v4656 = vrcp.pop %v4404
      %v4657 = vmul.f32 1.0, %v4656
      %v4658 = vrcp.pop %v4405
      %v4659 = vmul.f32 1.0, %v4658
      %v4660 = vrcp.pop %v4406
      %v4661 = vmul.f32 1.0, %v4660
      %v4662 = vrcp.pop %v4407
      %v4663 = vmul.f32 1.0, %v4662
      %4664 = vst [vmem:[%s339] sm:$0xff] %v4409
      %4665 = vst [vmem:[%s339 + $0x8] sm:$0xff] %v4411
      %4666 = vst [vmem:[%s339 + $0x10] sm:$0xff] %v4413
      %4667 = vst [vmem:[%s339 + $0x18] sm:$0xff] %v4415
      %4668 = vst [vmem:[%s339 + $0x20] sm:$0xff] %v4417
      %4669 = vst [vmem:[%s339 + $0x28] sm:$0xff] %v4419
      %4670 = vst [vmem:[%s339 + $0x30] sm:$0xff] %v4421
      %4671 = vst [vmem:[%s339 + $0x38] sm:$0xff] %v4423
      %4672 = vst [vmem:[%s339 + $0x40] sm:$0xff] %v4425
      %4673 = vst [vmem:[%s339 + $0x48] sm:$0xff] %v4427
      %4674 = vst [vmem:[%s339 + $0x50] sm:$0xff] %v4429
      %4675 = vst [vmem:[%s339 + $0x58] sm:$0xff] %v4431
      %4676 = vst [vmem:[%s339 + $0x60] sm:$0xff] %v4433
      %4677 = vst [vmem:[%s339 + $0x68] sm:$0xff] %v4435
      %4678 = vst [vmem:[%s339 + $0x70] sm:$0xff] %v4437
      %4679 = vst [vmem:[%s339 + $0x78] sm:$0xff] %v4439
      %4680 = vst [vmem:[%s339 + $0x80] sm:$0xff] %v4441
      %4681 = vst [vmem:[%s339 + $0x88] sm:$0xff] %v4443
      %4682 = vst [vmem:[%s339 + $0x90] sm:$0xff] %v4445
      %4683 = vst [vmem:[%s339 + $0x98] sm:$0xff] %v4447
      %4684 = vst [vmem:[%s339 + $0xa0] sm:$0xff] %v4449
      %4685 = vst [vmem:[%s339 + $0xa8] sm:$0xff] %v4451
      %4686 = vst [vmem:[%s339 + $0xb0] sm:$0xff] %v4453
      %4687 = vst [vmem:[%s339 + $0xb8] sm:$0xff] %v4455
      %4688 = vst [vmem:[%s339 + $0xc0] sm:$0xff] %v4457
      %4689 = vst [vmem:[%s339 + $0xc8] sm:$0xff] %v4459
      %4690 = vst [vmem:[%s339 + $0xd0] sm:$0xff] %v4461
      %4691 = vst [vmem:[%s339 + $0xd8] sm:$0xff] %v4463
      %4692 = vst [vmem:[%s339 + $0xe0] sm:$0xff] %v4465
      %4693 = vst [vmem:[%s339 + $0xe8] sm:$0xff] %v4467
      %4694 = vst [vmem:[%s339 + $0xf0] sm:$0xff] %v4469
      %4695 = vst [vmem:[%s339 + $0xf8] sm:$0xff] %v4471
      %4696 = vst [vmem:[%s339 + $0x100] sm:$0xff] %v4473
      %4697 = vst [vmem:[%s339 + $0x108] sm:$0xff] %v4475
      %4698 = vst [vmem:[%s339 + $0x110] sm:$0xff] %v4477
      %4699 = vst [vmem:[%s339 + $0x118] sm:$0xff] %v4479
      %4700 = vst [vmem:[%s339 + $0x120] sm:$0xff] %v4481
      %4701 = vst [vmem:[%s339 + $0x128] sm:$0xff] %v4483
      %4702 = vst [vmem:[%s339 + $0x130] sm:$0xff] %v4485
      %4703 = vst [vmem:[%s339 + $0x138] sm:$0xff] %v4487
      %4704 = vst [vmem:[%s339 + $0x140] sm:$0xff] %v4489
      %4705 = vst [vmem:[%s339 + $0x148] sm:$0xff] %v4491
      %4706 = vst [vmem:[%s339 + $0x150] sm:$0xff] %v4493
      %4707 = vst [vmem:[%s339 + $0x158] sm:$0xff] %v4495
      %4708 = vst [vmem:[%s339 + $0x160] sm:$0xff] %v4497
      %4709 = vst [vmem:[%s339 + $0x168] sm:$0xff] %v4499
      %4710 = vst [vmem:[%s339 + $0x170] sm:$0xff] %v4501
      %4711 = vst [vmem:[%s339 + $0x178] sm:$0xff] %v4503
      %4712 = vst [vmem:[%s339 + $0x180] sm:$0xff] %v4505
      %4713 = vst [vmem:[%s339 + $0x188] sm:$0xff] %v4507
      %4714 = vst [vmem:[%s339 + $0x190] sm:$0xff] %v4509
      %4715 = vst [vmem:[%s339 + $0x198] sm:$0xff] %v4511
      %4716 = vst [vmem:[%s339 + $0x1a0] sm:$0xff] %v4513
      %4717 = vst [vmem:[%s339 + $0x1a8] sm:$0xff] %v4515
      %4718 = vst [vmem:[%s339 + $0x1b0] sm:$0xff] %v4517
      %4719 = vst [vmem:[%s339 + $0x1b8] sm:$0xff] %v4519
      %4720 = vst [vmem:[%s339 + $0x1c0] sm:$0xff] %v4521
      %4721 = vst [vmem:[%s339 + $0x1c8] sm:$0xff] %v4523
      %4722 = vst [vmem:[%s339 + $0x1d0] sm:$0xff] %v4525
      %4723 = vst [vmem:[%s339 + $0x1d8] sm:$0xff] %v4527
      %4724 = vst [vmem:[%s339 + $0x1e0] sm:$0xff] %v4529
      %4725 = vst [vmem:[%s339 + $0x1e8] sm:$0xff] %v4531
      %4726 = vst [vmem:[%s339 + $0x1f0] sm:$0xff] %v4533
      %4727 = vst [vmem:[%s339 + $0x1f8] sm:$0xff] %v4535
      %4728 = vst [vmem:[%s339 + $0x200] sm:$0xff] %v4537
      %4729 = vst [vmem:[%s339 + $0x208] sm:$0xff] %v4539
      %4730 = vst [vmem:[%s339 + $0x210] sm:$0xff] %v4541
      %4731 = vst [vmem:[%s339 + $0x218] sm:$0xff] %v4543
      %4732 = vst [vmem:[%s339 + $0x220] sm:$0xff] %v4545
      %4733 = vst [vmem:[%s339 + $0x228] sm:$0xff] %v4547
      %4734 = vst [vmem:[%s339 + $0x230] sm:$0xff] %v4549
      %4735 = vst [vmem:[%s339 + $0x238] sm:$0xff] %v4551
      %4736 = vst [vmem:[%s339 + $0x240] sm:$0xff] %v4553
      %4737 = vst [vmem:[%s339 + $0x248] sm:$0xff] %v4555
      %4738 = vst [vmem:[%s339 + $0x250] sm:$0xff] %v4557
      %4739 = vst [vmem:[%s339 + $0x258] sm:$0xff] %v4559
      %4740 = vst [vmem:[%s339 + $0x260] sm:$0xff] %v4561
      %4741 = vst [vmem:[%s339 + $0x268] sm:$0xff] %v4563
      %4742 = vst [vmem:[%s339 + $0x270] sm:$0xff] %v4565
      %4743 = vst [vmem:[%s339 + $0x278] sm:$0xff] %v4567
      %4744 = vst [vmem:[%s339 + $0x280] sm:$0xff] %v4569
      %4745 = vst [vmem:[%s339 + $0x288] sm:$0xff] %v4571
      %4746 = vst [vmem:[%s339 + $0x290] sm:$0xff] %v4573
      %4747 = vst [vmem:[%s339 + $0x298] sm:$0xff] %v4575
      %4748 = vst [vmem:[%s339 + $0x2a0] sm:$0xff] %v4577
      %4749 = vst [vmem:[%s339 + $0x2a8] sm:$0xff] %v4579
      %4750 = vst [vmem:[%s339 + $0x2b0] sm:$0xff] %v4581
      %4751 = vst [vmem:[%s339 + $0x2b8] sm:$0xff] %v4583
      %4752 = vst [vmem:[%s339 + $0x2c0] sm:$0xff] %v4585
      %4753 = vst [vmem:[%s339 + $0x2c8] sm:$0xff] %v4587
      %4754 = vst [vmem:[%s339 + $0x2d0] sm:$0xff] %v4589
      %4755 = vst [vmem:[%s339 + $0x2d8] sm:$0xff] %v4591
      %4756 = vst [vmem:[%s339 + $0x2e0] sm:$0xff] %v4593
      %4757 = vst [vmem:[%s339 + $0x2e8] sm:$0xff] %v4595
      %4758 = vst [vmem:[%s339 + $0x2f0] sm:$0xff] %v4597
      %4759 = vst [vmem:[%s339 + $0x2f8] sm:$0xff] %v4599
      %4760 = vst [vmem:[%s339 + $0x300] sm:$0xff] %v4601
      %4761 = vst [vmem:[%s339 + $0x308] sm:$0xff] %v4603
      %4762 = vst [vmem:[%s339 + $0x310] sm:$0xff] %v4605
      %4763 = vst [vmem:[%s339 + $0x318] sm:$0xff] %v4607
      %4764 = vst [vmem:[%s339 + $0x320] sm:$0xff] %v4609
      %4765 = vst [vmem:[%s339 + $0x328] sm:$0xff] %v4611
      %4766 = vst [vmem:[%s339 + $0x330] sm:$0xff] %v4613
      %4767 = vst [vmem:[%s339 + $0x338] sm:$0xff] %v4615
      %4768 = vst [vmem:[%s339 + $0x340] sm:$0xff] %v4617
      %4769 = vst [vmem:[%s339 + $0x348] sm:$0xff] %v4619
      %4770 = vst [vmem:[%s339 + $0x350] sm:$0xff] %v4621
      %4771 = vst [vmem:[%s339 + $0x358] sm:$0xff] %v4623
      %4772 = vst [vmem:[%s339 + $0x360] sm:$0xff] %v4625
      %4773 = vst [vmem:[%s339 + $0x368] sm:$0xff] %v4627
      %4774 = vst [vmem:[%s339 + $0x370] sm:$0xff] %v4629
      %4775 = vst [vmem:[%s339 + $0x378] sm:$0xff] %v4631
      %4776 = vst [vmem:[%s339 + $0x380] sm:$0xff] %v4633
      %4777 = vst [vmem:[%s339 + $0x388] sm:$0xff] %v4635
      %4778 = vst [vmem:[%s339 + $0x390] sm:$0xff] %v4637
      %4779 = vst [vmem:[%s339 + $0x398] sm:$0xff] %v4639
      %4780 = vst [vmem:[%s339 + $0x3a0] sm:$0xff] %v4641
      %4781 = vst [vmem:[%s339 + $0x3a8] sm:$0xff] %v4643
      %4782 = vst [vmem:[%s339 + $0x3b0] sm:$0xff] %v4645
      %4783 = vst [vmem:[%s339 + $0x3b8] sm:$0xff] %v4647
      %4784 = vst [vmem:[%s339 + $0x3c0] sm:$0xff] %v4649
      %4785 = vst [vmem:[%s339 + $0x3c8] sm:$0xff] %v4651
      %4786 = vst [vmem:[%s339 + $0x3d0] sm:$0xff] %v4653
      %4787 = vst [vmem:[%s339 + $0x3d8] sm:$0xff] %v4655
      %4788 = vst [vmem:[%s339 + $0x3e0] sm:$0xff] %v4657
      %4789 = vst [vmem:[%s339 + $0x3e8] sm:$0xff] %v4659
      %4790 = vst [vmem:[%s339 + $0x3f0] sm:$0xff] %v4661
      %4791 = vst [vmem:[%s339 + $0x3f8] sm:$0xff] %v4663
      %s4792 = smul.u32 64, %s20
      %p4793 = scmp.lt.s32.totalorder %s4792, 127
      %s4794 = scalar_select %p4793, %s4792, 127
      %s4795 = smul.addr %s4794, 2
      %s4796 = smul.addr %s4795, 8
      %s4797 = scalar_lea.vmem %s9, %s4796
      // Predicated region
      $region57: #{autoencoder_forward.1} parent=55 // pred_check
        %p4798 = pneg %p232
      $region58: #{autoencoder_forward.1} parent=55 // pred_check_branch
        %4800 = sbr.rel (%p4798) target = $region60
      $region59: #{autoencoder_forward.1} parent=55 // pred_region
        %s4801 = smul.u32 64, %s20
      $region60: #{autoencoder_forward.1} parent=55 // pred_fallthru
        _
    $region56: #{autoencoder_forward.1} parent=5 // pred_fallthru
      _
    %p4802 = scmp.le.s32.totalorder 2, %s15
    // Predicated region
    $region61: #{autoencoder_forward.1} parent=5 // pred_check
      %p4803 = pneg %p4802
    $region62: #{autoencoder_forward.1} parent=5 // pred_check_branch
      %4805 = sbr.rel (%p4803) target = $region64
    $region63: #{autoencoder_forward.1} parent=5 // pred_region
      %s4806 = ssub.s32 %s15, 2
      // Predicated region
      $region65: #{autoencoder_forward.1} parent=63 // pred_check
        %p4807 = pneg %p238
      $region66: #{autoencoder_forward.1} parent=63 // pred_check_branch
        %4809 = sbr.rel (%p4807) target = $region68
      $region67: #{autoencoder_forward.1} parent=63 // pred_region
        %s4810 = smul.u32 64, %s21
        %p4811 = scmp.lt.s32.totalorder %s4810, 127
        %s4812 = scalar_select %p4811, %s4810, 127
        %s4813 = smul.addr %s4812, 2
        %s4814 = smul.addr %s4813, 8
        %s4815 = scalar_lea.vmem %s9, %s4814
      $region68: #{autoencoder_forward.1} parent=63 // pred_fallthru
        _
    $region64: #{autoencoder_forward.1} parent=5 // pred_fallthru
      _
  $region6: #{autoencoder_forward.1} parent=0 // loop_footer
    %s19 = sadd.s32 1, %s15
  $region7: #{autoencoder_forward.1} parent=0 // loop_footer_branch
    %14 = sbr.rel target = $region3
  $region8: #{autoencoder_forward.1} parent=0 // loop_exit
    _

</llo_original>
